<compile_context>
chip_gen: v7x
topology: tpu7x:2x2x1
jax: 0.10.0
libtpu: 0.0.40
codegen_flags: <defaults>
</compile_context>

<pallas_src>
import functools

import jax
import jax.numpy as jnp
import numpy as np
from jax.experimental import pallas as pl
from jax.experimental.pallas import tpu as pltpu


def _egcl_kernel(h_ref, coord_ref, ccol_ref, col_ref, hw1b_ref, wm_ref, vec_ref,
                 h_out_ref, coord_out_ref, *, k):
    tn, hdim = h_ref.shape
    te = tn * k
    n_total = hw1b_ref.shape[0]

    # packed matrices (resident, constant index_map): [w1a | w2 | wc1 | wc2blk | wg1 | wg2]
    def w(j):
        return wm_ref[pl.ds(j * hdim, hdim), :]
    w1a, w2, wc1, wc2b, wg1, wg2 = (w(j) for j in range(6))

    # packed vectors (f32): rows = [w1r, b1, b2, bc1, bg1, bg2, bc2(broadcast), pad]
    vec = vec_ref[...]
    w1r, b1, b2 = vec[0:1, :], vec[1:2, :], vec[2:3, :]
    bc1, bg1, bg2 = vec[3:4, :], vec[4:5, :], vec[5:6, :]
    bc2 = vec[6:7, 0:1]

    h_f32 = h_ref[...]            # [TN, H] f32
    coord_t = coord_ref[...]      # [TN, 3] f32
    ccol = ccol_ref[...]          # [TE, 3] f32  (wrapper-gathered coord[col], 3-wide)

    # ---- in-kernel col-side feature gather (one-hot MXU selection) ----------
    # Exact row selection from the resident bf16 table: products are 1.0*value, f32 accum.
    col_idx = col_ref[...]                                              # [TE, 1] int32
    eq = jax.lax.broadcasted_iota(jnp.int32, (te, n_total), 1) == col_idx
    onehot = jnp.where(eq, 1.0, 0.0).astype(jnp.bfloat16)               # [TE, N]
    t_col = jnp.dot(onehot, hw1b_ref[...],
                    preferred_element_type=jnp.float32)                 # [TE, H] == (h@W1b)[col]

    # coord[row] is the node tile repeated K times: reconstruct by broadcasting.
    cdiff = (coord_t[:, None, :] - ccol.reshape(tn, k, 3)).reshape(te, 3)   # [TE, 3]
    radial = jnp.sum(cdiff * cdiff, axis=1, keepdims=True)                  # [TE, 1]

    # ---- edge_mlp: Linear(2F+1, H) -> SiLU -> Linear(H, H) -> SiLU ----------
    # h[row] @ W1a is identical for the K edges of a node: compute per node, broadcast.
    t_row = jnp.dot(h_f32.astype(jnp.bfloat16), w1a,
                    preferred_element_type=jnp.float32)                 # [TN, H]
    z1 = ((t_col.reshape(tn, k, hdim) + t_row[:, None, :]).reshape(te, hdim)
          + radial * w1r + b1)
    m = jax.nn.silu(z1)
    edge_feat = jax.nn.silu(
        jnp.dot(m.astype(jnp.bfloat16), w2, preferred_element_type=jnp.float32) + b2)

    # ---- coord_mlp: Linear(H, H) -> SiLU -> Linear(H, 1) --------------------
    c1 = jax.nn.silu(
        jnp.dot(edge_feat.astype(jnp.bfloat16), wc1, preferred_element_type=jnp.float32) + bc1)
    # Linear(H, 1) on the MXU (wc2 lives in column 0 of wc2b) instead of a lane reduction.
    s = jnp.dot(c1.astype(jnp.bfloat16), wc2b,
                preferred_element_type=jnp.float32)[:, 0:1] + bc2       # [TE, 1]
    trans = cdiff * s

    # ---- segment reductions over `row`: contiguous K-wise sums --------------
    # Relayout-free when k matches the f32 sublane pack (k == 8); still correct otherwise.
    agg_c = jnp.sum(trans.reshape(tn, k, 3), axis=1) * (1.0 / k)        # mean  [TN, 3]
    coord_out_ref[...] = coord_t + agg_c

    agg = jnp.sum(edge_feat.reshape(tn, k, hdim), axis=1)               # sum   [TN, H]
    g1 = jax.nn.relu(
        jnp.dot(agg.astype(jnp.bfloat16), wg1, preferred_element_type=jnp.float32) + bg1)
    gate = jax.nn.sigmoid(
        jnp.dot(g1.astype(jnp.bfloat16), wg2, preferred_element_type=jnp.float32) + bg2)
    h_out_ref[...] = h_f32 + gate * agg                                 # residual in f32


_VMEM_STEP_BUDGET = 40 << 20   # conservative per-step budget (fits v7x's 64 MiB with headroom)


def _step_vmem_bytes(tn, k, f, n):
    """Per-grid-step VMEM: double-buffered tiled blocks + live kernel temporaries."""
    te = tn * k
    tiled = 2 * (tn * f * 4 + tn * 3 * 4 + te * 3 * 4 + te * 4        # inputs
                 + tn * f * 4 + tn * 3 * 4)                            # outputs
    # temporaries: one-hot (f32 + bf16 copies) + ~9 live [TE, H] f32/bf16 arrays + 3-wide temps
    tmp = te * n * 6 + 9 * te * f * 4 + 6 * te * 3 * 4
    return tiled + tmp


def _pick_tile(n, k, f, requested=None):
    def fits(tn):
        return _step_vmem_bytes(tn, k, f, n) <= _VMEM_STEP_BUDGET

    if requested is not None:
        if requested <= 0 or requested % 8 != 0 or n % requested != 0:
            raise ValueError("tile_nodes must be a positive multiple of 8 that divides N")
        if not fits(requested):
            raise ValueError("tile_nodes too large for VMEM; pick a smaller tile")
        return requested

    cands = [d for d in range(8, n + 1, 8) if n % d == 0 and fits(d)]
    if not cands:
        raise ValueError(
            "no tile fits VMEM: the one-hot gather needs TExN scratch; for very large "
            "graphs switch to a jnp.take / DMA-gather variant (see TODO)")
    # prefer >= 8 grid steps (v7x megacore sharding + DMA pipelining), largest such tile.
    pref = [c for c in cands if n // c >= 8 and c <= 512]
    return max(pref) if pref else min(cands)


def egcl_pdb_forward(h, coord, row, col, params, *, k, tile_nodes=None):
    """Forward pass of E_GCL_PDB (residual=True, attention/normalize/tanh off,
    coords_agg='mean', edge_attr=None, mask=None).

    Contract: exactly k edges per source node, grouped contiguously, i.e.
    row == repeat(arange(N), k). col holds arbitrary node indices in [0, N).
    """
    n, f = h.shape
    hidden = params["w2"].shape[1]
    if f != hidden:
        raise ValueError("residual path requires input_nf == hidden_nf")
    if row.shape[0] != n * k or col.shape[0] != n * k:
        raise ValueError("row/col must have exactly N*k entries")
    try:                                # concrete inputs: verify the structural contract
        row_np = np.asarray(row)
    except Exception:                   # tracer under jit: contract is documented above
        row_np = None
    if row_np is not None and not np.array_equal(row_np, np.repeat(np.arange(n), k)):
        raise ValueError("row must equal repeat(arange(N), k) (edges grouped by source node)")

    tn = _pick_tile(n, k, hidden, tile_nodes)
    te = tn * k
    grid = (n // tn,)

    # Col-side prep: no K-duplicated [N*K, H] array is ever materialized in HBM.
    hw1b = jnp.dot(h, params["w1b"]).astype(jnp.bfloat16)              # [N, H] resident table
    c_col = coord[col]                                                 # [N*k, 3] exact f32
    col2d = col.reshape(n * k, 1).astype(jnp.int32)                    # [N*k, 1]

    # Pack parameters: one bf16 matrix slab + one f32 vector slab (2 resident DMA streams).
    wc2_block = jnp.zeros((hidden, hidden), jnp.float32).at[:, 0].set(params["wc2"][:, 0])
    wm = jnp.concatenate(
        [params["w1a"], params["w2"], params["wc1"],
         wc2_block, params["wg1"], params["wg2"]], axis=0).astype(jnp.bfloat16)    # [6H, H]
    vec = jnp.concatenate(
        [params["w1r"], params["b1"], params["b2"], params["bc1"],
         params["bg1"], params["bg2"],
         jnp.broadcast_to(params["bc2"], (1, hidden)),
         jnp.zeros((1, hidden), jnp.float32)], axis=0).astype(jnp.float32)         # [8, H]

    # VMEM estimate: per-step blocks + temporaries + (double-buffered) resident params.
    est = (_step_vmem_bytes(tn, k, hidden, n)
           + 2 * (hw1b.size * 2 + wm.size * 2 + vec.size * 4))
    vmem_limit = None
    if est > (12 << 20):       # below the smallest per-generation scoped default (v5e: 16 MiB)
        vmem_limit = min(int(est * 1.3) + (2 << 20), 48 << 20)   # 48 MiB cap: safe on v7x (64 MiB)

    in_specs = [
        pl.BlockSpec((tn, f), lambda i: (i, 0)),        # h tile (f32)
        pl.BlockSpec((tn, 3), lambda i: (i, 0)),        # coord tile
        pl.BlockSpec((te, 3), lambda i: (i, 0)),        # coord[col] tile
        pl.BlockSpec((te, 1), lambda i: (i, 0)),        # col indices tile (int32)
        pl.BlockSpec((n, hidden), lambda i: (0, 0)),    # (h @ W1b) bf16, resident
        pl.BlockSpec(wm.shape, lambda i: (0, 0)),       # packed matrices, resident
        pl.BlockSpec(vec.shape, lambda i: (0, 0)),      # packed vectors, resident
    ]
    out_specs = (
        pl.BlockSpec((tn, f), lambda i: (i, 0)),
        pl.BlockSpec((tn, 3), lambda i: (i, 0)),
    )

    cp_kwargs = dict(dimension_semantics=("parallel",))
    if vmem_limit is not None:
        cp_kwargs["vmem_limit_bytes"] = vmem_limit

    h_out, coord_out = pl.pallas_call(
        functools.partial(_egcl_kernel, k=k),
        out_shape=(jax.ShapeDtypeStruct((n, f), jnp.float32),
                   jax.ShapeDtypeStruct((n, 3), jnp.float32)),
        grid=grid,
        in_specs=in_specs,
        out_specs=out_specs,
        compiler_params=pltpu.CompilerParams(**cp_kwargs),
    )(h, coord, c_col, col2d, hw1b, wm, vec)
    return h_out, coord_out


# ---------------- pure-JAX reference (mirrors the PyTorch module, full f32) ----------------
def _reference(h, coord, row, col, params, n):
    p = params
    cdiff = coord[row] - coord[col]
    radial = jnp.sum(cdiff ** 2, axis=1, keepdims=True)
    z1 = h[row] @ p["w1a"] + h[col] @ p["w1b"] + radial * p["w1r"] + p["b1"]
    ef = jax.nn.silu(jax.nn.silu(z1) @ p["w2"] + p["b2"])
    c1 = jax.nn.silu(ef @ p["wc1"] + p["bc1"])
    s = c1 @ p["wc2"] + p["bc2"]
    trans = cdiff * s
    cnt = jax.ops.segment_sum(jnp.ones_like(trans), row, n)
    agg_c = jax.ops.segment_sum(trans, row, n) / jnp.maximum(cnt, 1.0)
    coord_out = coord + agg_c
    agg = jax.ops.segment_sum(ef, row, n)
    gate = jax.nn.sigmoid(jax.nn.relu(agg @ p["wg1"] + p["bg1"]) @ p["wg2"] + p["bg2"])
    h_out = h + gate * agg
    return h_out, coord_out


def _xavier(key, shape, gain=1.0):
    fan_in, fan_out = shape
    a = gain * (6.0 / (fan_in + fan_out)) ** 0.5
    return jax.random.uniform(key, shape, jnp.float32, -a, a)


def make_params(key, input_nf, hidden_nf):
    ks = jax.random.split(key, 8)
    return {
        # edge_mlp layer 1 split: [W1a (source) | W1b (target) | w1r (radial)]
        "w1a": _xavier(ks[0], (input_nf, hidden_nf)),
        "w1b": _xavier(ks[1], (input_nf, hidden_nf)),
        "w1r": _xavier(ks[2], (1, hidden_nf)),
        "b1": jnp.zeros((1, hidden_nf), jnp.float32),
        "w2": _xavier(ks[3], (hidden_nf, hidden_nf)),
        "b2": jnp.zeros((1, hidden_nf), jnp.float32),
        # coord_mlp (xavier gain=0.01 as in the module)
        "wc1": _xavier(ks[4], (hidden_nf, hidden_nf), gain=0.01),
        "bc1": jnp.zeros((1, hidden_nf), jnp.float32),
        "wc2": _xavier(ks[5], (hidden_nf, 1), gain=0.01),
        "bc2": jnp.zeros((1, 1), jnp.float32),
        # node_gate
        "wg1": _xavier(ks[6], (hidden_nf, hidden_nf)),
        "bg1": jnp.zeros((1, hidden_nf), jnp.float32),
        "wg2": _xavier(ks[7], (hidden_nf, hidden_nf)),
        "bg2": jnp.zeros((1, hidden_nf), jnp.float32),
    }


if __name__ == "__main__":
    # batch=2, length=128 -> N = 256 nodes; K = 8 neighbors; lane-dense hidden = 128.
    N, K = 256, 8
    INPUT_NF = HIDDEN_NF = 128   # residual path requires input_nf == hidden_nf

    key = jax.random.PRNGKey(0)
    k_h, k_c, k_col, k_p = jax.random.split(key, 4)

    h = jax.random.normal(k_h, (N, INPUT_NF), jnp.float32)
    coord = jax.random.normal(k_c, (N, 3), jnp.float32)
    row = jnp.repeat(jnp.arange(N, dtype=jnp.int32), K)            # [N*K]
    col = jax.random.randint(k_col, (N * K,), 0, N, jnp.int32)     # [N*K]
    params = make_params(k_p, INPUT_NF, HIDDEN_NF)

    h_out, coord_out = egcl_pdb_forward(h, coord, row, col, params, k=K)
    jax.block_until_ready((h_out, coord_out))

    h_ref, c_ref = _reference(h, coord, row, col, params, N)
    # Tolerance accounts for bf16 MXU inputs (f32 accumulation) vs. the all-f32 reference.
    np.testing.assert_allclose(np.asarray(h_out), np.asarray(h_ref), rtol=5e-2, atol=5e-2)
    np.testing.assert_allclose(np.asarray(coord_out), np.asarray(c_ref), rtol=5e-2, atol=5e-2)

    print("KERNEL_OK")
</pallas_src>

<mosaic_0001>
module attributes {stable_mosaic.version = 11 : i64} {
  func.func @_egcl_kernel(%arg0: i32, %arg1: memref<32x128xf32, #tpu.memory_space<vmem>>, %arg2: memref<32x3xf32, #tpu.memory_space<vmem>>, %arg3: memref<256x3xf32, #tpu.memory_space<vmem>>, %arg4: memref<256x1xi32, #tpu.memory_space<vmem>>, %arg5: memref<256x128xbf16, #tpu.memory_space<vmem>>, %arg6: memref<768x128xbf16, #tpu.memory_space<vmem>>, %arg7: memref<8x128xf32, #tpu.memory_space<vmem>>, %arg8: memref<32x128xf32, #tpu.memory_space<vmem>>, %arg9: memref<32x3xf32, #tpu.memory_space<vmem>>) attributes {dimension_semantics = [#tpu.dimension_semantics<parallel>], iteration_bounds = array<i64: 8>, scalar_prefetch = 0 : i64, scratch_operands = 0 : i64, tpu.core_type = #tpu.core_type<tc>, window_params = [{transform_indices = @transform_0, window_bounds = array<i64: 32, 128>}, {transform_indices = @transform_1, window_bounds = array<i64: 32, 3>}, {transform_indices = @transform_2, window_bounds = array<i64: 256, 3>}, {transform_indices = @transform_3, window_bounds = array<i64: 256, 1>}, {pipeline_mode = #tpu.pipeline_mode<synchronous>, transform_indices = @transform_4, window_bounds = array<i64: 256, 128>}, {pipeline_mode = #tpu.pipeline_mode<synchronous>, transform_indices = @transform_5, window_bounds = array<i64: 768, 128>}, {pipeline_mode = #tpu.pipeline_mode<synchronous>, transform_indices = @transform_6, window_bounds = array<i64: 8, 128>}, {transform_indices = @transform_7, window_bounds = array<i64: 32, 128>}, {transform_indices = @transform_8, window_bounds = array<i64: 32, 3>}]} {
    %c0 = arith.constant 0 : index
    %c0_0 = arith.constant 0 : index
    %0 = vector.load %arg6[%c0, %c0_0] : memref<768x128xbf16, #tpu.memory_space<vmem>>, vector<128x128xbf16>
    %c128 = arith.constant 128 : index
    %c0_1 = arith.constant 0 : index
    %1 = vector.load %arg6[%c128, %c0_1] : memref<768x128xbf16, #tpu.memory_space<vmem>>, vector<128x128xbf16>
    %c256 = arith.constant 256 : index
    %c0_2 = arith.constant 0 : index
    %2 = vector.load %arg6[%c256, %c0_2] : memref<768x128xbf16, #tpu.memory_space<vmem>>, vector<128x128xbf16>
    %c384 = arith.constant 384 : index
    %c0_3 = arith.constant 0 : index
    %3 = vector.load %arg6[%c384, %c0_3] : memref<768x128xbf16, #tpu.memory_space<vmem>>, vector<128x128xbf16>
    %c512 = arith.constant 512 : index
    %c0_4 = arith.constant 0 : index
    %4 = vector.load %arg6[%c512, %c0_4] : memref<768x128xbf16, #tpu.memory_space<vmem>>, vector<128x128xbf16>
    %c640 = arith.constant 640 : index
    %c0_5 = arith.constant 0 : index
    %5 = vector.load %arg6[%c640, %c0_5] : memref<768x128xbf16, #tpu.memory_space<vmem>>, vector<128x128xbf16>
    %c0_6 = arith.constant 0 : index
    %c0_7 = arith.constant 0 : index
    %6 = vector.load %arg7[%c0_6, %c0_7] : memref<8x128xf32, #tpu.memory_space<vmem>>, vector<8x128xf32>
    %7 = vector.extract_strided_slice %6 {offsets = [0, 0], sizes = [1, 128], strides = [1, 1]} : vector<8x128xf32> to vector<1x128xf32>
    %8 = vector.extract_strided_slice %6 {offsets = [1, 0], sizes = [1, 128], strides = [1, 1]} : vector<8x128xf32> to vector<1x128xf32>
    %9 = vector.extract_strided_slice %6 {offsets = [2, 0], sizes = [1, 128], strides = [1, 1]} : vector<8x128xf32> to vector<1x128xf32>
    %10 = vector.extract_strided_slice %6 {offsets = [3, 0], sizes = [1, 128], strides = [1, 1]} : vector<8x128xf32> to vector<1x128xf32>
    %11 = vector.extract_strided_slice %6 {offsets = [4, 0], sizes = [1, 128], strides = [1, 1]} : vector<8x128xf32> to vector<1x128xf32>
    %12 = vector.extract_strided_slice %6 {offsets = [5, 0], sizes = [1, 128], strides = [1, 1]} : vector<8x128xf32> to vector<1x128xf32>
    %13 = vector.extract_strided_slice %6 {offsets = [6, 0], sizes = [1, 1], strides = [1, 1]} : vector<8x128xf32> to vector<1x1xf32>
    %c0_8 = arith.constant 0 : index
    %c0_9 = arith.constant 0 : index
    %14 = vector.load %arg1[%c0_8, %c0_9] : memref<32x128xf32, #tpu.memory_space<vmem>>, vector<32x128xf32>
    %c0_10 = arith.constant 0 : index
    %c0_11 = arith.constant 0 : index
    %15 = vector.load %arg2[%c0_10, %c0_11] : memref<32x3xf32, #tpu.memory_space<vmem>>, vector<32x3xf32>
    %c0_12 = arith.constant 0 : index
    %c0_13 = arith.constant 0 : index
    %16 = vector.load %arg3[%c0_12, %c0_13] : memref<256x3xf32, #tpu.memory_space<vmem>>, vector<256x3xf32>
    %c0_14 = arith.constant 0 : index
    %c0_15 = arith.constant 0 : index
    %17 = vector.load %arg4[%c0_14, %c0_15] : memref<256x1xi32, #tpu.memory_space<vmem>>, vector<256x1xi32>
    %18 = tpu.iota {dimensions = array<i32: 1>} : vector<256x256xi32>
    %19 = vector.broadcast %17 : vector<256x1xi32> to vector<256x256xi32>
    %20 = arith.cmpi eq, %18, %19 : vector<256x256xi32>
    %cst = arith.constant 1.000000e+00 : f32
    %cst_16 = arith.constant 0.000000e+00 : f32
    %21 = vector.broadcast %cst : f32 to vector<256x256xf32>
    %22 = vector.broadcast %cst_16 : f32 to vector<256x256xf32>
    %23 = arith.select %20, %21, %22 : vector<256x256xi1>, vector<256x256xf32>
    %24 = arith.truncf %23 : vector<256x256xf32> to vector<256x256xbf16>
    %c0_17 = arith.constant 0 : index
    %c0_18 = arith.constant 0 : index
    %25 = vector.load %arg5[%c0_17, %c0_18] : memref<256x128xbf16, #tpu.memory_space<vmem>>, vector<256x128xbf16>
    %cst_19 = arith.constant dense<0.000000e+00> : vector<256x128xf32>
    %26 = tpu.matmul %24, %25, %cst_19 {dimension_numbers = #tpu.dot_dimension_numbers<[1], [0], [0], [1], [0, 0, 1, 1], [], []>} : vector<256x256xbf16>, vector<256x128xbf16>, vector<256x128xf32> -> vector<256x128xf32>
    %27 = vector.shape_cast %15 : vector<32x3xf32> to vector<32x1x3xf32>
    %28 = vector.shape_cast %16 : vector<256x3xf32> to vector<32x8x3xf32>
    %29 = vector.broadcast %27 : vector<32x1x3xf32> to vector<32x8x3xf32>
    %30 = arith.subf %29, %28 : vector<32x8x3xf32>
    %31 = vector.shape_cast %30 : vector<32x8x3xf32> to vector<256x3xf32>
    %32 = arith.mulf %31, %31 : vector<256x3xf32>
    %cst_20 = arith.constant dense<0.000000e+00> : vector<256xf32>
    %33 = vector.multi_reduction <add>, %32, %cst_20 [1] : vector<256x3xf32> to vector<256xf32>
    %34 = vector.shape_cast %33 : vector<256xf32> to vector<256x1xf32>
    %35 = arith.truncf %14 : vector<32x128xf32> to vector<32x128xbf16>
    %cst_21 = arith.constant dense<0.000000e+00> : vector<32x128xf32>
    %36 = tpu.matmul %35, %0, %cst_21 {dimension_numbers = #tpu.dot_dimension_numbers<[1], [0], [0], [1], [0, 0, 1, 1], [], []>} : vector<32x128xbf16>, vector<128x128xbf16>, vector<32x128xf32> -> vector<32x128xf32>
    %37 = vector.shape_cast %26 : vector<256x128xf32> to vector<32x8x128xf32>
    %38 = vector.shape_cast %36 : vector<32x128xf32> to vector<32x1x128xf32>
    %39 = vector.broadcast %38 : vector<32x1x128xf32> to vector<32x8x128xf32>
    %40 = arith.addf %37, %39 : vector<32x8x128xf32>
    %41 = vector.shape_cast %40 : vector<32x8x128xf32> to vector<256x128xf32>
    %42 = vector.broadcast %34 : vector<256x1xf32> to vector<256x128xf32>
    %43 = vector.broadcast %7 : vector<1x128xf32> to vector<256x128xf32>
    %44 = arith.mulf %42, %43 : vector<256x128xf32>
    %45 = arith.addf %41, %44 : vector<256x128xf32>
    %46 = vector.broadcast %8 : vector<1x128xf32> to vector<256x128xf32>
    %47 = arith.addf %45, %46 : vector<256x128xf32>
    %48 = arith.negf %47 : vector<256x128xf32>
    %49 = math.exp %48 : vector<256x128xf32>
    %cst_22 = arith.constant 1.000000e+00 : f32
    %50 = vector.broadcast %cst_22 : f32 to vector<256x128xf32>
    %51 = arith.addf %50, %49 : vector<256x128xf32>
    %52 = arith.divf %50, %51 : vector<256x128xf32>
    %53 = arith.mulf %47, %52 : vector<256x128xf32>
    %54 = arith.truncf %53 : vector<256x128xf32> to vector<256x128xbf16>
    %cst_23 = arith.constant dense<0.000000e+00> : vector<256x128xf32>
    %55 = tpu.matmul %54, %1, %cst_23 {dimension_numbers = #tpu.dot_dimension_numbers<[1], [0], [0], [1], [0, 0, 1, 1], [], []>} : vector<256x128xbf16>, vector<128x128xbf16>, vector<256x128xf32> -> vector<256x128xf32>
    %56 = vector.broadcast %9 : vector<1x128xf32> to vector<256x128xf32>
    %57 = arith.addf %55, %56 : vector<256x128xf32>
    %58 = arith.negf %57 : vector<256x128xf32>
    %59 = math.exp %58 : vector<256x128xf32>
    %cst_24 = arith.constant 1.000000e+00 : f32
    %60 = vector.broadcast %cst_24 : f32 to vector<256x128xf32>
    %61 = arith.addf %60, %59 : vector<256x128xf32>
    %62 = arith.divf %60, %61 : vector<256x128xf32>
    %63 = arith.mulf %57, %62 : vector<256x128xf32>
    %64 = arith.truncf %63 : vector<256x128xf32> to vector<256x128xbf16>
    %cst_25 = arith.constant dense<0.000000e+00> : vector<256x128xf32>
    %65 = tpu.matmul %64, %2, %cst_25 {dimension_numbers = #tpu.dot_dimension_numbers<[1], [0], [0], [1], [0, 0, 1, 1], [], []>} : vector<256x128xbf16>, vector<128x128xbf16>, vector<256x128xf32> -> vector<256x128xf32>
    %66 = vector.broadcast %10 : vector<1x128xf32> to vector<256x128xf32>
    %67 = arith.addf %65, %66 : vector<256x128xf32>
    %68 = arith.negf %67 : vector<256x128xf32>
    %69 = math.exp %68 : vector<256x128xf32>
    %cst_26 = arith.constant 1.000000e+00 : f32
    %70 = vector.broadcast %cst_26 : f32 to vector<256x128xf32>
    %71 = arith.addf %70, %69 : vector<256x128xf32>
    %72 = arith.divf %70, %71 : vector<256x128xf32>
    %73 = arith.mulf %67, %72 : vector<256x128xf32>
    %74 = arith.truncf %73 : vector<256x128xf32> to vector<256x128xbf16>
    %cst_27 = arith.constant dense<0.000000e+00> : vector<256x128xf32>
    %75 = tpu.matmul %74, %3, %cst_27 {dimension_numbers = #tpu.dot_dimension_numbers<[1], [0], [0], [1], [0, 0, 1, 1], [], []>} : vector<256x128xbf16>, vector<128x128xbf16>, vector<256x128xf32> -> vector<256x128xf32>
    %76 = vector.extract_strided_slice %75 {offsets = [0, 0], sizes = [256, 1], strides = [1, 1]} : vector<256x128xf32> to vector<256x1xf32>
    %77 = vector.broadcast %13 : vector<1x1xf32> to vector<256x1xf32>
    %78 = arith.addf %76, %77 : vector<256x1xf32>
    %79 = vector.broadcast %78 : vector<256x1xf32> to vector<256x3xf32>
    %80 = arith.mulf %31, %79 : vector<256x3xf32>
    %81 = vector.shape_cast %80 : vector<256x3xf32> to vector<32x8x3xf32>
    %cst_28 = arith.constant dense<0.000000e+00> : vector<32x3xf32>
    %82 = vector.multi_reduction <add>, %81, %cst_28 [1] : vector<32x8x3xf32> to vector<32x3xf32>
    %cst_29 = arith.constant 1.250000e-01 : f32
    %83 = vector.broadcast %cst_29 : f32 to vector<32x3xf32>
    %84 = arith.mulf %82, %83 : vector<32x3xf32>
    %85 = arith.addf %15, %84 : vector<32x3xf32>
    %c0_30 = arith.constant 0 : index
    %c0_31 = arith.constant 0 : index
    %86 = vector.load %arg9[%c0_30, %c0_31] : memref<32x3xf32, #tpu.memory_space<vmem>>, vector<32x3xf32>
    tpu.vector_store %arg9[%c0_30, %c0_31], %85 {strides = array<i32>} : memref<32x3xf32, #tpu.memory_space<vmem>>, vector<32x3xf32>,
    %87 = vector.shape_cast %63 : vector<256x128xf32> to vector<32x8x128xf32>
    %cst_32 = arith.constant dense<0.000000e+00> : vector<32x128xf32>
    %88 = vector.multi_reduction <add>, %87, %cst_32 [1] : vector<32x8x128xf32> to vector<32x128xf32>
    %89 = arith.truncf %88 : vector<32x128xf32> to vector<32x128xbf16>
    %cst_33 = arith.constant dense<0.000000e+00> : vector<32x128xf32>
    %90 = tpu.matmul %89, %4, %cst_33 {dimension_numbers = #tpu.dot_dimension_numbers<[1], [0], [0], [1], [0, 0, 1, 1], [], []>} : vector<32x128xbf16>, vector<128x128xbf16>, vector<32x128xf32> -> vector<32x128xf32>
    %91 = vector.broadcast %11 : vector<1x128xf32> to vector<32x128xf32>
    %92 = arith.addf %90, %91 : vector<32x128xf32>
    %cst_34 = arith.constant 0.000000e+00 : f32
    %93 = vector.broadcast %cst_34 : f32 to vector<32x128xf32>
    %94 = arith.maximumf %92, %93 : vector<32x128xf32>
    %95 = arith.truncf %94 : vector<32x128xf32> to vector<32x128xbf16>
    %cst_35 = arith.constant dense<0.000000e+00> : vector<32x128xf32>
    %96 = tpu.matmul %95, %5, %cst_35 {dimension_numbers = #tpu.dot_dimension_numbers<[1], [0], [0], [1], [0, 0, 1, 1], [], []>} : vector<32x128xbf16>, vector<128x128xbf16>, vector<32x128xf32> -> vector<32x128xf32>
    %97 = vector.broadcast %12 : vector<1x128xf32> to vector<32x128xf32>
    %98 = arith.addf %96, %97 : vector<32x128xf32>
    %99 = arith.negf %98 : vector<32x128xf32>
    %100 = math.exp %99 : vector<32x128xf32>
    %cst_36 = arith.constant 1.000000e+00 : f32
    %101 = vector.broadcast %cst_36 : f32 to vector<32x128xf32>
    %102 = arith.addf %101, %100 : vector<32x128xf32>
    %103 = arith.divf %101, %102 : vector<32x128xf32>
    %104 = arith.mulf %103, %88 : vector<32x128xf32>
    %105 = arith.addf %14, %104 : vector<32x128xf32>
    %c0_37 = arith.constant 0 : index
    %c0_38 = arith.constant 0 : index
    %106 = vector.load %arg8[%c0_37, %c0_38] : memref<32x128xf32, #tpu.memory_space<vmem>>, vector<32x128xf32>
    tpu.vector_store %arg8[%c0_37, %c0_38], %105 {strides = array<i32>} : memref<32x128xf32, #tpu.memory_space<vmem>>, vector<32x128xf32>,
    return
  }
  func.func @transform_0(%arg0: i32) -> (i32, i32) {
    %c0_i32 = arith.constant 0 : i32
    %c0_i32_0 = arith.constant 0 : i32
    return %arg0, %c0_i32 : i32, i32
  }
  func.func @transform_1(%arg0: i32) -> (i32, i32) {
    %c0_i32 = arith.constant 0 : i32
    %c0_i32_0 = arith.constant 0 : i32
    return %arg0, %c0_i32 : i32, i32
  }
  func.func @transform_2(%arg0: i32) -> (i32, i32) {
    %c0_i32 = arith.constant 0 : i32
    %c0_i32_0 = arith.constant 0 : i32
    return %arg0, %c0_i32 : i32, i32
  }
  func.func @transform_3(%arg0: i32) -> (i32, i32) {
    %c0_i32 = arith.constant 0 : i32
    %c0_i32_0 = arith.constant 0 : i32
    return %arg0, %c0_i32 : i32, i32
  }
  func.func @transform_4(%arg0: i32) -> (i32, i32) {
    %c0_i32 = arith.constant 0 : i32
    %c0_i32_0 = arith.constant 0 : i32
    %c0_i32_1 = arith.constant 0 : i32
    return %c0_i32, %c0_i32_0 : i32, i32
  }
  func.func @transform_5(%arg0: i32) -> (i32, i32) {
    %c0_i32 = arith.constant 0 : i32
    %c0_i32_0 = arith.constant 0 : i32
    %c0_i32_1 = arith.constant 0 : i32
    return %c0_i32, %c0_i32_0 : i32, i32
  }
  func.func @transform_6(%arg0: i32) -> (i32, i32) {
    %c0_i32 = arith.constant 0 : i32
    %c0_i32_0 = arith.constant 0 : i32
    %c0_i32_1 = arith.constant 0 : i32
    return %c0_i32, %c0_i32_0 : i32, i32
  }
  func.func @transform_7(%arg0: i32) -> (i32, i32) {
    %c0_i32 = arith.constant 0 : i32
    %c0_i32_0 = arith.constant 0 : i32
    return %arg0, %c0_i32 : i32, i32
  }
  func.func @transform_8(%arg0: i32) -> (i32, i32) {
    %c0_i32 = arith.constant 0 : i32
    %c0_i32_0 = arith.constant 0 : i32
    return %arg0, %c0_i32 : i32, i32
  }
}

</mosaic_0001>

<llo_original>
// kernel: tpu_custom_call.1
$region0: #{tpu_custom_call.1}
  #allocation0 [shape = 'u32[]', space=smem, size = 0x4, offset = 0x4, fixed_abs, tag = 'smem constant byte address 0x4 - core index']
  #allocation1 [shape = 'u32[144,128]{1,0:T(1,128)}', space=vmem, size = 0x12000, scoped, tag = 'internal scratch']
  %s0 = inlined_call_operand.vmem [shape: f32[256,128], index: 0, kind: input, shape index: {}]
  %s1 = inlined_call_operand.vmem [shape: f32[256,3], index: 1, kind: input, shape index: {}]
  %s2 = inlined_call_operand.vmem [shape: f32[2048,3], index: 2, kind: input, shape index: {}]
  %s3 = inlined_call_operand.vmem [shape: s32[2048,1], index: 3, kind: input, shape index: {}]
  %s4 = inlined_call_operand.vmem [shape: bf16[256,128], index: 4, kind: input, shape index: {}]
  %s5 = inlined_call_operand.vmem [shape: bf16[768,128], index: 5, kind: input, shape index: {}]
  %s6 = inlined_call_operand.vmem [shape: f32[8,128], index: 6, kind: input, shape index: {}]
  %s7 = inlined_call_operand.hbm [shape: f32[256,128], index: 7, kind: output, shape index: {0}]
  %s8 = inlined_call_operand.vmem [shape: f32[256,3], index: 8, kind: output, shape index: {1}]
  %9 = xla_tuple %s7, %s8
  %s10 = sld [smem:[#allocation0]]
  $region69: #{tpu_custom_call.1} parent=0
    _
  %s12 = ssub.s32 1, %s10
  %s13 = scalar_select 0, %s12, %s10
  $region1: #{tpu_custom_call.1} parent=0
    #allocation2 [shape = 'u8[32768]{0}', space=vmem, size = 0x8000, scoped, tag = 'output window, operand 0']
    #allocation3 [shape = 's32[2]{0}', space=sflag, size = 0x8, scoped, tag = 'scoped memory for tpu_custom_call.1']
    %14 = vsyncpa [#allocation3], 0
    %s15 = scalar_lea.sflag [#allocation3], 1
    %16 = vsyncpa %s15, 0
    loop: start=0, step=1, limit=10
    $region2: #{tpu_custom_call.1} parent=1 // loop_pre_header
      _
    $region3: #{tpu_custom_call.1} parent=1 // loop_header
      %s18 = sphi 0, %s22
      %p19 = scmp.ge.s32.totalorder %s18, 10
      %s28 = sphi 0, %s30
      %s31 = sphi 0, %s28
      %s32 = sphi 0, %s31
      %s48 = sphi 0, %s32
      %s54 = sphi 0, %s56
      %s57 = sphi 0, %s54
      %s58 = sphi 0, %s57
      %s74 = sphi 0, %s58
      %s80 = sphi 0, %s82
      %s83 = sphi 0, %s80
      %s84 = sphi 0, %s83
      %s100 = sphi 0, %s84
      %s106 = sphi 0, %s108
      %s109 = sphi 0, %s106
      %s110 = sphi 0, %s109
      %s126 = sphi 0, %s110
      %s130 = sphi 0, %s130
      %s132 = sphi 0, %s130
      %s133 = sphi 0, %s132
      %s147 = sphi 0, %s133
      %s151 = sphi 0, %s151
      %s153 = sphi 0, %s151
      %s154 = sphi 0, %s153
      %s168 = sphi 0, %s154
      %s172 = sphi 0, %s172
      %s174 = sphi 0, %s172
      %s175 = sphi 0, %s174
      %s189 = sphi 0, %s175
      %s195 = sphi 0, %s197
      %s198 = sphi 0, %s195
      %s199 = sphi 0, %s198
      %s215 = sphi 0, %s199
      %s221 = sphi 0, %s223
      %s224 = sphi 0, %s221
      %s225 = sphi 0, %s224
      %s241 = sphi 0, %s225
    $region4: #{tpu_custom_call.1} parent=1 // loop_header_branch
      %21 = sbr.rel (%p19) target = $region8
    $region5: #{tpu_custom_call.1} parent=1 // loop_body
      %s23 = ssub.s32 %s18, 1
      %s24 = ssub.s32 %s18, 2
      %s25 = sadd.s32 %s18, 1
      %s26 = ssub.s32 %s18, %s25
      %p27 = scmp.eq.s32.totalorder %s26, 0
      %s29 = sadd.s32 %s28, 1
      %s30 = scalar_select %p27, %s28, %s29
      %p33 = pneg %p27
      %p34 = scmp.eq.s32.totalorder %s18, 7
      %p35 = por %p33, %p34
      %p36 = scmp.ne.s32.totalorder %s28, %s31
      %p37 = scmp.eq.s32.totalorder %s18, 0
      %p38 = por %p36, %p37
      %p39 = scmp.ne.s32.totalorder %s28, %s31
      %p40 = scmp.eq.s32.totalorder %s23, 7
      %p41 = por %p39, %p40
      %p42 = scmp.ne.s32.totalorder %s31, %s32
      %p43 = scmp.eq.s32.totalorder %s23, 0
      %p44 = por %p42, %p43
      %p45 = scmp.ne.s32.totalorder %s31, %s32
      %p46 = scmp.eq.s32.totalorder %s24, 7
      %p47 = por %p45, %p46
      %p49 = scmp.ne.s32.totalorder %s32, %s48
      %p50 = scmp.eq.s32.totalorder %s24, 0
      %p51 = por %p49, %p50
      %s52 = ssub.s32 %s18, %s25
      %p53 = scmp.eq.s32.totalorder %s52, 0
      %s55 = sadd.s32 %s54, 1
      %s56 = scalar_select %p53, %s54, %s55
      %p59 = pneg %p53
      %p60 = scmp.eq.s32.totalorder %s18, 7
      %p61 = por %p59, %p60
      %p62 = scmp.ne.s32.totalorder %s54, %s57
      %p63 = scmp.eq.s32.totalorder %s18, 0
      %p64 = por %p62, %p63
      %p65 = scmp.ne.s32.totalorder %s54, %s57
      %p66 = scmp.eq.s32.totalorder %s23, 7
      %p67 = por %p65, %p66
      %p68 = scmp.ne.s32.totalorder %s57, %s58
      %p69 = scmp.eq.s32.totalorder %s23, 0
      %p70 = por %p68, %p69
      %p71 = scmp.ne.s32.totalorder %s57, %s58
      %p72 = scmp.eq.s32.totalorder %s24, 7
      %p73 = por %p71, %p72
      %p75 = scmp.ne.s32.totalorder %s58, %s74
      %p76 = scmp.eq.s32.totalorder %s24, 0
      %p77 = por %p75, %p76
      %s78 = ssub.s32 %s18, %s25
      %p79 = scmp.eq.s32.totalorder %s78, 0
      %s81 = sadd.s32 %s80, 1
      %s82 = scalar_select %p79, %s80, %s81
      %p85 = pneg %p79
      %p86 = scmp.eq.s32.totalorder %s18, 7
      %p87 = por %p85, %p86
      %p88 = scmp.ne.s32.totalorder %s80, %s83
      %p89 = scmp.eq.s32.totalorder %s18, 0
      %p90 = por %p88, %p89
      %p91 = scmp.ne.s32.totalorder %s80, %s83
      %p92 = scmp.eq.s32.totalorder %s23, 7
      %p93 = por %p91, %p92
      %p94 = scmp.ne.s32.totalorder %s83, %s84
      %p95 = scmp.eq.s32.totalorder %s23, 0
      %p96 = por %p94, %p95
      %p97 = scmp.ne.s32.totalorder %s83, %s84
      %p98 = scmp.eq.s32.totalorder %s24, 7
      %p99 = por %p97, %p98
      %p101 = scmp.ne.s32.totalorder %s84, %s100
      %p102 = scmp.eq.s32.totalorder %s24, 0
      %p103 = por %p101, %p102
      %s104 = ssub.s32 %s18, %s25
      %p105 = scmp.eq.s32.totalorder %s104, 0
      %s107 = sadd.s32 %s106, 1
      %s108 = scalar_select %p105, %s106, %s107
      %p111 = pneg %p105
      %p112 = scmp.eq.s32.totalorder %s18, 7
      %p113 = por %p111, %p112
      %p114 = scmp.ne.s32.totalorder %s106, %s109
      %p115 = scmp.eq.s32.totalorder %s18, 0
      %p116 = por %p114, %p115
      %p117 = scmp.ne.s32.totalorder %s106, %s109
      %p118 = scmp.eq.s32.totalorder %s23, 7
      %p119 = por %p117, %p118
      %p120 = scmp.ne.s32.totalorder %s109, %s110
      %p121 = scmp.eq.s32.totalorder %s23, 0
      %p122 = por %p120, %p121
      %p123 = scmp.ne.s32.totalorder %s109, %s110
      %p124 = scmp.eq.s32.totalorder %s24, 7
      %p125 = por %p123, %p124
      %p127 = scmp.ne.s32.totalorder %s110, %s126
      %p128 = scmp.eq.s32.totalorder %s24, 0
      %p129 = por %p127, %p128
      %s131 = sadd.s32 %s130, 1
      %p134 = scmp.eq.s32.totalorder %s18, 7
      %p135 = scmp.ne.s32.totalorder %s130, %s132
      %p136 = scmp.eq.s32.totalorder %s18, 0
      %p137 = por %p135, %p136
      %p138 = scmp.ne.s32.totalorder %s130, %s132
      %p139 = scmp.eq.s32.totalorder %s23, 7
      %p140 = por %p138, %p139
      %p141 = scmp.ne.s32.totalorder %s132, %s133
      %p142 = scmp.eq.s32.totalorder %s23, 0
      %p143 = por %p141, %p142
      %p144 = scmp.ne.s32.totalorder %s132, %s133
      %p145 = scmp.eq.s32.totalorder %s24, 7
      %p146 = por %p144, %p145
      %p148 = scmp.ne.s32.totalorder %s133, %s147
      %p149 = scmp.eq.s32.totalorder %s24, 0
      %p150 = por %p148, %p149
      %s152 = sadd.s32 %s151, 1
      %p155 = scmp.eq.s32.totalorder %s18, 7
      %p156 = scmp.ne.s32.totalorder %s151, %s153
      %p157 = scmp.eq.s32.totalorder %s18, 0
      %p158 = por %p156, %p157
      %p159 = scmp.ne.s32.totalorder %s151, %s153
      %p160 = scmp.eq.s32.totalorder %s23, 7
      %p161 = por %p159, %p160
      %p162 = scmp.ne.s32.totalorder %s153, %s154
      %p163 = scmp.eq.s32.totalorder %s23, 0
      %p164 = por %p162, %p163
      %p165 = scmp.ne.s32.totalorder %s153, %s154
      %p166 = scmp.eq.s32.totalorder %s24, 7
      %p167 = por %p165, %p166
      %p169 = scmp.ne.s32.totalorder %s154, %s168
      %p170 = scmp.eq.s32.totalorder %s24, 0
      %p171 = por %p169, %p170
      %s173 = sadd.s32 %s172, 1
      %p176 = scmp.eq.s32.totalorder %s18, 7
      %p177 = scmp.ne.s32.totalorder %s172, %s174
      %p178 = scmp.eq.s32.totalorder %s18, 0
      %p179 = por %p177, %p178
      %p180 = scmp.ne.s32.totalorder %s172, %s174
      %p181 = scmp.eq.s32.totalorder %s23, 7
      %p182 = por %p180, %p181
      %p183 = scmp.ne.s32.totalorder %s174, %s175
      %p184 = scmp.eq.s32.totalorder %s23, 0
      %p185 = por %p183, %p184
      %p186 = scmp.ne.s32.totalorder %s174, %s175
      %p187 = scmp.eq.s32.totalorder %s24, 7
      %p188 = por %p186, %p187
      %p190 = scmp.ne.s32.totalorder %s175, %s189
      %p191 = scmp.eq.s32.totalorder %s24, 0
      %p192 = por %p190, %p191
      %s193 = ssub.s32 %s18, %s25
      %p194 = scmp.eq.s32.totalorder %s193, 0
      %s196 = sadd.s32 %s195, 1
      %s197 = scalar_select %p194, %s195, %s196
      %p200 = pneg %p194
      %p201 = scmp.eq.s32.totalorder %s18, 7
      %p202 = por %p200, %p201
      %p203 = scmp.ne.s32.totalorder %s195, %s198
      %p204 = scmp.eq.s32.totalorder %s18, 0
      %p205 = por %p203, %p204
      %p206 = scmp.ne.s32.totalorder %s195, %s198
      %p207 = scmp.eq.s32.totalorder %s23, 7
      %p208 = por %p206, %p207
      %p209 = scmp.ne.s32.totalorder %s198, %s199
      %p210 = scmp.eq.s32.totalorder %s23, 0
      %p211 = por %p209, %p210
      %p212 = scmp.ne.s32.totalorder %s198, %s199
      %p213 = scmp.eq.s32.totalorder %s24, 7
      %p214 = por %p212, %p213
      %p216 = scmp.ne.s32.totalorder %s199, %s215
      %p217 = scmp.eq.s32.totalorder %s24, 0
      %p218 = por %p216, %p217
      %s219 = ssub.s32 %s18, %s25
      %p220 = scmp.eq.s32.totalorder %s219, 0
      %s222 = sadd.s32 %s221, 1
      %s223 = scalar_select %p220, %s221, %s222
      %p226 = pneg %p220
      %p227 = scmp.eq.s32.totalorder %s18, 7
      %p228 = por %p226, %p227
      %p229 = scmp.ne.s32.totalorder %s221, %s224
      %p230 = scmp.eq.s32.totalorder %s18, 0
      %p231 = por %p229, %p230
      %p232 = scmp.ne.s32.totalorder %s221, %s224
      %p233 = scmp.eq.s32.totalorder %s23, 7
      %p234 = por %p232, %p233
      %p235 = scmp.ne.s32.totalorder %s224, %s225
      %p236 = scmp.eq.s32.totalorder %s23, 0
      %p237 = por %p235, %p236
      %p238 = scmp.ne.s32.totalorder %s224, %s225
      %p239 = scmp.eq.s32.totalorder %s24, 7
      %p240 = por %p238, %p239
      %p242 = scmp.ne.s32.totalorder %s225, %s241
      %p243 = scmp.eq.s32.totalorder %s24, 0
      %p244 = por %p242, %p243
      %p245 = scmp.le.s32.totalorder 1, %s18
      %p246 = scmp.lt.s32.totalorder %s18, 9
      %p247 = pnand %p245, %p246
      %p248 = pneg %p247
      // Predicated region
      $region9: #{tpu_custom_call.1} parent=5 // pred_check
        _
      $region10: #{tpu_custom_call.1} parent=5 // pred_check_branch
        %250 = sbr.rel (%p247) target = $region12
      $region11: #{tpu_custom_call.1} parent=5 // pred_region
        %s251 = ssub.s32 %s18, 1
        // Predicated region
        $region13: #{tpu_custom_call.1} parent=11 // pred_check
          %p252 = pneg %p143
        $region14: #{tpu_custom_call.1} parent=11 // pred_check_branch
          %254 = sbr.rel (%p252) target = $region16
        $region15: #{tpu_custom_call.1} parent=11 // pred_region
          _
        $region16: #{tpu_custom_call.1} parent=11 // pred_fallthru
          _
        // Predicated region
        $region17: #{tpu_custom_call.1} parent=11 // pred_check
          %p255 = pneg %p164
        $region18: #{tpu_custom_call.1} parent=11 // pred_check_branch
          %257 = sbr.rel (%p255) target = $region20
        $region19: #{tpu_custom_call.1} parent=11 // pred_region
          _
        $region20: #{tpu_custom_call.1} parent=11 // pred_fallthru
          _
        // Predicated region
        $region21: #{tpu_custom_call.1} parent=11 // pred_check
          %p258 = pneg %p185
        $region22: #{tpu_custom_call.1} parent=11 // pred_check_branch
          %260 = sbr.rel (%p258) target = $region24
        $region23: #{tpu_custom_call.1} parent=11 // pred_region
          _
        $region24: #{tpu_custom_call.1} parent=11 // pred_fallthru
          _
      $region12: #{tpu_custom_call.1} parent=5 // pred_fallthru
        _
      %p261 = scmp.lt.s32.totalorder %s18, 8
      // Predicated region
      $region25: #{tpu_custom_call.1} parent=5 // pred_check
        %p262 = pneg %p261
      $region26: #{tpu_custom_call.1} parent=5 // pred_check_branch
        %264 = sbr.rel (%p262) target = $region28
      $region27: #{tpu_custom_call.1} parent=5 // pred_region
        // Predicated region
        $region29: #{tpu_custom_call.1} parent=27 // pred_check
          %p265 = pneg %p38
        $region30: #{tpu_custom_call.1} parent=27 // pred_check_branch
          %267 = sbr.rel (%p265) target = $region32
        $region31: #{tpu_custom_call.1} parent=27 // pred_region
          %s268 = smul.u32 4, %s18
          %p269 = scmp.lt.s32.totalorder %s268, 31
          %s270 = scalar_select %p269, %s268, 31
          %s271 = smul.addr %s270, 8
          %s272 = scalar_lea.vmem %s0, %s271
          %s273 = smul.u32 4, %s18
        $region32: #{tpu_custom_call.1} parent=27 // pred_fallthru
          _
        // Predicated region
        $region33: #{tpu_custom_call.1} parent=27 // pred_check
          %p274 = pneg %p64
        $region34: #{tpu_custom_call.1} parent=27 // pred_check_branch
          %276 = sbr.rel (%p274) target = $region36
        $region35: #{tpu_custom_call.1} parent=27 // pred_region
          %s277 = smul.u32 4, %s18
          %p278 = scmp.lt.s32.totalorder %s277, 31
          %s279 = scalar_select %p278, %s277, 31
          %s280 = smul.addr %s279, 8
          %s281 = scalar_lea.vmem %s1, %s280
          %s282 = smul.u32 4, %s18
        $region36: #{tpu_custom_call.1} parent=27 // pred_fallthru
          _
        // Predicated region
        $region37: #{tpu_custom_call.1} parent=27 // pred_check
          %p283 = pneg %p90
        $region38: #{tpu_custom_call.1} parent=27 // pred_check_branch
          %285 = sbr.rel (%p283) target = $region40
        $region39: #{tpu_custom_call.1} parent=27 // pred_region
          %s286 = smul.u32 32, %s18
          %p287 = scmp.lt.s32.totalorder %s286, 255
          %s288 = scalar_select %p287, %s286, 255
          %s289 = smul.addr %s288, 8
          %s290 = scalar_lea.vmem %s2, %s289
          %s291 = smul.u32 32, %s18
        $region40: #{tpu_custom_call.1} parent=27 // pred_fallthru
          _
        // Predicated region
        $region41: #{tpu_custom_call.1} parent=27 // pred_check
          %p292 = pneg %p116
        $region42: #{tpu_custom_call.1} parent=27 // pred_check_branch
          %294 = sbr.rel (%p292) target = $region44
        $region43: #{tpu_custom_call.1} parent=27 // pred_region
          %s295 = smul.u32 32, %s18
          %p296 = scmp.lt.s32.totalorder %s295, 255
          %s297 = scalar_select %p296, %s295, 255
          %s298 = smul.addr %s297, 8
          %s299 = scalar_lea.vmem %s3, %s298
          %s300 = smul.u32 32, %s18
        $region44: #{tpu_custom_call.1} parent=27 // pred_fallthru
          _
      $region28: #{tpu_custom_call.1} parent=5 // pred_fallthru
        _
      %p301 = scmp.le.s32.totalorder 1, %s18
      %p302 = scmp.lt.s32.totalorder %s18, 9
      %p303 = pnand %p301, %p302
      %p304 = pneg %p303
      // Predicated region
      $region45: #{tpu_custom_call.1} parent=5 // pred_check
        _
      $region46: #{tpu_custom_call.1} parent=5 // pred_check_branch
        %306 = sbr.rel (%p303) target = $region48
      $region47: #{tpu_custom_call.1} parent=5 // pred_region
        %s307 = ssub.s32 %s18, 1
        %s308 = smul.u32 4, %s23
        %p309 = scmp.lt.s32.totalorder %s308, 31
        %s310 = scalar_select %p309, %s308, 31
        %s311 = smul.addr %s310, 8
        %s312 = scalar_lea.vmem %s0, %s311
        %p313 = pneg %p44
        %p314 = pneg %p41
        %s315 = smul.u32 4, %s23
        %p316 = scmp.lt.s32.totalorder %s315, 31
        %s317 = scalar_select %p316, %s315, 31
        %s318 = smul.addr %s317, 8
        %s319 = scalar_lea.vmem %s1, %s318
        %p320 = pneg %p70
        %p321 = pneg %p67
        %s322 = smul.u32 32, %s23
        %p323 = scmp.lt.s32.totalorder %s322, 255
        %s324 = scalar_select %p323, %s322, 255
        %s325 = smul.addr %s324, 8
        %s326 = scalar_lea.vmem %s2, %s325
        %p327 = pneg %p96
        %p328 = pneg %p93
        %s329 = smul.u32 32, %s23
        %p330 = scmp.lt.s32.totalorder %s329, 255
        %s331 = scalar_select %p330, %s329, 255
        %s332 = smul.addr %s331, 8
        %s333 = scalar_lea.vmem %s3, %s332
        %p334 = pneg %p122
        %p335 = pneg %p119
        %p336 = pneg %p143
        %p337 = pneg %p140
        %p338 = pneg %p164
        %p339 = pneg %p161
        %p340 = pneg %p185
        %p341 = pneg %p182
        %p342 = pneg %p211
        %p343 = pneg %p208
        %s344 = sand.u32 %s198, 1
        %s345 = scalar_lea.sflag [#allocation3], %s344
        %s346 = sand.u32 %s198, 1
        %s347 = smul.addr %s346, 32
        %s348 = scalar_lea.vmem [#allocation2], %s347
        %p349 = pneg %p237
        %p350 = pneg %p234
        %s351 = smul.u32 4, %s23
        %p352 = scmp.lt.s32.totalorder %s351, 31
        %s353 = scalar_select %p352, %s351, 31
        %s354 = smul.addr %s353, 8
        %s355 = scalar_lea.vmem %s8, %s354
        %s356 = smul.u32 4, %s23
        %p357 = scmp.lt.s32.totalorder %s356, 31
        %s358 = scalar_select %p357, %s356, 31
        %s359 = smul.addr %s358, 8
        %s360 = scalar_lea.vmem %s0, %s359
        %s361 = smul.u32 4, %s23
        %s362 = smul.u32 4, %s23
        %p363 = scmp.lt.s32.totalorder %s362, 31
        %s364 = scalar_select %p363, %s362, 31
        %s365 = smul.addr %s364, 8
        %s366 = scalar_lea.vmem %s1, %s365
        %s367 = smul.u32 4, %s23
        %s368 = smul.u32 32, %s23
        %p369 = scmp.lt.s32.totalorder %s368, 255
        %s370 = scalar_select %p369, %s368, 255
        %s371 = smul.addr %s370, 8
        %s372 = scalar_lea.vmem %s2, %s371
        %s373 = smul.u32 32, %s23
        %s374 = smul.u32 32, %s23
        %p375 = scmp.lt.s32.totalorder %s374, 255
        %s376 = scalar_select %p375, %s374, 255
        %s377 = smul.addr %s376, 8
        %s378 = scalar_lea.vmem %s3, %s377
        %s379 = smul.u32 32, %s23
        %s380 = smul.u32 4, %s23
        %s381 = smul.u32 4, %s23
        %p382 = scmp.lt.s32.totalorder %s381, 31
        %s383 = scalar_select %p382, %s381, 31
        %s384 = smul.addr %s383, 8
        %s385 = scalar_lea.vmem %s8, %s384
        %s386 = smul.u32 4, %s23
        %v388 = vld [vmem:[%s5] sm:$0xf]
        %v389 = vld [vmem:[%s5 + $0x4] sm:$0xf]
        %v390 = vld [vmem:[%s5 + $0x8] sm:$0xf]
        %v391 = vld [vmem:[%s5 + $0xc] sm:$0xf]
        %v392 = vld [vmem:[%s5 + $0x10] sm:$0xf]
        %v393 = vld [vmem:[%s5 + $0x14] sm:$0xf]
        %v394 = vld [vmem:[%s5 + $0x18] sm:$0xf]
        %v395 = vld [vmem:[%s5 + $0x1c] sm:$0xf]
        %v396 = vld [vmem:[%s5 + $0x20] sm:$0xf]
        %v397 = vld [vmem:[%s5 + $0x24] sm:$0xf]
        %v398 = vld [vmem:[%s5 + $0x28] sm:$0xf]
        %v399 = vld [vmem:[%s5 + $0x2c] sm:$0xf]
        %v400 = vld [vmem:[%s5 + $0x30] sm:$0xf]
        %v401 = vld [vmem:[%s5 + $0x34] sm:$0xf]
        %v402 = vld [vmem:[%s5 + $0x38] sm:$0xf]
        %v403 = vld [vmem:[%s5 + $0x3c] sm:$0xf]
        %v404 = vld [vmem:[%s5 + $0x40] sm:$0xf]
        %v405 = vld [vmem:[%s5 + $0x44] sm:$0xf]
        %v406 = vld [vmem:[%s5 + $0x48] sm:$0xf]
        %v407 = vld [vmem:[%s5 + $0x4c] sm:$0xf]
        %v408 = vld [vmem:[%s5 + $0x50] sm:$0xf]
        %v409 = vld [vmem:[%s5 + $0x54] sm:$0xf]
        %v410 = vld [vmem:[%s5 + $0x58] sm:$0xf]
        %v411 = vld [vmem:[%s5 + $0x5c] sm:$0xf]
        %v412 = vld [vmem:[%s5 + $0x60] sm:$0xf]
        %v413 = vld [vmem:[%s5 + $0x64] sm:$0xf]
        %v414 = vld [vmem:[%s5 + $0x68] sm:$0xf]
        %v415 = vld [vmem:[%s5 + $0x6c] sm:$0xf]
        %v416 = vld [vmem:[%s5 + $0x70] sm:$0xf]
        %v417 = vld [vmem:[%s5 + $0x74] sm:$0xf]
        %v418 = vld [vmem:[%s5 + $0x78] sm:$0xf]
        %v419 = vld [vmem:[%s5 + $0x7c] sm:$0xf]
        %v420 = vld [vmem:[%s5 + $0x80] sm:$0xf]
        %v421 = vld [vmem:[%s5 + $0x84] sm:$0xf]
        %v422 = vld [vmem:[%s5 + $0x88] sm:$0xf]
        %v423 = vld [vmem:[%s5 + $0x8c] sm:$0xf]
        %v424 = vld [vmem:[%s5 + $0x90] sm:$0xf]
        %v425 = vld [vmem:[%s5 + $0x94] sm:$0xf]
        %v426 = vld [vmem:[%s5 + $0x98] sm:$0xf]
        %v427 = vld [vmem:[%s5 + $0x9c] sm:$0xf]
        %v428 = vld [vmem:[%s5 + $0xa0] sm:$0xf]
        %v429 = vld [vmem:[%s5 + $0xa4] sm:$0xf]
        %v430 = vld [vmem:[%s5 + $0xa8] sm:$0xf]
        %v431 = vld [vmem:[%s5 + $0xac] sm:$0xf]
        %v432 = vld [vmem:[%s5 + $0xb0] sm:$0xf]
        %v433 = vld [vmem:[%s5 + $0xb4] sm:$0xf]
        %v434 = vld [vmem:[%s5 + $0xb8] sm:$0xf]
        %v435 = vld [vmem:[%s5 + $0xbc] sm:$0xf]
        %v436 = vld [vmem:[%s5 + $0xc0] sm:$0xf]
        %v437 = vld [vmem:[%s5 + $0xc4] sm:$0xf]
        %v438 = vld [vmem:[%s5 + $0xc8] sm:$0xf]
        %v439 = vld [vmem:[%s5 + $0xcc] sm:$0xf]
        %v440 = vld [vmem:[%s5 + $0xd0] sm:$0xf]
        %v441 = vld [vmem:[%s5 + $0xd4] sm:$0xf]
        %v442 = vld [vmem:[%s5 + $0xd8] sm:$0xf]
        %v443 = vld [vmem:[%s5 + $0xdc] sm:$0xf]
        %v444 = vld [vmem:[%s5 + $0xe0] sm:$0xf]
        %v445 = vld [vmem:[%s5 + $0xe4] sm:$0xf]
        %v446 = vld [vmem:[%s5 + $0xe8] sm:$0xf]
        %v447 = vld [vmem:[%s5 + $0xec] sm:$0xf]
        %v448 = vld [vmem:[%s5 + $0xf0] sm:$0xf]
        %v449 = vld [vmem:[%s5 + $0xf4] sm:$0xf]
        %v450 = vld [vmem:[%s5 + $0xf8] sm:$0xf]
        %v451 = vld [vmem:[%s5 + $0xfc] sm:$0xf]
        %v452 = vld [vmem:[%s5 + $0x100] sm:$0xf]
        %v453 = vld [vmem:[%s5 + $0x104] sm:$0xf]
        %v454 = vld [vmem:[%s5 + $0x108] sm:$0xf]
        %v455 = vld [vmem:[%s5 + $0x10c] sm:$0xf]
        %v456 = vld [vmem:[%s5 + $0x110] sm:$0xf]
        %v457 = vld [vmem:[%s5 + $0x114] sm:$0xf]
        %v458 = vld [vmem:[%s5 + $0x118] sm:$0xf]
        %v459 = vld [vmem:[%s5 + $0x11c] sm:$0xf]
        %v460 = vld [vmem:[%s5 + $0x120] sm:$0xf]
        %v461 = vld [vmem:[%s5 + $0x124] sm:$0xf]
        %v462 = vld [vmem:[%s5 + $0x128] sm:$0xf]
        %v463 = vld [vmem:[%s5 + $0x12c] sm:$0xf]
        %v464 = vld [vmem:[%s5 + $0x130] sm:$0xf]
        %v465 = vld [vmem:[%s5 + $0x134] sm:$0xf]
        %v466 = vld [vmem:[%s5 + $0x138] sm:$0xf]
        %v467 = vld [vmem:[%s5 + $0x13c] sm:$0xf]
        %v468 = vld [vmem:[%s5 + $0x140] sm:$0xf]
        %v469 = vld [vmem:[%s5 + $0x144] sm:$0xf]
        %v470 = vld [vmem:[%s5 + $0x148] sm:$0xf]
        %v471 = vld [vmem:[%s5 + $0x14c] sm:$0xf]
        %v472 = vld [vmem:[%s5 + $0x150] sm:$0xf]
        %v473 = vld [vmem:[%s5 + $0x154] sm:$0xf]
        %v474 = vld [vmem:[%s5 + $0x158] sm:$0xf]
        %v475 = vld [vmem:[%s5 + $0x15c] sm:$0xf]
        %v476 = vld [vmem:[%s5 + $0x160] sm:$0xf]
        %v477 = vld [vmem:[%s5 + $0x164] sm:$0xf]
        %v478 = vld [vmem:[%s5 + $0x168] sm:$0xf]
        %v479 = vld [vmem:[%s5 + $0x16c] sm:$0xf]
        %v480 = vld [vmem:[%s5 + $0x170] sm:$0xf]
        %v481 = vld [vmem:[%s5 + $0x174] sm:$0xf]
        %v482 = vld [vmem:[%s5 + $0x178] sm:$0xf]
        %v483 = vld [vmem:[%s5 + $0x17c] sm:$0xf]
        %v484 = vld [vmem:[%s6] sm:$0xff]
        %v485 = vld [vmem:[%s360] sm:$0xff]
        %v486 = vld [vmem:[%s360 + $0x8] sm:$0xff]
        %v487 = vld [vmem:[%s360 + $0x10] sm:$0xff]
        %v488 = vld [vmem:[%s360 + $0x18] sm:$0xff]
        %v489 = vld [vmem:[%s366] sm:$0xff]
        %v490 = vld [vmem:[%s366 + $0x8] sm:$0xff]
        %v491 = vld [vmem:[%s366 + $0x10] sm:$0xff]
        %v492 = vld [vmem:[%s366 + $0x18] sm:$0xff]
        %v493 = vld [vmem:[%s372] sm:$0xff]
        %v494 = vld [vmem:[%s372 + $0x8] sm:$0xff]
        %v495 = vld [vmem:[%s372 + $0x10] sm:$0xff]
        %v496 = vld [vmem:[%s372 + $0x18] sm:$0xff]
        %v497 = vld [vmem:[%s372 + $0x20] sm:$0xff]
        %v498 = vld [vmem:[%s372 + $0x28] sm:$0xff]
        %v499 = vld [vmem:[%s372 + $0x30] sm:$0xff]
        %v500 = vld [vmem:[%s372 + $0x38] sm:$0xff]
        %v501 = vld [vmem:[%s372 + $0x40] sm:$0xff]
        %v502 = vld [vmem:[%s372 + $0x48] sm:$0xff]
        %v503 = vld [vmem:[%s372 + $0x50] sm:$0xff]
        %v504 = vld [vmem:[%s372 + $0x58] sm:$0xff]
        %v505 = vld [vmem:[%s372 + $0x60] sm:$0xff]
        %v506 = vld [vmem:[%s372 + $0x68] sm:$0xff]
        %v507 = vld [vmem:[%s372 + $0x70] sm:$0xff]
        %v508 = vld [vmem:[%s372 + $0x78] sm:$0xff]
        %v509 = vld [vmem:[%s372 + $0x80] sm:$0xff]
        %v510 = vld [vmem:[%s372 + $0x88] sm:$0xff]
        %v511 = vld [vmem:[%s372 + $0x90] sm:$0xff]
        %v512 = vld [vmem:[%s372 + $0x98] sm:$0xff]
        %v513 = vld [vmem:[%s372 + $0xa0] sm:$0xff]
        %v514 = vld [vmem:[%s372 + $0xa8] sm:$0xff]
        %v515 = vld [vmem:[%s372 + $0xb0] sm:$0xff]
        %v516 = vld [vmem:[%s372 + $0xb8] sm:$0xff]
        %v517 = vld [vmem:[%s372 + $0xc0] sm:$0xff]
        %v518 = vld [vmem:[%s372 + $0xc8] sm:$0xff]
        %v519 = vld [vmem:[%s372 + $0xd0] sm:$0xff]
        %v520 = vld [vmem:[%s372 + $0xd8] sm:$0xff]
        %v521 = vld [vmem:[%s372 + $0xe0] sm:$0xff]
        %v522 = vld [vmem:[%s372 + $0xe8] sm:$0xff]
        %v523 = vld [vmem:[%s372 + $0xf0] sm:$0xff]
        %v524 = vld [vmem:[%s372 + $0xf8] sm:$0xff]
        %v525 = vld [vmem:[%s378] sm:$0xff]
        %v526 = vld [vmem:[%s378 + $0x8] sm:$0xff]
        %v527 = vld [vmem:[%s378 + $0x10] sm:$0xff]
        %v528 = vld [vmem:[%s378 + $0x18] sm:$0xff]
        %v529 = vld [vmem:[%s378 + $0x20] sm:$0xff]
        %v530 = vld [vmem:[%s378 + $0x28] sm:$0xff]
        %v531 = vld [vmem:[%s378 + $0x30] sm:$0xff]
        %v532 = vld [vmem:[%s378 + $0x38] sm:$0xff]
        %v533 = vld [vmem:[%s378 + $0x40] sm:$0xff]
        %v534 = vld [vmem:[%s378 + $0x48] sm:$0xff]
        %v535 = vld [vmem:[%s378 + $0x50] sm:$0xff]
        %v536 = vld [vmem:[%s378 + $0x58] sm:$0xff]
        %v537 = vld [vmem:[%s378 + $0x60] sm:$0xff]
        %v538 = vld [vmem:[%s378 + $0x68] sm:$0xff]
        %v539 = vld [vmem:[%s378 + $0x70] sm:$0xff]
        %v540 = vld [vmem:[%s378 + $0x78] sm:$0xff]
        %v541 = vld [vmem:[%s378 + $0x80] sm:$0xff]
        %v542 = vld [vmem:[%s378 + $0x88] sm:$0xff]
        %v543 = vld [vmem:[%s378 + $0x90] sm:$0xff]
        %v544 = vld [vmem:[%s378 + $0x98] sm:$0xff]
        %v545 = vld [vmem:[%s378 + $0xa0] sm:$0xff]
        %v546 = vld [vmem:[%s378 + $0xa8] sm:$0xff]
        %v547 = vld [vmem:[%s378 + $0xb0] sm:$0xff]
        %v548 = vld [vmem:[%s378 + $0xb8] sm:$0xff]
        %v549 = vld [vmem:[%s378 + $0xc0] sm:$0xff]
        %v550 = vld [vmem:[%s378 + $0xc8] sm:$0xff]
        %v551 = vld [vmem:[%s378 + $0xd0] sm:$0xff]
        %v552 = vld [vmem:[%s378 + $0xd8] sm:$0xff]
        %v553 = vld [vmem:[%s378 + $0xe0] sm:$0xff]
        %v554 = vld [vmem:[%s378 + $0xe8] sm:$0xff]
        %v555 = vld [vmem:[%s378 + $0xf0] sm:$0xff]
        %v556 = vld [vmem:[%s378 + $0xf8] sm:$0xff]
        %v557 = vlaneseq
        %v558 = vand.u32 %v557, 127
        %v559 = vadd.s32 %v558, 128
        %560 = vset.pattern.permute.xlu0 0
        %561 = vperm.xlu0 %560, %v525
        %v562 = vpop.permute.xlu0 %561
        %563 = vset.pattern.permute.xlu0 0
        %564 = vperm.xlu0 %563, %v526
        %v565 = vpop.permute.xlu0 %564
        %566 = vset.pattern.permute.xlu0 0
        %567 = vperm.xlu0 %566, %v527
        %v568 = vpop.permute.xlu0 %567
        %569 = vset.pattern.permute.xlu0 0
        %570 = vperm.xlu0 %569, %v528
        %v571 = vpop.permute.xlu0 %570
        %572 = vset.pattern.permute.xlu0 0
        %573 = vperm.xlu0 %572, %v529
        %v574 = vpop.permute.xlu0 %573
        %575 = vset.pattern.permute.xlu0 0
        %576 = vperm.xlu0 %575, %v530
        %v577 = vpop.permute.xlu0 %576
        %578 = vset.pattern.permute.xlu0 0
        %579 = vperm.xlu0 %578, %v531
        %v580 = vpop.permute.xlu0 %579
        %581 = vset.pattern.permute.xlu0 0
        %582 = vperm.xlu0 %581, %v532
        %v583 = vpop.permute.xlu0 %582
        %584 = vset.pattern.permute.xlu0 0
        %585 = vperm.xlu0 %584, %v533
        %v586 = vpop.permute.xlu0 %585
        %587 = vset.pattern.permute.xlu0 0
        %588 = vperm.xlu0 %587, %v534
        %v589 = vpop.permute.xlu0 %588
        %590 = vset.pattern.permute.xlu0 0
        %591 = vperm.xlu0 %590, %v535
        %v592 = vpop.permute.xlu0 %591
        %593 = vset.pattern.permute.xlu0 0
        %594 = vperm.xlu0 %593, %v536
        %v595 = vpop.permute.xlu0 %594
        %596 = vset.pattern.permute.xlu0 0
        %597 = vperm.xlu0 %596, %v537
        %v598 = vpop.permute.xlu0 %597
        %599 = vset.pattern.permute.xlu0 0
        %600 = vperm.xlu0 %599, %v538
        %v601 = vpop.permute.xlu0 %600
        %602 = vset.pattern.permute.xlu0 0
        %603 = vperm.xlu0 %602, %v539
        %v604 = vpop.permute.xlu0 %603
        %605 = vset.pattern.permute.xlu0 0
        %606 = vperm.xlu0 %605, %v540
        %v607 = vpop.permute.xlu0 %606
        %608 = vset.pattern.permute.xlu0 0
        %609 = vperm.xlu0 %608, %v541
        %v610 = vpop.permute.xlu0 %609
        %611 = vset.pattern.permute.xlu0 0
        %612 = vperm.xlu0 %611, %v542
        %v613 = vpop.permute.xlu0 %612
        %614 = vset.pattern.permute.xlu0 0
        %615 = vperm.xlu0 %614, %v543
        %v616 = vpop.permute.xlu0 %615
        %617 = vset.pattern.permute.xlu0 0
        %618 = vperm.xlu0 %617, %v544
        %v619 = vpop.permute.xlu0 %618
        %620 = vset.pattern.permute.xlu0 0
        %621 = vperm.xlu0 %620, %v545
        %v622 = vpop.permute.xlu0 %621
        %623 = vset.pattern.permute.xlu0 0
        %624 = vperm.xlu0 %623, %v546
        %v625 = vpop.permute.xlu0 %624
        %626 = vset.pattern.permute.xlu0 0
        %627 = vperm.xlu0 %626, %v547
        %v628 = vpop.permute.xlu0 %627
        %629 = vset.pattern.permute.xlu0 0
        %630 = vperm.xlu0 %629, %v548
        %v631 = vpop.permute.xlu0 %630
        %632 = vset.pattern.permute.xlu0 0
        %633 = vperm.xlu0 %632, %v549
        %v634 = vpop.permute.xlu0 %633
        %635 = vset.pattern.permute.xlu0 0
        %636 = vperm.xlu0 %635, %v550
        %v637 = vpop.permute.xlu0 %636
        %638 = vset.pattern.permute.xlu0 0
        %639 = vperm.xlu0 %638, %v551
        %v640 = vpop.permute.xlu0 %639
        %641 = vset.pattern.permute.xlu0 0
        %642 = vperm.xlu0 %641, %v552
        %v643 = vpop.permute.xlu0 %642
        %644 = vset.pattern.permute.xlu0 0
        %645 = vperm.xlu0 %644, %v553
        %v646 = vpop.permute.xlu0 %645
        %647 = vset.pattern.permute.xlu0 0
        %648 = vperm.xlu0 %647, %v554
        %v649 = vpop.permute.xlu0 %648
        %650 = vset.pattern.permute.xlu0 0
        %651 = vperm.xlu0 %650, %v555
        %v652 = vpop.permute.xlu0 %651
        %653 = vset.pattern.permute.xlu0 0
        %654 = vperm.xlu0 %653, %v556
        %v655 = vpop.permute.xlu0 %654
        %vm656 = vcmp.eq.s32.totalorder %v558, %v562
        %vm657 = vcmp.eq.s32.totalorder %v559, %v562
        %vm658 = vcmp.eq.s32.totalorder %v558, %v565
        %vm659 = vcmp.eq.s32.totalorder %v559, %v565
        %vm660 = vcmp.eq.s32.totalorder %v558, %v568
        %vm661 = vcmp.eq.s32.totalorder %v559, %v568
        %vm662 = vcmp.eq.s32.totalorder %v558, %v571
        %vm663 = vcmp.eq.s32.totalorder %v559, %v571
        %vm664 = vcmp.eq.s32.totalorder %v558, %v574
        %vm665 = vcmp.eq.s32.totalorder %v559, %v574
        %vm666 = vcmp.eq.s32.totalorder %v558, %v577
        %vm667 = vcmp.eq.s32.totalorder %v559, %v577
        %vm668 = vcmp.eq.s32.totalorder %v558, %v580
        %vm669 = vcmp.eq.s32.totalorder %v559, %v580
        %vm670 = vcmp.eq.s32.totalorder %v558, %v583
        %vm671 = vcmp.eq.s32.totalorder %v559, %v583
        %vm672 = vcmp.eq.s32.totalorder %v558, %v586
        %vm673 = vcmp.eq.s32.totalorder %v559, %v586
        %vm674 = vcmp.eq.s32.totalorder %v558, %v589
        %vm675 = vcmp.eq.s32.totalorder %v559, %v589
        %vm676 = vcmp.eq.s32.totalorder %v558, %v592
        %vm677 = vcmp.eq.s32.totalorder %v559, %v592
        %vm678 = vcmp.eq.s32.totalorder %v558, %v595
        %vm679 = vcmp.eq.s32.totalorder %v559, %v595
        %vm680 = vcmp.eq.s32.totalorder %v558, %v598
        %vm681 = vcmp.eq.s32.totalorder %v559, %v598
        %vm682 = vcmp.eq.s32.totalorder %v558, %v601
        %vm683 = vcmp.eq.s32.totalorder %v559, %v601
        %vm684 = vcmp.eq.s32.totalorder %v558, %v604
        %vm685 = vcmp.eq.s32.totalorder %v559, %v604
        %vm686 = vcmp.eq.s32.totalorder %v558, %v607
        %vm687 = vcmp.eq.s32.totalorder %v559, %v607
        %vm688 = vcmp.eq.s32.totalorder %v558, %v610
        %vm689 = vcmp.eq.s32.totalorder %v559, %v610
        %vm690 = vcmp.eq.s32.totalorder %v558, %v613
        %vm691 = vcmp.eq.s32.totalorder %v559, %v613
        %vm692 = vcmp.eq.s32.totalorder %v558, %v616
        %vm693 = vcmp.eq.s32.totalorder %v559, %v616
        %vm694 = vcmp.eq.s32.totalorder %v558, %v619
        %vm695 = vcmp.eq.s32.totalorder %v559, %v619
        %vm696 = vcmp.eq.s32.totalorder %v558, %v622
        %vm697 = vcmp.eq.s32.totalorder %v559, %v622
        %vm698 = vcmp.eq.s32.totalorder %v558, %v625
        %vm699 = vcmp.eq.s32.totalorder %v559, %v625
        %vm700 = vcmp.eq.s32.totalorder %v558, %v628
        %vm701 = vcmp.eq.s32.totalorder %v559, %v628
        %vm702 = vcmp.eq.s32.totalorder %v558, %v631
        %vm703 = vcmp.eq.s32.totalorder %v559, %v631
        %vm704 = vcmp.eq.s32.totalorder %v558, %v634
        %vm705 = vcmp.eq.s32.totalorder %v559, %v634
        %vm706 = vcmp.eq.s32.totalorder %v558, %v637
        %vm707 = vcmp.eq.s32.totalorder %v559, %v637
        %vm708 = vcmp.eq.s32.totalorder %v558, %v640
        %vm709 = vcmp.eq.s32.totalorder %v559, %v640
        %vm710 = vcmp.eq.s32.totalorder %v558, %v643
        %vm711 = vcmp.eq.s32.totalorder %v559, %v643
        %vm712 = vcmp.eq.s32.totalorder %v558, %v646
        %vm713 = vcmp.eq.s32.totalorder %v559, %v646
        %vm714 = vcmp.eq.s32.totalorder %v558, %v649
        %vm715 = vcmp.eq.s32.totalorder %v559, %v649
        %vm716 = vcmp.eq.s32.totalorder %v558, %v652
        %vm717 = vcmp.eq.s32.totalorder %v559, %v652
        %vm718 = vcmp.eq.s32.totalorder %v558, %v655
        %vm719 = vcmp.eq.s32.totalorder %v559, %v655
        %v720 = vsel %vm656, 1.0, 0.0
        %v721 = vsel %vm657, 1.0, 0.0
        %v722 = vsel %vm658, 1.0, 0.0
        %v723 = vsel %vm659, 1.0, 0.0
        %v724 = vsel %vm660, 1.0, 0.0
        %v725 = vsel %vm661, 1.0, 0.0
        %v726 = vsel %vm662, 1.0, 0.0
        %v727 = vsel %vm663, 1.0, 0.0
        %v728 = vsel %vm664, 1.0, 0.0
        %v729 = vsel %vm665, 1.0, 0.0
        %v730 = vsel %vm666, 1.0, 0.0
        %v731 = vsel %vm667, 1.0, 0.0
        %v732 = vsel %vm668, 1.0, 0.0
        %v733 = vsel %vm669, 1.0, 0.0
        %v734 = vsel %vm670, 1.0, 0.0
        %v735 = vsel %vm671, 1.0, 0.0
        %v736 = vsel %vm672, 1.0, 0.0
        %v737 = vsel %vm673, 1.0, 0.0
        %v738 = vsel %vm674, 1.0, 0.0
        %v739 = vsel %vm675, 1.0, 0.0
        %v740 = vsel %vm676, 1.0, 0.0
        %v741 = vsel %vm677, 1.0, 0.0
        %v742 = vsel %vm678, 1.0, 0.0
        %v743 = vsel %vm679, 1.0, 0.0
        %v744 = vsel %vm680, 1.0, 0.0
        %v745 = vsel %vm681, 1.0, 0.0
        %v746 = vsel %vm682, 1.0, 0.0
        %v747 = vsel %vm683, 1.0, 0.0
        %v748 = vsel %vm684, 1.0, 0.0
        %v749 = vsel %vm685, 1.0, 0.0
        %v750 = vsel %vm686, 1.0, 0.0
        %v751 = vsel %vm687, 1.0, 0.0
        %v752 = vsel %vm688, 1.0, 0.0
        %v753 = vsel %vm689, 1.0, 0.0
        %v754 = vsel %vm690, 1.0, 0.0
        %v755 = vsel %vm691, 1.0, 0.0
        %v756 = vsel %vm692, 1.0, 0.0
        %v757 = vsel %vm693, 1.0, 0.0
        %v758 = vsel %vm694, 1.0, 0.0
        %v759 = vsel %vm695, 1.0, 0.0
        %v760 = vsel %vm696, 1.0, 0.0
        %v761 = vsel %vm697, 1.0, 0.0
        %v762 = vsel %vm698, 1.0, 0.0
        %v763 = vsel %vm699, 1.0, 0.0
        %v764 = vsel %vm700, 1.0, 0.0
        %v765 = vsel %vm701, 1.0, 0.0
        %v766 = vsel %vm702, 1.0, 0.0
        %v767 = vsel %vm703, 1.0, 0.0
        %v768 = vsel %vm704, 1.0, 0.0
        %v769 = vsel %vm705, 1.0, 0.0
        %v770 = vsel %vm706, 1.0, 0.0
        %v771 = vsel %vm707, 1.0, 0.0
        %v772 = vsel %vm708, 1.0, 0.0
        %v773 = vsel %vm709, 1.0, 0.0
        %v774 = vsel %vm710, 1.0, 0.0
        %v775 = vsel %vm711, 1.0, 0.0
        %v776 = vsel %vm712, 1.0, 0.0
        %v777 = vsel %vm713, 1.0, 0.0
        %v778 = vsel %vm714, 1.0, 0.0
        %v779 = vsel %vm715, 1.0, 0.0
        %v780 = vsel %vm716, 1.0, 0.0
        %v781 = vsel %vm717, 1.0, 0.0
        %v782 = vsel %vm718, 1.0, 0.0
        %v783 = vsel %vm719, 1.0, 0.0
        %v784 = vpack.c.bf16 %v722, %v720
        %v785 = vpack.c.bf16 %v723, %v721
        %v786 = vpack.c.bf16 %v726, %v724
        %v787 = vpack.c.bf16 %v727, %v725
        %v788 = vpack.c.bf16 %v730, %v728
        %v789 = vpack.c.bf16 %v731, %v729
        %v790 = vpack.c.bf16 %v734, %v732
        %v791 = vpack.c.bf16 %v735, %v733
        %v792 = vpack.c.bf16 %v738, %v736
        %v793 = vpack.c.bf16 %v739, %v737
        %v794 = vpack.c.bf16 %v742, %v740
        %v795 = vpack.c.bf16 %v743, %v741
        %v796 = vpack.c.bf16 %v746, %v744
        %v797 = vpack.c.bf16 %v747, %v745
        %v798 = vpack.c.bf16 %v750, %v748
        %v799 = vpack.c.bf16 %v751, %v749
        %v800 = vpack.c.bf16 %v754, %v752
        %v801 = vpack.c.bf16 %v755, %v753
        %v802 = vpack.c.bf16 %v758, %v756
        %v803 = vpack.c.bf16 %v759, %v757
        %v804 = vpack.c.bf16 %v762, %v760
        %v805 = vpack.c.bf16 %v763, %v761
        %v806 = vpack.c.bf16 %v766, %v764
        %v807 = vpack.c.bf16 %v767, %v765
        %v808 = vpack.c.bf16 %v770, %v768
        %v809 = vpack.c.bf16 %v771, %v769
        %v810 = vpack.c.bf16 %v774, %v772
        %v811 = vpack.c.bf16 %v775, %v773
        %v812 = vpack.c.bf16 %v778, %v776
        %v813 = vpack.c.bf16 %v779, %v777
        %v814 = vpack.c.bf16 %v782, %v780
        %v815 = vpack.c.bf16 %v783, %v781
        %v816 = vld [vmem:[%s4] sm:$0xf]
        %v817 = vld [vmem:[%s4 + $0x4] sm:$0xf]
        %v818 = vld [vmem:[%s4 + $0x8] sm:$0xf]
        %v819 = vld [vmem:[%s4 + $0xc] sm:$0xf]
        %v820 = vld [vmem:[%s4 + $0x10] sm:$0xf]
        %v821 = vld [vmem:[%s4 + $0x14] sm:$0xf]
        %v822 = vld [vmem:[%s4 + $0x18] sm:$0xf]
        %v823 = vld [vmem:[%s4 + $0x1c] sm:$0xf]
        %v824 = vld [vmem:[%s4 + $0x20] sm:$0xf]
        %v825 = vld [vmem:[%s4 + $0x24] sm:$0xf]
        %v826 = vld [vmem:[%s4 + $0x28] sm:$0xf]
        %v827 = vld [vmem:[%s4 + $0x2c] sm:$0xf]
        %v828 = vld [vmem:[%s4 + $0x30] sm:$0xf]
        %v829 = vld [vmem:[%s4 + $0x34] sm:$0xf]
        %v830 = vld [vmem:[%s4 + $0x38] sm:$0xf]
        %v831 = vld [vmem:[%s4 + $0x3c] sm:$0xf]
        %v832 = vld [vmem:[%s4 + $0x40] sm:$0xf]
        %v833 = vld [vmem:[%s4 + $0x44] sm:$0xf]
        %v834 = vld [vmem:[%s4 + $0x48] sm:$0xf]
        %v835 = vld [vmem:[%s4 + $0x4c] sm:$0xf]
        %v836 = vld [vmem:[%s4 + $0x50] sm:$0xf]
        %v837 = vld [vmem:[%s4 + $0x54] sm:$0xf]
        %v838 = vld [vmem:[%s4 + $0x58] sm:$0xf]
        %v839 = vld [vmem:[%s4 + $0x5c] sm:$0xf]
        %v840 = vld [vmem:[%s4 + $0x60] sm:$0xf]
        %v841 = vld [vmem:[%s4 + $0x64] sm:$0xf]
        %v842 = vld [vmem:[%s4 + $0x68] sm:$0xf]
        %v843 = vld [vmem:[%s4 + $0x6c] sm:$0xf]
        %v844 = vld [vmem:[%s4 + $0x70] sm:$0xf]
        %v845 = vld [vmem:[%s4 + $0x74] sm:$0xf]
        %v846 = vld [vmem:[%s4 + $0x78] sm:$0xf]
        %v847 = vld [vmem:[%s4 + $0x7c] sm:$0xf]
        %v880 = vunpack.c.l.b16 %v816
        %v881 = vunpack.c.l.b16 %v817
        %v882 = vunpack.c.l.b16 %v818
        %v883 = vunpack.c.l.b16 %v819
        %v884 = vunpack.c.l.b16 %v820
        %v885 = vunpack.c.l.b16 %v821
        %v886 = vunpack.c.l.b16 %v822
        %v887 = vunpack.c.l.b16 %v823
        %v888 = vunpack.c.l.b16 %v824
        %v889 = vunpack.c.l.b16 %v825
        %v890 = vunpack.c.l.b16 %v826
        %v891 = vunpack.c.l.b16 %v827
        %v892 = vunpack.c.l.b16 %v828
        %v893 = vunpack.c.l.b16 %v829
        %v894 = vunpack.c.l.b16 %v830
        %v895 = vunpack.c.l.b16 %v831
        %v896 = vunpack.c.l.b16 %v832
        %v897 = vunpack.c.l.b16 %v833
        %v898 = vunpack.c.l.b16 %v834
        %v899 = vunpack.c.l.b16 %v835
        %v900 = vunpack.c.l.b16 %v836
        %v901 = vunpack.c.l.b16 %v837
        %v902 = vunpack.c.l.b16 %v838
        %v903 = vunpack.c.l.b16 %v839
        %v904 = vunpack.c.l.b16 %v840
        %v905 = vunpack.c.l.b16 %v841
        %v906 = vunpack.c.l.b16 %v842
        %v907 = vunpack.c.l.b16 %v843
        %v908 = vunpack.c.l.b16 %v844
        %v909 = vunpack.c.l.b16 %v845
        %v910 = vunpack.c.l.b16 %v846
        %v911 = vunpack.c.l.b16 %v847
        %v912 = vpack.c.b16 %v881, %v880
        %v913 = vpack.c.b16 %v883, %v882
        %v914 = vpack.c.b16 %v885, %v884
        %v915 = vpack.c.b16 %v887, %v886
        %v916 = vpack.c.b16 %v889, %v888
        %v917 = vpack.c.b16 %v891, %v890
        %v918 = vpack.c.b16 %v893, %v892
        %v919 = vpack.c.b16 %v895, %v894
        %v920 = vpack.c.b16 %v897, %v896
        %v921 = vpack.c.b16 %v899, %v898
        %v922 = vpack.c.b16 %v901, %v900
        %v923 = vpack.c.b16 %v903, %v902
        %v924 = vpack.c.b16 %v905, %v904
        %v925 = vpack.c.b16 %v907, %v906
        %v926 = vpack.c.b16 %v909, %v908
        %v927 = vpack.c.b16 %v911, %v910
        %944 = vmatprep.subr.bf16.mxu0 0
        %945 = vmatpush1.bf16.msra.mxu0 %v912
        %946 = vmatprep.subr.bf16.mxu0 0
        %947 = vmatpush1.bf16.msra.mxu0 %v913
        %948 = vmatprep.subr.bf16.mxu0 0
        %949 = vmatpush1.bf16.msra.mxu0 %v914
        %950 = vmatprep.subr.bf16.mxu0 0
        %951 = vmatpush1.bf16.msra.mxu0 %v915
        %952 = vmatprep.subr.bf16.mxu0 0
        %953 = vmatpush1.bf16.msra.mxu0 %v916
        %954 = vmatprep.subr.bf16.mxu0 0
        %955 = vmatpush1.bf16.msra.mxu0 %v917
        %956 = vmatprep.subr.bf16.mxu0 0
        %957 = vmatpush1.bf16.msra.mxu0 %v918
        %958 = vmatprep.subr.bf16.mxu0 0
        %959 = vmatpush1.bf16.msra.mxu0 %v919
        %960 = vmatprep.subr.bf16.mxu0 0
        %961 = vmatpush1.bf16.msra.mxu0 %v920
        %962 = vmatprep.subr.bf16.mxu0 0
        %963 = vmatpush1.bf16.msra.mxu0 %v921
        %964 = vmatprep.subr.bf16.mxu0 0
        %965 = vmatpush1.bf16.msra.mxu0 %v922
        %966 = vmatprep.subr.bf16.mxu0 0
        %967 = vmatpush1.bf16.msra.mxu0 %v923
        %968 = vmatprep.subr.bf16.mxu0 0
        %969 = vmatpush1.bf16.msra.mxu0 %v924
        %970 = vmatprep.subr.bf16.mxu0 0
        %971 = vmatpush1.bf16.msra.mxu0 %v925
        %972 = vmatprep.subr.bf16.mxu0 0
        %973 = vmatpush1.bf16.msra.mxu0 %v926
        %974 = vmatprep.subr.bf16.mxu0 0
        %975 = vmatpush1.bf16.msra.mxu0 %v927
        %976 = vmatprep.mubr.bf16.mxu0 %v785
        %977 = vmatmul.mubr.bf16.gmra.mrb[0].mxu0 %v784
        %v978 = vpop.f32.mrb[0].mxu0
        %v979 = vadd.f32 0.0, %v978
        %v980 = vpop.f32.mrb[0].mxu0
        %v981 = vpop.f32.mrb[0].mxu0
        %v982 = vadd.f32 0.0, %v981
        %v983 = vpop.f32.mrb[0].mxu0
        %984 = vmatprep.mubr.bf16.mxu0 %v787
        %985 = vmatmul.mubr.bf16.gmra.mrb[0].mxu0 %v786
        %v986 = vpop.f32.mrb[0].mxu0
        %v987 = vadd.f32 0.0, %v986
        %v988 = vpop.f32.mrb[0].mxu0
        %v989 = vpop.f32.mrb[0].mxu0
        %v990 = vadd.f32 0.0, %v989
        %v991 = vpop.f32.mrb[0].mxu0
        %992 = vmatprep.mubr.bf16.mxu0 %v789
        %993 = vmatmul.mubr.bf16.gmra.mrb[0].mxu0 %v788
        %v994 = vpop.f32.mrb[0].mxu0
        %v995 = vadd.f32 0.0, %v994
        %v996 = vpop.f32.mrb[0].mxu0
        %v997 = vpop.f32.mrb[0].mxu0
        %v998 = vadd.f32 0.0, %v997
        %v999 = vpop.f32.mrb[0].mxu0
        %1000 = vmatprep.mubr.bf16.mxu0 %v791
        %1001 = vmatmul.mubr.bf16.gmra.mrb[0].mxu0 %v790
        %v1002 = vpop.f32.mrb[0].mxu0
        %v1003 = vadd.f32 0.0, %v1002
        %v1004 = vpop.f32.mrb[0].mxu0
        %v1005 = vpop.f32.mrb[0].mxu0
        %v1006 = vadd.f32 0.0, %v1005
        %v1007 = vpop.f32.mrb[0].mxu0
        %1008 = vmatprep.mubr.bf16.mxu0 %v793
        %1009 = vmatmul.mubr.bf16.gmra.mrb[0].mxu0 %v792
        %v1010 = vpop.f32.mrb[0].mxu0
        %v1011 = vadd.f32 0.0, %v1010
        %v1012 = vpop.f32.mrb[0].mxu0
        %v1013 = vpop.f32.mrb[0].mxu0
        %v1014 = vadd.f32 0.0, %v1013
        %v1015 = vpop.f32.mrb[0].mxu0
        %1016 = vmatprep.mubr.bf16.mxu0 %v795
        %1017 = vmatmul.mubr.bf16.gmra.mrb[0].mxu0 %v794
        %v1018 = vpop.f32.mrb[0].mxu0
        %v1019 = vadd.f32 0.0, %v1018
        %v1020 = vpop.f32.mrb[0].mxu0
        %v1021 = vpop.f32.mrb[0].mxu0
        %v1022 = vadd.f32 0.0, %v1021
        %v1023 = vpop.f32.mrb[0].mxu0
        %1024 = vmatprep.mubr.bf16.mxu0 %v797
        %1025 = vmatmul.mubr.bf16.gmra.mrb[0].mxu0 %v796
        %v1026 = vpop.f32.mrb[0].mxu0
        %v1027 = vadd.f32 0.0, %v1026
        %v1028 = vpop.f32.mrb[0].mxu0
        %v1029 = vpop.f32.mrb[0].mxu0
        %v1030 = vadd.f32 0.0, %v1029
        %v1031 = vpop.f32.mrb[0].mxu0
        %1032 = vmatprep.mubr.bf16.mxu0 %v799
        %1033 = vmatmul.mubr.bf16.gmra.mrb[0].mxu0 %v798
        %v1034 = vpop.f32.mrb[0].mxu0
        %v1035 = vadd.f32 0.0, %v1034
        %v1036 = vpop.f32.mrb[0].mxu0
        %v1037 = vpop.f32.mrb[0].mxu0
        %v1038 = vadd.f32 0.0, %v1037
        %v1039 = vpop.f32.mrb[0].mxu0
        %1040 = vmatprep.mubr.bf16.mxu0 %v801
        %1041 = vmatmul.mubr.bf16.gmra.mrb[0].mxu0 %v800
        %v1042 = vpop.f32.mrb[0].mxu0
        %v1043 = vadd.f32 0.0, %v1042
        %v1044 = vpop.f32.mrb[0].mxu0
        %v1045 = vpop.f32.mrb[0].mxu0
        %v1046 = vadd.f32 0.0, %v1045
        %v1047 = vpop.f32.mrb[0].mxu0
        %1048 = vmatprep.mubr.bf16.mxu0 %v803
        %1049 = vmatmul.mubr.bf16.gmra.mrb[0].mxu0 %v802
        %v1050 = vpop.f32.mrb[0].mxu0
        %v1051 = vadd.f32 0.0, %v1050
        %v1052 = vpop.f32.mrb[0].mxu0
        %v1053 = vpop.f32.mrb[0].mxu0
        %v1054 = vadd.f32 0.0, %v1053
        %v1055 = vpop.f32.mrb[0].mxu0
        %1056 = vmatprep.mubr.bf16.mxu0 %v805
        %1057 = vmatmul.mubr.bf16.gmra.mrb[0].mxu0 %v804
        %v1058 = vpop.f32.mrb[0].mxu0
        %v1059 = vadd.f32 0.0, %v1058
        %v1060 = vpop.f32.mrb[0].mxu0
        %v1061 = vpop.f32.mrb[0].mxu0
        %v1062 = vadd.f32 0.0, %v1061
        %v1063 = vpop.f32.mrb[0].mxu0
        %1064 = vmatprep.mubr.bf16.mxu0 %v807
        %1065 = vmatmul.mubr.bf16.gmra.mrb[0].mxu0 %v806
        %v1066 = vpop.f32.mrb[0].mxu0
        %v1067 = vadd.f32 0.0, %v1066
        %v1068 = vpop.f32.mrb[0].mxu0
        %v1069 = vpop.f32.mrb[0].mxu0
        %v1070 = vadd.f32 0.0, %v1069
        %v1071 = vpop.f32.mrb[0].mxu0
        %1072 = vmatprep.mubr.bf16.mxu0 %v809
        %1073 = vmatmul.mubr.bf16.gmra.mrb[0].mxu0 %v808
        %v1074 = vpop.f32.mrb[0].mxu0
        %v1075 = vadd.f32 0.0, %v1074
        %v1076 = vpop.f32.mrb[0].mxu0
        %v1077 = vpop.f32.mrb[0].mxu0
        %v1078 = vadd.f32 0.0, %v1077
        %v1079 = vpop.f32.mrb[0].mxu0
        %1080 = vmatprep.mubr.bf16.mxu0 %v811
        %1081 = vmatmul.mubr.bf16.gmra.mrb[0].mxu0 %v810
        %v1082 = vpop.f32.mrb[0].mxu0
        %v1083 = vadd.f32 0.0, %v1082
        %v1084 = vpop.f32.mrb[0].mxu0
        %v1085 = vpop.f32.mrb[0].mxu0
        %v1086 = vadd.f32 0.0, %v1085
        %v1087 = vpop.f32.mrb[0].mxu0
        %1088 = vmatprep.mubr.bf16.mxu0 %v813
        %1089 = vmatmul.mubr.bf16.gmra.mrb[0].mxu0 %v812
        %v1090 = vpop.f32.mrb[0].mxu0
        %v1091 = vadd.f32 0.0, %v1090
        %v1092 = vpop.f32.mrb[0].mxu0
        %v1093 = vpop.f32.mrb[0].mxu0
        %v1094 = vadd.f32 0.0, %v1093
        %v1095 = vpop.f32.mrb[0].mxu0
        %1096 = vmatprep.mubr.bf16.mxu0 %v815
        %1097 = vmatmul.mubr.bf16.gmra.mrb[0].mxu0 %v814
        %v1098 = vpop.f32.mrb[0].mxu0
        %v1099 = vadd.f32 0.0, %v1098
        %v1100 = vpop.f32.mrb[0].mxu0
        %v1101 = vpop.f32.mrb[0].mxu0
        %v1102 = vadd.f32 0.0, %v1101
        %v1103 = vpop.f32.mrb[0].mxu0
        %1104 = vdwg.mxu0
        %v1109 = vcombine.high %v489, %v489
        %v1111 = vunpack.c.l.s4 1966171168
        %v1112 = vunpack.c.0.s8 %v1111
        %v1113 = vlaneseq
        %v1114 = vshrl.u32 %v1113, 7
        %v1115 = vsub.s32 %v1112, %v1114
        %v1116 = vrot.slane %v489, %v1115
        %v1118 = vunpack.c.l.s4 1966171168
        %v1119 = vunpack.c.0.s8 %v1118
        %v1120 = vlaneseq
        %v1121 = vshrl.u32 %v1120, 7
        %v1122 = vsub.s32 %v1119, %v1121
        %v1123 = vrot.slane %v1109, %v1122
        %v1124 = vcombine.high %v1116, %v1116
        %v1125 = vcombine.high %v1123, %v1123
        %v1127 = vunpack.c.l.s4 1966171168
        %v1128 = vunpack.c.0.s8 %v1127
        %v1129 = vlaneseq
        %v1130 = vshrl.u32 %v1129, 7
        %v1131 = vsub.s32 %v1128, %v1130
        %v1132 = vrot.slane %v1116, %v1131
        %v1134 = vunpack.c.l.s4 1966171168
        %v1135 = vunpack.c.0.s8 %v1134
        %v1136 = vlaneseq
        %v1137 = vshrl.u32 %v1136, 7
        %v1138 = vsub.s32 %v1135, %v1137
        %v1139 = vrot.slane %v1123, %v1138
        %v1141 = vunpack.c.l.s4 1966171168
        %v1142 = vunpack.c.0.s8 %v1141
        %v1143 = vlaneseq
        %v1144 = vshrl.u32 %v1143, 7
        %v1145 = vsub.s32 %v1142, %v1144
        %v1146 = vrot.slane %v1124, %v1145
        %v1148 = vunpack.c.l.s4 1966171168
        %v1149 = vunpack.c.0.s8 %v1148
        %v1150 = vlaneseq
        %v1151 = vshrl.u32 %v1150, 7
        %v1152 = vsub.s32 %v1149, %v1151
        %v1153 = vrot.slane %v1125, %v1152
        %v1154 = vcombine.high %v1132, %v1132
        %v1155 = vcombine.high %v1139, %v1139
        %v1156 = vcombine.high %v1146, %v1146
        %v1157 = vcombine.high %v1153, %v1153
        %v1158 = vcombine.high %v490, %v490
        %v1160 = vunpack.c.l.s4 1966171168
        %v1161 = vunpack.c.0.s8 %v1160
        %v1162 = vlaneseq
        %v1163 = vshrl.u32 %v1162, 7
        %v1164 = vsub.s32 %v1161, %v1163
        %v1165 = vrot.slane %v490, %v1164
        %v1167 = vunpack.c.l.s4 1966171168
        %v1168 = vunpack.c.0.s8 %v1167
        %v1169 = vlaneseq
        %v1170 = vshrl.u32 %v1169, 7
        %v1171 = vsub.s32 %v1168, %v1170
        %v1172 = vrot.slane %v1158, %v1171
        %v1173 = vcombine.high %v1165, %v1165
        %v1174 = vcombine.high %v1172, %v1172
        %v1176 = vunpack.c.l.s4 1966171168
        %v1177 = vunpack.c.0.s8 %v1176
        %v1178 = vlaneseq
        %v1179 = vshrl.u32 %v1178, 7
        %v1180 = vsub.s32 %v1177, %v1179
        %v1181 = vrot.slane %v1165, %v1180
        %v1183 = vunpack.c.l.s4 1966171168
        %v1184 = vunpack.c.0.s8 %v1183
        %v1185 = vlaneseq
        %v1186 = vshrl.u32 %v1185, 7
        %v1187 = vsub.s32 %v1184, %v1186
        %v1188 = vrot.slane %v1172, %v1187
        %v1190 = vunpack.c.l.s4 1966171168
        %v1191 = vunpack.c.0.s8 %v1190
        %v1192 = vlaneseq
        %v1193 = vshrl.u32 %v1192, 7
        %v1194 = vsub.s32 %v1191, %v1193
        %v1195 = vrot.slane %v1173, %v1194
        %v1197 = vunpack.c.l.s4 1966171168
        %v1198 = vunpack.c.0.s8 %v1197
        %v1199 = vlaneseq
        %v1200 = vshrl.u32 %v1199, 7
        %v1201 = vsub.s32 %v1198, %v1200
        %v1202 = vrot.slane %v1174, %v1201
        %v1203 = vcombine.high %v1181, %v1181
        %v1204 = vcombine.high %v1188, %v1188
        %v1205 = vcombine.high %v1195, %v1195
        %v1206 = vcombine.high %v1202, %v1202
        %v1207 = vcombine.high %v491, %v491
        %v1209 = vunpack.c.l.s4 1966171168
        %v1210 = vunpack.c.0.s8 %v1209
        %v1211 = vlaneseq
        %v1212 = vshrl.u32 %v1211, 7
        %v1213 = vsub.s32 %v1210, %v1212
        %v1214 = vrot.slane %v491, %v1213
        %v1216 = vunpack.c.l.s4 1966171168
        %v1217 = vunpack.c.0.s8 %v1216
        %v1218 = vlaneseq
        %v1219 = vshrl.u32 %v1218, 7
        %v1220 = vsub.s32 %v1217, %v1219
        %v1221 = vrot.slane %v1207, %v1220
        %v1222 = vcombine.high %v1214, %v1214
        %v1223 = vcombine.high %v1221, %v1221
        %v1225 = vunpack.c.l.s4 1966171168
        %v1226 = vunpack.c.0.s8 %v1225
        %v1227 = vlaneseq
        %v1228 = vshrl.u32 %v1227, 7
        %v1229 = vsub.s32 %v1226, %v1228
        %v1230 = vrot.slane %v1214, %v1229
        %v1232 = vunpack.c.l.s4 1966171168
        %v1233 = vunpack.c.0.s8 %v1232
        %v1234 = vlaneseq
        %v1235 = vshrl.u32 %v1234, 7
        %v1236 = vsub.s32 %v1233, %v1235
        %v1237 = vrot.slane %v1221, %v1236
        %v1239 = vunpack.c.l.s4 1966171168
        %v1240 = vunpack.c.0.s8 %v1239
        %v1241 = vlaneseq
        %v1242 = vshrl.u32 %v1241, 7
        %v1243 = vsub.s32 %v1240, %v1242
        %v1244 = vrot.slane %v1222, %v1243
        %v1246 = vunpack.c.l.s4 1966171168
        %v1247 = vunpack.c.0.s8 %v1246
        %v1248 = vlaneseq
        %v1249 = vshrl.u32 %v1248, 7
        %v1250 = vsub.s32 %v1247, %v1249
        %v1251 = vrot.slane %v1223, %v1250
        %v1252 = vcombine.high %v1230, %v1230
        %v1253 = vcombine.high %v1237, %v1237
        %v1254 = vcombine.high %v1244, %v1244
        %v1255 = vcombine.high %v1251, %v1251
        %v1256 = vcombine.high %v492, %v492
        %v1258 = vunpack.c.l.s4 1966171168
        %v1259 = vunpack.c.0.s8 %v1258
        %v1260 = vlaneseq
        %v1261 = vshrl.u32 %v1260, 7
        %v1262 = vsub.s32 %v1259, %v1261
        %v1263 = vrot.slane %v492, %v1262
        %v1265 = vunpack.c.l.s4 1966171168
        %v1266 = vunpack.c.0.s8 %v1265
        %v1267 = vlaneseq
        %v1268 = vshrl.u32 %v1267, 7
        %v1269 = vsub.s32 %v1266, %v1268
        %v1270 = vrot.slane %v1256, %v1269
        %v1271 = vcombine.high %v1263, %v1263
        %v1272 = vcombine.high %v1270, %v1270
        %v1274 = vunpack.c.l.s4 1966171168
        %v1275 = vunpack.c.0.s8 %v1274
        %v1276 = vlaneseq
        %v1277 = vshrl.u32 %v1276, 7
        %v1278 = vsub.s32 %v1275, %v1277
        %v1279 = vrot.slane %v1263, %v1278
        %v1281 = vunpack.c.l.s4 1966171168
        %v1282 = vunpack.c.0.s8 %v1281
        %v1283 = vlaneseq
        %v1284 = vshrl.u32 %v1283, 7
        %v1285 = vsub.s32 %v1282, %v1284
        %v1286 = vrot.slane %v1270, %v1285
        %v1288 = vunpack.c.l.s4 1966171168
        %v1289 = vunpack.c.0.s8 %v1288
        %v1290 = vlaneseq
        %v1291 = vshrl.u32 %v1290, 7
        %v1292 = vsub.s32 %v1289, %v1291
        %v1293 = vrot.slane %v1271, %v1292
        %v1295 = vunpack.c.l.s4 1966171168
        %v1296 = vunpack.c.0.s8 %v1295
        %v1297 = vlaneseq
        %v1298 = vshrl.u32 %v1297, 7
        %v1299 = vsub.s32 %v1296, %v1298
        %v1300 = vrot.slane %v1272, %v1299
        %v1301 = vcombine.high %v1279, %v1279
        %v1302 = vcombine.high %v1286, %v1286
        %v1303 = vcombine.high %v1293, %v1293
        %v1304 = vcombine.high %v1300, %v1300
        %v1305 = vlaneseq
        %v1306 = vshrl.u32 %v1305, 7
        %v1307 = vsub.s32 0, %v1306
        %v1308 = vrot.slane %v1132, %v1307
        %v1309 = vlaneseq
        %v1310 = vshrl.u32 %v1309, 7
        %v1311 = vsub.s32 0, %v1310
        %v1312 = vrot.slane %v1146, %v1311
        %v1313 = vlaneseq
        %v1314 = vshrl.u32 %v1313, 7
        %v1315 = vsub.s32 0, %v1314
        %v1316 = vrot.slane %v1154, %v1315
        %v1317 = vlaneseq
        %v1318 = vshrl.u32 %v1317, 7
        %v1319 = vsub.s32 0, %v1318
        %v1320 = vrot.slane %v1156, %v1319
        %v1321 = vlaneseq
        %v1322 = vshrl.u32 %v1321, 7
        %v1323 = vsub.s32 0, %v1322
        %v1324 = vrot.slane %v1139, %v1323
        %v1325 = vlaneseq
        %v1326 = vshrl.u32 %v1325, 7
        %v1327 = vsub.s32 0, %v1326
        %v1328 = vrot.slane %v1153, %v1327
        %v1329 = vlaneseq
        %v1330 = vshrl.u32 %v1329, 7
        %v1331 = vsub.s32 0, %v1330
        %v1332 = vrot.slane %v1155, %v1331
        %v1333 = vlaneseq
        %v1334 = vshrl.u32 %v1333, 7
        %v1335 = vsub.s32 0, %v1334
        %v1336 = vrot.slane %v1157, %v1335
        %v1337 = vlaneseq
        %v1338 = vshrl.u32 %v1337, 7
        %v1339 = vsub.s32 0, %v1338
        %v1340 = vrot.slane %v1181, %v1339
        %v1341 = vlaneseq
        %v1342 = vshrl.u32 %v1341, 7
        %v1343 = vsub.s32 0, %v1342
        %v1344 = vrot.slane %v1195, %v1343
        %v1345 = vlaneseq
        %v1346 = vshrl.u32 %v1345, 7
        %v1347 = vsub.s32 0, %v1346
        %v1348 = vrot.slane %v1203, %v1347
        %v1349 = vlaneseq
        %v1350 = vshrl.u32 %v1349, 7
        %v1351 = vsub.s32 0, %v1350
        %v1352 = vrot.slane %v1205, %v1351
        %v1353 = vlaneseq
        %v1354 = vshrl.u32 %v1353, 7
        %v1355 = vsub.s32 0, %v1354
        %v1356 = vrot.slane %v1188, %v1355
        %v1357 = vlaneseq
        %v1358 = vshrl.u32 %v1357, 7
        %v1359 = vsub.s32 0, %v1358
        %v1360 = vrot.slane %v1202, %v1359
        %v1361 = vlaneseq
        %v1362 = vshrl.u32 %v1361, 7
        %v1363 = vsub.s32 0, %v1362
        %v1364 = vrot.slane %v1204, %v1363
        %v1365 = vlaneseq
        %v1366 = vshrl.u32 %v1365, 7
        %v1367 = vsub.s32 0, %v1366
        %v1368 = vrot.slane %v1206, %v1367
        %v1369 = vlaneseq
        %v1370 = vshrl.u32 %v1369, 7
        %v1371 = vsub.s32 0, %v1370
        %v1372 = vrot.slane %v1230, %v1371
        %v1373 = vlaneseq
        %v1374 = vshrl.u32 %v1373, 7
        %v1375 = vsub.s32 0, %v1374
        %v1376 = vrot.slane %v1244, %v1375
        %v1377 = vlaneseq
        %v1378 = vshrl.u32 %v1377, 7
        %v1379 = vsub.s32 0, %v1378
        %v1380 = vrot.slane %v1252, %v1379
        %v1381 = vlaneseq
        %v1382 = vshrl.u32 %v1381, 7
        %v1383 = vsub.s32 0, %v1382
        %v1384 = vrot.slane %v1254, %v1383
        %v1385 = vlaneseq
        %v1386 = vshrl.u32 %v1385, 7
        %v1387 = vsub.s32 0, %v1386
        %v1388 = vrot.slane %v1237, %v1387
        %v1389 = vlaneseq
        %v1390 = vshrl.u32 %v1389, 7
        %v1391 = vsub.s32 0, %v1390
        %v1392 = vrot.slane %v1251, %v1391
        %v1393 = vlaneseq
        %v1394 = vshrl.u32 %v1393, 7
        %v1395 = vsub.s32 0, %v1394
        %v1396 = vrot.slane %v1253, %v1395
        %v1397 = vlaneseq
        %v1398 = vshrl.u32 %v1397, 7
        %v1399 = vsub.s32 0, %v1398
        %v1400 = vrot.slane %v1255, %v1399
        %v1401 = vlaneseq
        %v1402 = vshrl.u32 %v1401, 7
        %v1403 = vsub.s32 0, %v1402
        %v1404 = vrot.slane %v1279, %v1403
        %v1405 = vlaneseq
        %v1406 = vshrl.u32 %v1405, 7
        %v1407 = vsub.s32 0, %v1406
        %v1408 = vrot.slane %v1293, %v1407
        %v1409 = vlaneseq
        %v1410 = vshrl.u32 %v1409, 7
        %v1411 = vsub.s32 0, %v1410
        %v1412 = vrot.slane %v1301, %v1411
        %v1413 = vlaneseq
        %v1414 = vshrl.u32 %v1413, 7
        %v1415 = vsub.s32 0, %v1414
        %v1416 = vrot.slane %v1303, %v1415
        %v1417 = vlaneseq
        %v1418 = vshrl.u32 %v1417, 7
        %v1419 = vsub.s32 0, %v1418
        %v1420 = vrot.slane %v1286, %v1419
        %v1421 = vlaneseq
        %v1422 = vshrl.u32 %v1421, 7
        %v1423 = vsub.s32 0, %v1422
        %v1424 = vrot.slane %v1300, %v1423
        %v1425 = vlaneseq
        %v1426 = vshrl.u32 %v1425, 7
        %v1427 = vsub.s32 0, %v1426
        %v1428 = vrot.slane %v1302, %v1427
        %v1429 = vlaneseq
        %v1430 = vshrl.u32 %v1429, 7
        %v1431 = vsub.s32 0, %v1430
        %v1432 = vrot.slane %v1304, %v1431
        %v1465 = vsub.f32 %v1308, %v493
        %v1466 = vsub.f32 %v1312, %v494
        %v1467 = vsub.f32 %v1316, %v495
        %v1468 = vsub.f32 %v1320, %v496
        %v1469 = vsub.f32 %v1324, %v497
        %v1470 = vsub.f32 %v1328, %v498
        %v1471 = vsub.f32 %v1332, %v499
        %v1472 = vsub.f32 %v1336, %v500
        %v1473 = vsub.f32 %v1340, %v501
        %v1474 = vsub.f32 %v1344, %v502
        %v1475 = vsub.f32 %v1348, %v503
        %v1476 = vsub.f32 %v1352, %v504
        %v1477 = vsub.f32 %v1356, %v505
        %v1478 = vsub.f32 %v1360, %v506
        %v1479 = vsub.f32 %v1364, %v507
        %v1480 = vsub.f32 %v1368, %v508
        %v1481 = vsub.f32 %v1372, %v509
        %v1482 = vsub.f32 %v1376, %v510
        %v1483 = vsub.f32 %v1380, %v511
        %v1484 = vsub.f32 %v1384, %v512
        %v1485 = vsub.f32 %v1388, %v513
        %v1486 = vsub.f32 %v1392, %v514
        %v1487 = vsub.f32 %v1396, %v515
        %v1488 = vsub.f32 %v1400, %v516
        %v1489 = vsub.f32 %v1404, %v517
        %v1490 = vsub.f32 %v1408, %v518
        %v1491 = vsub.f32 %v1412, %v519
        %v1492 = vsub.f32 %v1416, %v520
        %v1493 = vsub.f32 %v1420, %v521
        %v1494 = vsub.f32 %v1424, %v522
        %v1495 = vsub.f32 %v1428, %v523
        %v1496 = vsub.f32 %v1432, %v524
        %v1497 = vmul.f32 %v1465, %v1465
        %v1498 = vmul.f32 %v1466, %v1466
        %v1499 = vmul.f32 %v1467, %v1467
        %v1500 = vmul.f32 %v1468, %v1468
        %v1501 = vmul.f32 %v1469, %v1469
        %v1502 = vmul.f32 %v1470, %v1470
        %v1503 = vmul.f32 %v1471, %v1471
        %v1504 = vmul.f32 %v1472, %v1472
        %v1505 = vmul.f32 %v1473, %v1473
        %v1506 = vmul.f32 %v1474, %v1474
        %v1507 = vmul.f32 %v1475, %v1475
        %v1508 = vmul.f32 %v1476, %v1476
        %v1509 = vmul.f32 %v1477, %v1477
        %v1510 = vmul.f32 %v1478, %v1478
        %v1511 = vmul.f32 %v1479, %v1479
        %v1512 = vmul.f32 %v1480, %v1480
        %v1513 = vmul.f32 %v1481, %v1481
        %v1514 = vmul.f32 %v1482, %v1482
        %v1515 = vmul.f32 %v1483, %v1483
        %v1516 = vmul.f32 %v1484, %v1484
        %v1517 = vmul.f32 %v1485, %v1485
        %v1518 = vmul.f32 %v1486, %v1486
        %v1519 = vmul.f32 %v1487, %v1487
        %v1520 = vmul.f32 %v1488, %v1488
        %v1521 = vmul.f32 %v1489, %v1489
        %v1522 = vmul.f32 %v1490, %v1490
        %v1523 = vmul.f32 %v1491, %v1491
        %v1524 = vmul.f32 %v1492, %v1492
        %v1525 = vmul.f32 %v1493, %v1493
        %v1526 = vmul.f32 %v1494, %v1494
        %v1527 = vmul.f32 %v1495, %v1495
        %v1528 = vmul.f32 %v1496, %v1496
        %vm1529 = vcmask 23552
        %v1530 = vsel %vm1529, %v1497, 0.0
        %1531 = vadd.xlane.f32.xlu0 %v1530
        %v1532 = vpop.xlane.xlu0 %1531
        %v1533 = vsel %vm1529, %v1498, 0.0
        %1534 = vadd.xlane.f32.xlu0 %v1533
        %v1535 = vpop.xlane.xlu0 %1534
        %v1536 = vsel %vm1529, %v1499, 0.0
        %1537 = vadd.xlane.f32.xlu0 %v1536
        %v1538 = vpop.xlane.xlu0 %1537
        %v1539 = vsel %vm1529, %v1500, 0.0
        %1540 = vadd.xlane.f32.xlu0 %v1539
        %v1541 = vpop.xlane.xlu0 %1540
        %v1542 = vsel %vm1529, %v1501, 0.0
        %1543 = vadd.xlane.f32.xlu0 %v1542
        %v1544 = vpop.xlane.xlu0 %1543
        %v1545 = vsel %vm1529, %v1502, 0.0
        %1546 = vadd.xlane.f32.xlu0 %v1545
        %v1547 = vpop.xlane.xlu0 %1546
        %v1548 = vsel %vm1529, %v1503, 0.0
        %1549 = vadd.xlane.f32.xlu0 %v1548
        %v1550 = vpop.xlane.xlu0 %1549
        %v1551 = vsel %vm1529, %v1504, 0.0
        %1552 = vadd.xlane.f32.xlu0 %v1551
        %v1553 = vpop.xlane.xlu0 %1552
        %v1554 = vsel %vm1529, %v1505, 0.0
        %1555 = vadd.xlane.f32.xlu0 %v1554
        %v1556 = vpop.xlane.xlu0 %1555
        %v1557 = vsel %vm1529, %v1506, 0.0
        %1558 = vadd.xlane.f32.xlu0 %v1557
        %v1559 = vpop.xlane.xlu0 %1558
        %v1560 = vsel %vm1529, %v1507, 0.0
        %1561 = vadd.xlane.f32.xlu0 %v1560
        %v1562 = vpop.xlane.xlu0 %1561
        %v1563 = vsel %vm1529, %v1508, 0.0
        %1564 = vadd.xlane.f32.xlu0 %v1563
        %v1565 = vpop.xlane.xlu0 %1564
        %v1566 = vsel %vm1529, %v1509, 0.0
        %1567 = vadd.xlane.f32.xlu0 %v1566
        %v1568 = vpop.xlane.xlu0 %1567
        %v1569 = vsel %vm1529, %v1510, 0.0
        %1570 = vadd.xlane.f32.xlu0 %v1569
        %v1571 = vpop.xlane.xlu0 %1570
        %v1572 = vsel %vm1529, %v1511, 0.0
        %1573 = vadd.xlane.f32.xlu0 %v1572
        %v1574 = vpop.xlane.xlu0 %1573
        %v1575 = vsel %vm1529, %v1512, 0.0
        %1576 = vadd.xlane.f32.xlu0 %v1575
        %v1577 = vpop.xlane.xlu0 %1576
        %v1578 = vsel %vm1529, %v1513, 0.0
        %1579 = vadd.xlane.f32.xlu0 %v1578
        %v1580 = vpop.xlane.xlu0 %1579
        %v1581 = vsel %vm1529, %v1514, 0.0
        %1582 = vadd.xlane.f32.xlu0 %v1581
        %v1583 = vpop.xlane.xlu0 %1582
        %v1584 = vsel %vm1529, %v1515, 0.0
        %1585 = vadd.xlane.f32.xlu0 %v1584
        %v1586 = vpop.xlane.xlu0 %1585
        %v1587 = vsel %vm1529, %v1516, 0.0
        %1588 = vadd.xlane.f32.xlu0 %v1587
        %v1589 = vpop.xlane.xlu0 %1588
        %v1590 = vsel %vm1529, %v1517, 0.0
        %1591 = vadd.xlane.f32.xlu0 %v1590
        %v1592 = vpop.xlane.xlu0 %1591
        %v1593 = vsel %vm1529, %v1518, 0.0
        %1594 = vadd.xlane.f32.xlu0 %v1593
        %v1595 = vpop.xlane.xlu0 %1594
        %v1596 = vsel %vm1529, %v1519, 0.0
        %1597 = vadd.xlane.f32.xlu0 %v1596
        %v1598 = vpop.xlane.xlu0 %1597
        %v1599 = vsel %vm1529, %v1520, 0.0
        %1600 = vadd.xlane.f32.xlu0 %v1599
        %v1601 = vpop.xlane.xlu0 %1600
        %v1602 = vsel %vm1529, %v1521, 0.0
        %1603 = vadd.xlane.f32.xlu0 %v1602
        %v1604 = vpop.xlane.xlu0 %1603
        %v1605 = vsel %vm1529, %v1522, 0.0
        %1606 = vadd.xlane.f32.xlu0 %v1605
        %v1607 = vpop.xlane.xlu0 %1606
        %v1608 = vsel %vm1529, %v1523, 0.0
        %1609 = vadd.xlane.f32.xlu0 %v1608
        %v1610 = vpop.xlane.xlu0 %1609
        %v1611 = vsel %vm1529, %v1524, 0.0
        %1612 = vadd.xlane.f32.xlu0 %v1611
        %v1613 = vpop.xlane.xlu0 %1612
        %v1614 = vsel %vm1529, %v1525, 0.0
        %1615 = vadd.xlane.f32.xlu0 %v1614
        %v1616 = vpop.xlane.xlu0 %1615
        %v1617 = vsel %vm1529, %v1526, 0.0
        %1618 = vadd.xlane.f32.xlu0 %v1617
        %v1619 = vpop.xlane.xlu0 %1618
        %v1620 = vsel %vm1529, %v1527, 0.0
        %1621 = vadd.xlane.f32.xlu0 %v1620
        %v1622 = vpop.xlane.xlu0 %1621
        %v1623 = vsel %vm1529, %v1528, 0.0
        %1624 = vadd.xlane.f32.xlu0 %v1623
        %v1625 = vpop.xlane.xlu0 %1624
        %v1626 = vpack.c.bf16 %v486, %v485
        %v1627 = vpack.c.bf16 %v488, %v487
        %v1644 = vunpack.c.l.b16 %v388
        %v1645 = vunpack.c.l.b16 %v389
        %v1646 = vunpack.c.l.b16 %v390
        %v1647 = vunpack.c.l.b16 %v391
        %v1648 = vunpack.c.l.b16 %v392
        %v1649 = vunpack.c.l.b16 %v393
        %v1650 = vunpack.c.l.b16 %v394
        %v1651 = vunpack.c.l.b16 %v395
        %v1652 = vunpack.c.l.b16 %v396
        %v1653 = vunpack.c.l.b16 %v397
        %v1654 = vunpack.c.l.b16 %v398
        %v1655 = vunpack.c.l.b16 %v399
        %v1656 = vunpack.c.l.b16 %v400
        %v1657 = vunpack.c.l.b16 %v401
        %v1658 = vunpack.c.l.b16 %v402
        %v1659 = vunpack.c.l.b16 %v403
        %v1660 = vpack.c.b16 %v1645, %v1644
        %v1661 = vpack.c.b16 %v1647, %v1646
        %v1662 = vpack.c.b16 %v1649, %v1648
        %v1663 = vpack.c.b16 %v1651, %v1650
        %v1664 = vpack.c.b16 %v1653, %v1652
        %v1665 = vpack.c.b16 %v1655, %v1654
        %v1666 = vpack.c.b16 %v1657, %v1656
        %v1667 = vpack.c.b16 %v1659, %v1658
        %1676 = vmatprep.subr.bf16.mxu0 0
        %1677 = vmatpush1.bf16.msra.mxu0 %v1660
        %1678 = vmatprep.subr.bf16.mxu0 0
        %1679 = vmatpush1.bf16.msra.mxu0 %v1661
        %1680 = vmatprep.subr.bf16.mxu0 0
        %1681 = vmatpush1.bf16.msra.mxu0 %v1662
        %1682 = vmatprep.subr.bf16.mxu0 0
        %1683 = vmatpush1.bf16.msra.mxu0 %v1663
        %1684 = vmatprep.subr.bf16.mxu0 0
        %1685 = vmatpush1.bf16.msra.mxu0 %v1664
        %1686 = vmatprep.subr.bf16.mxu0 0
        %1687 = vmatpush1.bf16.msra.mxu0 %v1665
        %1688 = vmatprep.subr.bf16.mxu0 0
        %1689 = vmatpush1.bf16.msra.mxu0 %v1666
        %1690 = vmatprep.subr.bf16.mxu0 0
        %1691 = vmatpush1.bf16.msra.mxu0 %v1667
        %1692 = vmatprep.subr.bf16.mxu0 0
        %1693 = vmatpush1.bf16.msra.mxu0 0
        %1694 = vmatprep.subr.bf16.mxu0 0
        %1695 = vmatpush1.bf16.msra.mxu0 0
        %1696 = vmatprep.subr.bf16.mxu0 0
        %1697 = vmatpush1.bf16.msra.mxu0 0
        %1698 = vmatprep.subr.bf16.mxu0 0
        %1699 = vmatpush1.bf16.msra.mxu0 0
        %1700 = vmatprep.subr.bf16.mxu0 0
        %1701 = vmatpush1.bf16.msra.mxu0 0
        %1702 = vmatprep.subr.bf16.mxu0 0
        %1703 = vmatpush1.bf16.msra.mxu0 0
        %1704 = vmatprep.subr.bf16.mxu0 0
        %1705 = vmatpush1.bf16.msra.mxu0 0
        %1706 = vmatprep.subr.bf16.mxu0 0
        %1707 = vmatpush1.bf16.msra.mxu0 0
        %1708 = vmatprep.mubr.bf16.mxu0 0
        %1709 = vmatmul.mubr.bf16.gmra.mrb[0].mxu0 %v1626
        %v1710 = vpop.f32.mrb[0].mxu0
        %v1711 = vadd.f32 0.0, %v1710
        %v1712 = vpop.f32.mrb[0].mxu0
        %v1713 = vpop.f32.mrb[0].mxu0
        %v1714 = vadd.f32 0.0, %v1713
        %v1715 = vpop.f32.mrb[0].mxu0
        %1716 = vmatprep.mubr.bf16.mxu0 0
        %1717 = vmatmul.mubr.bf16.gmra.mrb[0].mxu0 %v1627
        %v1718 = vpop.f32.mrb[0].mxu0
        %v1719 = vadd.f32 0.0, %v1718
        %v1720 = vpop.f32.mrb[0].mxu0
        %v1721 = vpop.f32.mrb[0].mxu0
        %v1722 = vadd.f32 0.0, %v1721
        %v1723 = vpop.f32.mrb[0].mxu0
        %1724 = vdwg.mxu0
        %v1729 = vcombine.high %v1711, %v1711
        %v1731 = vunpack.c.l.s4 1966171168
        %v1732 = vunpack.c.0.s8 %v1731
        %v1733 = vlaneseq
        %v1734 = vshrl.u32 %v1733, 7
        %v1735 = vsub.s32 %v1732, %v1734
        %v1736 = vrot.slane %v1711, %v1735
        %v1738 = vunpack.c.l.s4 1966171168
        %v1739 = vunpack.c.0.s8 %v1738
        %v1740 = vlaneseq
        %v1741 = vshrl.u32 %v1740, 7
        %v1742 = vsub.s32 %v1739, %v1741
        %v1743 = vrot.slane %v1729, %v1742
        %v1744 = vcombine.high %v1736, %v1736
        %v1745 = vcombine.high %v1743, %v1743
        %v1747 = vunpack.c.l.s4 1966171168
        %v1748 = vunpack.c.0.s8 %v1747
        %v1749 = vlaneseq
        %v1750 = vshrl.u32 %v1749, 7
        %v1751 = vsub.s32 %v1748, %v1750
        %v1752 = vrot.slane %v1736, %v1751
        %v1754 = vunpack.c.l.s4 1966171168
        %v1755 = vunpack.c.0.s8 %v1754
        %v1756 = vlaneseq
        %v1757 = vshrl.u32 %v1756, 7
        %v1758 = vsub.s32 %v1755, %v1757
        %v1759 = vrot.slane %v1743, %v1758
        %v1761 = vunpack.c.l.s4 1966171168
        %v1762 = vunpack.c.0.s8 %v1761
        %v1763 = vlaneseq
        %v1764 = vshrl.u32 %v1763, 7
        %v1765 = vsub.s32 %v1762, %v1764
        %v1766 = vrot.slane %v1744, %v1765
        %v1768 = vunpack.c.l.s4 1966171168
        %v1769 = vunpack.c.0.s8 %v1768
        %v1770 = vlaneseq
        %v1771 = vshrl.u32 %v1770, 7
        %v1772 = vsub.s32 %v1769, %v1771
        %v1773 = vrot.slane %v1745, %v1772
        %v1774 = vcombine.high %v1752, %v1752
        %v1775 = vcombine.high %v1759, %v1759
        %v1776 = vcombine.high %v1766, %v1766
        %v1777 = vcombine.high %v1773, %v1773
        %v1778 = vcombine.high %v1714, %v1714
        %v1780 = vunpack.c.l.s4 1966171168
        %v1781 = vunpack.c.0.s8 %v1780
        %v1782 = vlaneseq
        %v1783 = vshrl.u32 %v1782, 7
        %v1784 = vsub.s32 %v1781, %v1783
        %v1785 = vrot.slane %v1714, %v1784
        %v1787 = vunpack.c.l.s4 1966171168
        %v1788 = vunpack.c.0.s8 %v1787
        %v1789 = vlaneseq
        %v1790 = vshrl.u32 %v1789, 7
        %v1791 = vsub.s32 %v1788, %v1790
        %v1792 = vrot.slane %v1778, %v1791
        %v1793 = vcombine.high %v1785, %v1785
        %v1794 = vcombine.high %v1792, %v1792
        %v1796 = vunpack.c.l.s4 1966171168
        %v1797 = vunpack.c.0.s8 %v1796
        %v1798 = vlaneseq
        %v1799 = vshrl.u32 %v1798, 7
        %v1800 = vsub.s32 %v1797, %v1799
        %v1801 = vrot.slane %v1785, %v1800
        %v1803 = vunpack.c.l.s4 1966171168
        %v1804 = vunpack.c.0.s8 %v1803
        %v1805 = vlaneseq
        %v1806 = vshrl.u32 %v1805, 7
        %v1807 = vsub.s32 %v1804, %v1806
        %v1808 = vrot.slane %v1792, %v1807
        %v1810 = vunpack.c.l.s4 1966171168
        %v1811 = vunpack.c.0.s8 %v1810
        %v1812 = vlaneseq
        %v1813 = vshrl.u32 %v1812, 7
        %v1814 = vsub.s32 %v1811, %v1813
        %v1815 = vrot.slane %v1793, %v1814
        %v1817 = vunpack.c.l.s4 1966171168
        %v1818 = vunpack.c.0.s8 %v1817
        %v1819 = vlaneseq
        %v1820 = vshrl.u32 %v1819, 7
        %v1821 = vsub.s32 %v1818, %v1820
        %v1822 = vrot.slane %v1794, %v1821
        %v1823 = vcombine.high %v1801, %v1801
        %v1824 = vcombine.high %v1808, %v1808
        %v1825 = vcombine.high %v1815, %v1815
        %v1826 = vcombine.high %v1822, %v1822
        %v1827 = vcombine.high %v1719, %v1719
        %v1829 = vunpack.c.l.s4 1966171168
        %v1830 = vunpack.c.0.s8 %v1829
        %v1831 = vlaneseq
        %v1832 = vshrl.u32 %v1831, 7
        %v1833 = vsub.s32 %v1830, %v1832
        %v1834 = vrot.slane %v1719, %v1833
        %v1836 = vunpack.c.l.s4 1966171168
        %v1837 = vunpack.c.0.s8 %v1836
        %v1838 = vlaneseq
        %v1839 = vshrl.u32 %v1838, 7
        %v1840 = vsub.s32 %v1837, %v1839
        %v1841 = vrot.slane %v1827, %v1840
        %v1842 = vcombine.high %v1834, %v1834
        %v1843 = vcombine.high %v1841, %v1841
        %v1845 = vunpack.c.l.s4 1966171168
        %v1846 = vunpack.c.0.s8 %v1845
        %v1847 = vlaneseq
        %v1848 = vshrl.u32 %v1847, 7
        %v1849 = vsub.s32 %v1846, %v1848
        %v1850 = vrot.slane %v1834, %v1849
        %v1852 = vunpack.c.l.s4 1966171168
        %v1853 = vunpack.c.0.s8 %v1852
        %v1854 = vlaneseq
        %v1855 = vshrl.u32 %v1854, 7
        %v1856 = vsub.s32 %v1853, %v1855
        %v1857 = vrot.slane %v1841, %v1856
        %v1859 = vunpack.c.l.s4 1966171168
        %v1860 = vunpack.c.0.s8 %v1859
        %v1861 = vlaneseq
        %v1862 = vshrl.u32 %v1861, 7
        %v1863 = vsub.s32 %v1860, %v1862
        %v1864 = vrot.slane %v1842, %v1863
        %v1866 = vunpack.c.l.s4 1966171168
        %v1867 = vunpack.c.0.s8 %v1866
        %v1868 = vlaneseq
        %v1869 = vshrl.u32 %v1868, 7
        %v1870 = vsub.s32 %v1867, %v1869
        %v1871 = vrot.slane %v1843, %v1870
        %v1872 = vcombine.high %v1850, %v1850
        %v1873 = vcombine.high %v1857, %v1857
        %v1874 = vcombine.high %v1864, %v1864
        %v1875 = vcombine.high %v1871, %v1871
        %v1876 = vcombine.high %v1722, %v1722
        %v1878 = vunpack.c.l.s4 1966171168
        %v1879 = vunpack.c.0.s8 %v1878
        %v1880 = vlaneseq
        %v1881 = vshrl.u32 %v1880, 7
        %v1882 = vsub.s32 %v1879, %v1881
        %v1883 = vrot.slane %v1722, %v1882
        %v1885 = vunpack.c.l.s4 1966171168
        %v1886 = vunpack.c.0.s8 %v1885
        %v1887 = vlaneseq
        %v1888 = vshrl.u32 %v1887, 7
        %v1889 = vsub.s32 %v1886, %v1888
        %v1890 = vrot.slane %v1876, %v1889
        %v1891 = vcombine.high %v1883, %v1883
        %v1892 = vcombine.high %v1890, %v1890
        %v1894 = vunpack.c.l.s4 1966171168
        %v1895 = vunpack.c.0.s8 %v1894
        %v1896 = vlaneseq
        %v1897 = vshrl.u32 %v1896, 7
        %v1898 = vsub.s32 %v1895, %v1897
        %v1899 = vrot.slane %v1883, %v1898
        %v1901 = vunpack.c.l.s4 1966171168
        %v1902 = vunpack.c.0.s8 %v1901
        %v1903 = vlaneseq
        %v1904 = vshrl.u32 %v1903, 7
        %v1905 = vsub.s32 %v1902, %v1904
        %v1906 = vrot.slane %v1890, %v1905
        %v1908 = vunpack.c.l.s4 1966171168
        %v1909 = vunpack.c.0.s8 %v1908
        %v1910 = vlaneseq
        %v1911 = vshrl.u32 %v1910, 7
        %v1912 = vsub.s32 %v1909, %v1911
        %v1913 = vrot.slane %v1891, %v1912
        %v1915 = vunpack.c.l.s4 1966171168
        %v1916 = vunpack.c.0.s8 %v1915
        %v1917 = vlaneseq
        %v1918 = vshrl.u32 %v1917, 7
        %v1919 = vsub.s32 %v1916, %v1918
        %v1920 = vrot.slane %v1892, %v1919
        %v1921 = vcombine.high %v1899, %v1899
        %v1922 = vcombine.high %v1906, %v1906
        %v1923 = vcombine.high %v1913, %v1913
        %v1924 = vcombine.high %v1920, %v1920
        %v1925 = vlaneseq
        %v1926 = vshrl.u32 %v1925, 7
        %v1927 = vsub.s32 0, %v1926
        %v1928 = vrot.slane %v1752, %v1927
        %v1929 = vlaneseq
        %v1930 = vshrl.u32 %v1929, 7
        %v1931 = vsub.s32 0, %v1930
        %v1932 = vrot.slane %v1766, %v1931
        %v1933 = vlaneseq
        %v1934 = vshrl.u32 %v1933, 7
        %v1935 = vsub.s32 0, %v1934
        %v1936 = vrot.slane %v1774, %v1935
        %v1937 = vlaneseq
        %v1938 = vshrl.u32 %v1937, 7
        %v1939 = vsub.s32 0, %v1938
        %v1940 = vrot.slane %v1776, %v1939
        %v1941 = vlaneseq
        %v1942 = vshrl.u32 %v1941, 7
        %v1943 = vsub.s32 0, %v1942
        %v1944 = vrot.slane %v1759, %v1943
        %v1945 = vlaneseq
        %v1946 = vshrl.u32 %v1945, 7
        %v1947 = vsub.s32 0, %v1946
        %v1948 = vrot.slane %v1773, %v1947
        %v1949 = vlaneseq
        %v1950 = vshrl.u32 %v1949, 7
        %v1951 = vsub.s32 0, %v1950
        %v1952 = vrot.slane %v1775, %v1951
        %v1953 = vlaneseq
        %v1954 = vshrl.u32 %v1953, 7
        %v1955 = vsub.s32 0, %v1954
        %v1956 = vrot.slane %v1777, %v1955
        %v1957 = vlaneseq
        %v1958 = vshrl.u32 %v1957, 7
        %v1959 = vsub.s32 0, %v1958
        %v1960 = vrot.slane %v1801, %v1959
        %v1961 = vlaneseq
        %v1962 = vshrl.u32 %v1961, 7
        %v1963 = vsub.s32 0, %v1962
        %v1964 = vrot.slane %v1815, %v1963
        %v1965 = vlaneseq
        %v1966 = vshrl.u32 %v1965, 7
        %v1967 = vsub.s32 0, %v1966
        %v1968 = vrot.slane %v1823, %v1967
        %v1969 = vlaneseq
        %v1970 = vshrl.u32 %v1969, 7
        %v1971 = vsub.s32 0, %v1970
        %v1972 = vrot.slane %v1825, %v1971
        %v1973 = vlaneseq
        %v1974 = vshrl.u32 %v1973, 7
        %v1975 = vsub.s32 0, %v1974
        %v1976 = vrot.slane %v1808, %v1975
        %v1977 = vlaneseq
        %v1978 = vshrl.u32 %v1977, 7
        %v1979 = vsub.s32 0, %v1978
        %v1980 = vrot.slane %v1822, %v1979
        %v1981 = vlaneseq
        %v1982 = vshrl.u32 %v1981, 7
        %v1983 = vsub.s32 0, %v1982
        %v1984 = vrot.slane %v1824, %v1983
        %v1985 = vlaneseq
        %v1986 = vshrl.u32 %v1985, 7
        %v1987 = vsub.s32 0, %v1986
        %v1988 = vrot.slane %v1826, %v1987
        %v1989 = vlaneseq
        %v1990 = vshrl.u32 %v1989, 7
        %v1991 = vsub.s32 0, %v1990
        %v1992 = vrot.slane %v1850, %v1991
        %v1993 = vlaneseq
        %v1994 = vshrl.u32 %v1993, 7
        %v1995 = vsub.s32 0, %v1994
        %v1996 = vrot.slane %v1864, %v1995
        %v1997 = vlaneseq
        %v1998 = vshrl.u32 %v1997, 7
        %v1999 = vsub.s32 0, %v1998
        %v2000 = vrot.slane %v1872, %v1999
        %v2001 = vlaneseq
        %v2002 = vshrl.u32 %v2001, 7
        %v2003 = vsub.s32 0, %v2002
        %v2004 = vrot.slane %v1874, %v2003
        %v2005 = vlaneseq
        %v2006 = vshrl.u32 %v2005, 7
        %v2007 = vsub.s32 0, %v2006
        %v2008 = vrot.slane %v1857, %v2007
        %v2009 = vlaneseq
        %v2010 = vshrl.u32 %v2009, 7
        %v2011 = vsub.s32 0, %v2010
        %v2012 = vrot.slane %v1871, %v2011
        %v2013 = vlaneseq
        %v2014 = vshrl.u32 %v2013, 7
        %v2015 = vsub.s32 0, %v2014
        %v2016 = vrot.slane %v1873, %v2015
        %v2017 = vlaneseq
        %v2018 = vshrl.u32 %v2017, 7
        %v2019 = vsub.s32 0, %v2018
        %v2020 = vrot.slane %v1875, %v2019
        %v2021 = vlaneseq
        %v2022 = vshrl.u32 %v2021, 7
        %v2023 = vsub.s32 0, %v2022
        %v2024 = vrot.slane %v1899, %v2023
        %v2025 = vlaneseq
        %v2026 = vshrl.u32 %v2025, 7
        %v2027 = vsub.s32 0, %v2026
        %v2028 = vrot.slane %v1913, %v2027
        %v2029 = vlaneseq
        %v2030 = vshrl.u32 %v2029, 7
        %v2031 = vsub.s32 0, %v2030
        %v2032 = vrot.slane %v1921, %v2031
        %v2033 = vlaneseq
        %v2034 = vshrl.u32 %v2033, 7
        %v2035 = vsub.s32 0, %v2034
        %v2036 = vrot.slane %v1923, %v2035
        %v2037 = vlaneseq
        %v2038 = vshrl.u32 %v2037, 7
        %v2039 = vsub.s32 0, %v2038
        %v2040 = vrot.slane %v1906, %v2039
        %v2041 = vlaneseq
        %v2042 = vshrl.u32 %v2041, 7
        %v2043 = vsub.s32 0, %v2042
        %v2044 = vrot.slane %v1920, %v2043
        %v2045 = vlaneseq
        %v2046 = vshrl.u32 %v2045, 7
        %v2047 = vsub.s32 0, %v2046
        %v2048 = vrot.slane %v1922, %v2047
        %v2049 = vlaneseq
        %v2050 = vshrl.u32 %v2049, 7
        %v2051 = vsub.s32 0, %v2050
        %v2052 = vrot.slane %v1924, %v2051
        %v2085 = vadd.f32 %v979, %v1928
        %v2086 = vadd.f32 %v982, %v1932
        %v2087 = vadd.f32 %v987, %v1936
        %v2088 = vadd.f32 %v990, %v1940
        %v2089 = vadd.f32 %v995, %v1944
        %v2090 = vadd.f32 %v998, %v1948
        %v2091 = vadd.f32 %v1003, %v1952
        %v2092 = vadd.f32 %v1006, %v1956
        %v2093 = vadd.f32 %v1011, %v1960
        %v2094 = vadd.f32 %v1014, %v1964
        %v2095 = vadd.f32 %v1019, %v1968
        %v2096 = vadd.f32 %v1022, %v1972
        %v2097 = vadd.f32 %v1027, %v1976
        %v2098 = vadd.f32 %v1030, %v1980
        %v2099 = vadd.f32 %v1035, %v1984
        %v2100 = vadd.f32 %v1038, %v1988
        %v2101 = vadd.f32 %v1043, %v1992
        %v2102 = vadd.f32 %v1046, %v1996
        %v2103 = vadd.f32 %v1051, %v2000
        %v2104 = vadd.f32 %v1054, %v2004
        %v2105 = vadd.f32 %v1059, %v2008
        %v2106 = vadd.f32 %v1062, %v2012
        %v2107 = vadd.f32 %v1067, %v2016
        %v2108 = vadd.f32 %v1070, %v2020
        %v2109 = vadd.f32 %v1075, %v2024
        %v2110 = vadd.f32 %v1078, %v2028
        %v2111 = vadd.f32 %v1083, %v2032
        %v2112 = vadd.f32 %v1086, %v2036
        %v2113 = vadd.f32 %v1091, %v2040
        %v2114 = vadd.f32 %v1094, %v2044
        %v2115 = vadd.f32 %v1099, %v2048
        %v2116 = vadd.f32 %v1102, %v2052
        %v2117 = vlaneseq
        %v2118 = vshrl.u32 %v2117, 7
        %v2119 = vsub.s32 0, %v2118
        %v2120 = vrot.slane %v484, %v2119
        %v2121 = vmul.f32 %v1532, %v2120
        %v2122 = vmul.f32 %v1535, %v2120
        %v2123 = vmul.f32 %v1538, %v2120
        %v2124 = vmul.f32 %v1541, %v2120
        %v2125 = vmul.f32 %v1544, %v2120
        %v2126 = vmul.f32 %v1547, %v2120
        %v2127 = vmul.f32 %v1550, %v2120
        %v2128 = vmul.f32 %v1553, %v2120
        %v2129 = vmul.f32 %v1556, %v2120
        %v2130 = vmul.f32 %v1559, %v2120
        %v2131 = vmul.f32 %v1562, %v2120
        %v2132 = vmul.f32 %v1565, %v2120
        %v2133 = vmul.f32 %v1568, %v2120
        %v2134 = vmul.f32 %v1571, %v2120
        %v2135 = vmul.f32 %v1574, %v2120
        %v2136 = vmul.f32 %v1577, %v2120
        %v2137 = vmul.f32 %v1580, %v2120
        %v2138 = vmul.f32 %v1583, %v2120
        %v2139 = vmul.f32 %v1586, %v2120
        %v2140 = vmul.f32 %v1589, %v2120
        %v2141 = vmul.f32 %v1592, %v2120
        %v2142 = vmul.f32 %v1595, %v2120
        %v2143 = vmul.f32 %v1598, %v2120
        %v2144 = vmul.f32 %v1601, %v2120
        %v2145 = vmul.f32 %v1604, %v2120
        %v2146 = vmul.f32 %v1607, %v2120
        %v2147 = vmul.f32 %v1610, %v2120
        %v2148 = vmul.f32 %v1613, %v2120
        %v2149 = vmul.f32 %v1616, %v2120
        %v2150 = vmul.f32 %v1619, %v2120
        %v2151 = vmul.f32 %v1622, %v2120
        %v2152 = vmul.f32 %v1625, %v2120
        %v2153 = vadd.f32 %v2085, %v2121
        %v2154 = vadd.f32 %v2086, %v2122
        %v2155 = vadd.f32 %v2087, %v2123
        %v2156 = vadd.f32 %v2088, %v2124
        %v2157 = vadd.f32 %v2089, %v2125
        %v2158 = vadd.f32 %v2090, %v2126
        %v2159 = vadd.f32 %v2091, %v2127
        %v2160 = vadd.f32 %v2092, %v2128
        %v2161 = vadd.f32 %v2093, %v2129
        %v2162 = vadd.f32 %v2094, %v2130
        %v2163 = vadd.f32 %v2095, %v2131
        %v2164 = vadd.f32 %v2096, %v2132
        %v2165 = vadd.f32 %v2097, %v2133
        %v2166 = vadd.f32 %v2098, %v2134
        %v2167 = vadd.f32 %v2099, %v2135
        %v2168 = vadd.f32 %v2100, %v2136
        %v2169 = vadd.f32 %v2101, %v2137
        %v2170 = vadd.f32 %v2102, %v2138
        %v2171 = vadd.f32 %v2103, %v2139
        %v2172 = vadd.f32 %v2104, %v2140
        %v2173 = vadd.f32 %v2105, %v2141
        %v2174 = vadd.f32 %v2106, %v2142
        %v2175 = vadd.f32 %v2107, %v2143
        %v2176 = vadd.f32 %v2108, %v2144
        %v2177 = vadd.f32 %v2109, %v2145
        %v2178 = vadd.f32 %v2110, %v2146
        %v2179 = vadd.f32 %v2111, %v2147
        %v2180 = vadd.f32 %v2112, %v2148
        %v2181 = vadd.f32 %v2113, %v2149
        %v2182 = vadd.f32 %v2114, %v2150
        %v2183 = vadd.f32 %v2115, %v2151
        %v2184 = vadd.f32 %v2116, %v2152
        %v2185 = vlaneseq
        %v2186 = vshrl.u32 %v2185, 7
        %v2187 = vsub.s32 1, %v2186
        %v2188 = vrot.slane %v484, %v2187
        %v2189 = vadd.f32 %v2153, %v2188
        %v2190 = vadd.f32 %v2154, %v2188
        %v2191 = vadd.f32 %v2155, %v2188
        %v2192 = vadd.f32 %v2156, %v2188
        %v2193 = vadd.f32 %v2157, %v2188
        %v2194 = vadd.f32 %v2158, %v2188
        %v2195 = vadd.f32 %v2159, %v2188
        %v2196 = vadd.f32 %v2160, %v2188
        %v2197 = vadd.f32 %v2161, %v2188
        %v2198 = vadd.f32 %v2162, %v2188
        %v2199 = vadd.f32 %v2163, %v2188
        %v2200 = vadd.f32 %v2164, %v2188
        %v2201 = vadd.f32 %v2165, %v2188
        %v2202 = vadd.f32 %v2166, %v2188
        %v2203 = vadd.f32 %v2167, %v2188
        %v2204 = vadd.f32 %v2168, %v2188
        %v2205 = vadd.f32 %v2169, %v2188
        %v2206 = vadd.f32 %v2170, %v2188
        %v2207 = vadd.f32 %v2171, %v2188
        %v2208 = vadd.f32 %v2172, %v2188
        %v2209 = vadd.f32 %v2173, %v2188
        %v2210 = vadd.f32 %v2174, %v2188
        %v2211 = vadd.f32 %v2175, %v2188
        %v2212 = vadd.f32 %v2176, %v2188
        %v2213 = vadd.f32 %v2177, %v2188
        %v2214 = vadd.f32 %v2178, %v2188
        %v2215 = vadd.f32 %v2179, %v2188
        %v2216 = vadd.f32 %v2180, %v2188
        %v2217 = vadd.f32 %v2181, %v2188
        %v2218 = vadd.f32 %v2182, %v2188
        %v2219 = vadd.f32 %v2183, %v2188
        %v2220 = vadd.f32 %v2184, %v2188
        %v2221 = vxor.u32 %v2189, 2147483648
        %v2222 = vxor.u32 %v2190, 2147483648
        %v2223 = vxor.u32 %v2191, 2147483648
        %v2224 = vxor.u32 %v2192, 2147483648
        %v2225 = vxor.u32 %v2193, 2147483648
        %v2226 = vxor.u32 %v2194, 2147483648
        %v2227 = vxor.u32 %v2195, 2147483648
        %v2228 = vxor.u32 %v2196, 2147483648
        %v2229 = vxor.u32 %v2197, 2147483648
        %v2230 = vxor.u32 %v2198, 2147483648
        %v2231 = vxor.u32 %v2199, 2147483648
        %v2232 = vxor.u32 %v2200, 2147483648
        %v2233 = vxor.u32 %v2201, 2147483648
        %v2234 = vxor.u32 %v2202, 2147483648
        %v2235 = vxor.u32 %v2203, 2147483648
        %v2236 = vxor.u32 %v2204, 2147483648
        %v2237 = vxor.u32 %v2205, 2147483648
        %v2238 = vxor.u32 %v2206, 2147483648
        %v2239 = vxor.u32 %v2207, 2147483648
        %v2240 = vxor.u32 %v2208, 2147483648
        %v2241 = vxor.u32 %v2209, 2147483648
        %v2242 = vxor.u32 %v2210, 2147483648
        %v2243 = vxor.u32 %v2211, 2147483648
        %v2244 = vxor.u32 %v2212, 2147483648
        %v2245 = vxor.u32 %v2213, 2147483648
        %v2246 = vxor.u32 %v2214, 2147483648
        %v2247 = vxor.u32 %v2215, 2147483648
        %v2248 = vxor.u32 %v2216, 2147483648
        %v2249 = vxor.u32 %v2217, 2147483648
        %v2250 = vxor.u32 %v2218, 2147483648
        %v2251 = vxor.u32 %v2219, 2147483648
        %v2252 = vxor.u32 %v2220, 2147483648
        %v2253 = vmul.f32 %v2221, 1.442695
        %v2254 = vpow.pop %v2253
        %v2255 = vmul.f32 %v2222, 1.442695
        %v2256 = vpow.pop %v2255
        %v2257 = vmul.f32 %v2223, 1.442695
        %v2258 = vpow.pop %v2257
        %v2259 = vmul.f32 %v2224, 1.442695
        %v2260 = vpow.pop %v2259
        %v2261 = vmul.f32 %v2225, 1.442695
        %v2262 = vpow.pop %v2261
        %v2263 = vmul.f32 %v2226, 1.442695
        %v2264 = vpow.pop %v2263
        %v2265 = vmul.f32 %v2227, 1.442695
        %v2266 = vpow.pop %v2265
        %v2267 = vmul.f32 %v2228, 1.442695
        %v2268 = vpow.pop %v2267
        %v2269 = vmul.f32 %v2229, 1.442695
        %v2270 = vpow.pop %v2269
        %v2271 = vmul.f32 %v2230, 1.442695
        %v2272 = vpow.pop %v2271
        %v2273 = vmul.f32 %v2231, 1.442695
        %v2274 = vpow.pop %v2273
        %v2275 = vmul.f32 %v2232, 1.442695
        %v2276 = vpow.pop %v2275
        %v2277 = vmul.f32 %v2233, 1.442695
        %v2278 = vpow.pop %v2277
        %v2279 = vmul.f32 %v2234, 1.442695
        %v2280 = vpow.pop %v2279
        %v2281 = vmul.f32 %v2235, 1.442695
        %v2282 = vpow.pop %v2281
        %v2283 = vmul.f32 %v2236, 1.442695
        %v2284 = vpow.pop %v2283
        %v2285 = vmul.f32 %v2237, 1.442695
        %v2286 = vpow.pop %v2285
        %v2287 = vmul.f32 %v2238, 1.442695
        %v2288 = vpow.pop %v2287
        %v2289 = vmul.f32 %v2239, 1.442695
        %v2290 = vpow.pop %v2289
        %v2291 = vmul.f32 %v2240, 1.442695
        %v2292 = vpow.pop %v2291
        %v2293 = vmul.f32 %v2241, 1.442695
        %v2294 = vpow.pop %v2293
        %v2295 = vmul.f32 %v2242, 1.442695
        %v2296 = vpow.pop %v2295
        %v2297 = vmul.f32 %v2243, 1.442695
        %v2298 = vpow.pop %v2297
        %v2299 = vmul.f32 %v2244, 1.442695
        %v2300 = vpow.pop %v2299
        %v2301 = vmul.f32 %v2245, 1.442695
        %v2302 = vpow.pop %v2301
        %v2303 = vmul.f32 %v2246, 1.442695
        %v2304 = vpow.pop %v2303
        %v2305 = vmul.f32 %v2247, 1.442695
        %v2306 = vpow.pop %v2305
        %v2307 = vmul.f32 %v2248, 1.442695
        %v2308 = vpow.pop %v2307
        %v2309 = vmul.f32 %v2249, 1.442695
        %v2310 = vpow.pop %v2309
        %v2311 = vmul.f32 %v2250, 1.442695
        %v2312 = vpow.pop %v2311
        %v2313 = vmul.f32 %v2251, 1.442695
        %v2314 = vpow.pop %v2313
        %v2315 = vmul.f32 %v2252, 1.442695
        %v2316 = vpow.pop %v2315
        %v2317 = vadd.f32 %v2254, 1.0
        %v2318 = vadd.f32 %v2256, 1.0
        %v2319 = vadd.f32 %v2258, 1.0
        %v2320 = vadd.f32 %v2260, 1.0
        %v2321 = vadd.f32 %v2262, 1.0
        %v2322 = vadd.f32 %v2264, 1.0
        %v2323 = vadd.f32 %v2266, 1.0
        %v2324 = vadd.f32 %v2268, 1.0
        %v2325 = vadd.f32 %v2270, 1.0
        %v2326 = vadd.f32 %v2272, 1.0
        %v2327 = vadd.f32 %v2274, 1.0
        %v2328 = vadd.f32 %v2276, 1.0
        %v2329 = vadd.f32 %v2278, 1.0
        %v2330 = vadd.f32 %v2280, 1.0
        %v2331 = vadd.f32 %v2282, 1.0
        %v2332 = vadd.f32 %v2284, 1.0
        %v2333 = vadd.f32 %v2286, 1.0
        %v2334 = vadd.f32 %v2288, 1.0
        %v2335 = vadd.f32 %v2290, 1.0
        %v2336 = vadd.f32 %v2292, 1.0
        %v2337 = vadd.f32 %v2294, 1.0
        %v2338 = vadd.f32 %v2296, 1.0
        %v2339 = vadd.f32 %v2298, 1.0
        %v2340 = vadd.f32 %v2300, 1.0
        %v2341 = vadd.f32 %v2302, 1.0
        %v2342 = vadd.f32 %v2304, 1.0
        %v2343 = vadd.f32 %v2306, 1.0
        %v2344 = vadd.f32 %v2308, 1.0
        %v2345 = vadd.f32 %v2310, 1.0
        %v2346 = vadd.f32 %v2312, 1.0
        %v2347 = vadd.f32 %v2314, 1.0
        %v2348 = vadd.f32 %v2316, 1.0
        %v2349 = vrcp.pop %v2317
        %v2350 = vmul.f32 1.0, %v2349
        %v2351 = vrcp.pop %v2318
        %v2352 = vmul.f32 1.0, %v2351
        %v2353 = vrcp.pop %v2319
        %v2354 = vmul.f32 1.0, %v2353
        %v2355 = vrcp.pop %v2320
        %v2356 = vmul.f32 1.0, %v2355
        %v2357 = vrcp.pop %v2321
        %v2358 = vmul.f32 1.0, %v2357
        %v2359 = vrcp.pop %v2322
        %v2360 = vmul.f32 1.0, %v2359
        %v2361 = vrcp.pop %v2323
        %v2362 = vmul.f32 1.0, %v2361
        %v2363 = vrcp.pop %v2324
        %v2364 = vmul.f32 1.0, %v2363
        %v2365 = vrcp.pop %v2325
        %v2366 = vmul.f32 1.0, %v2365
        %v2367 = vrcp.pop %v2326
        %v2368 = vmul.f32 1.0, %v2367
        %v2369 = vrcp.pop %v2327
        %v2370 = vmul.f32 1.0, %v2369
        %v2371 = vrcp.pop %v2328
        %v2372 = vmul.f32 1.0, %v2371
        %v2373 = vrcp.pop %v2329
        %v2374 = vmul.f32 1.0, %v2373
        %v2375 = vrcp.pop %v2330
        %v2376 = vmul.f32 1.0, %v2375
        %v2377 = vrcp.pop %v2331
        %v2378 = vmul.f32 1.0, %v2377
        %v2379 = vrcp.pop %v2332
        %v2380 = vmul.f32 1.0, %v2379
        %v2381 = vrcp.pop %v2333
        %v2382 = vmul.f32 1.0, %v2381
        %v2383 = vrcp.pop %v2334
        %v2384 = vmul.f32 1.0, %v2383
        %v2385 = vrcp.pop %v2335
        %v2386 = vmul.f32 1.0, %v2385
        %v2387 = vrcp.pop %v2336
        %v2388 = vmul.f32 1.0, %v2387
        %v2389 = vrcp.pop %v2337
        %v2390 = vmul.f32 1.0, %v2389
        %v2391 = vrcp.pop %v2338
        %v2392 = vmul.f32 1.0, %v2391
        %v2393 = vrcp.pop %v2339
        %v2394 = vmul.f32 1.0, %v2393
        %v2395 = vrcp.pop %v2340
        %v2396 = vmul.f32 1.0, %v2395
        %v2397 = vrcp.pop %v2341
        %v2398 = vmul.f32 1.0, %v2397
        %v2399 = vrcp.pop %v2342
        %v2400 = vmul.f32 1.0, %v2399
        %v2401 = vrcp.pop %v2343
        %v2402 = vmul.f32 1.0, %v2401
        %v2403 = vrcp.pop %v2344
        %v2404 = vmul.f32 1.0, %v2403
        %v2405 = vrcp.pop %v2345
        %v2406 = vmul.f32 1.0, %v2405
        %v2407 = vrcp.pop %v2346
        %v2408 = vmul.f32 1.0, %v2407
        %v2409 = vrcp.pop %v2347
        %v2410 = vmul.f32 1.0, %v2409
        %v2411 = vrcp.pop %v2348
        %v2412 = vmul.f32 1.0, %v2411
        %v2413 = vmul.f32 %v2189, %v2350
        %v2414 = vmul.f32 %v2190, %v2352
        %v2415 = vmul.f32 %v2191, %v2354
        %v2416 = vmul.f32 %v2192, %v2356
        %v2417 = vmul.f32 %v2193, %v2358
        %v2418 = vmul.f32 %v2194, %v2360
        %v2419 = vmul.f32 %v2195, %v2362
        %v2420 = vmul.f32 %v2196, %v2364
        %v2421 = vmul.f32 %v2197, %v2366
        %v2422 = vmul.f32 %v2198, %v2368
        %v2423 = vmul.f32 %v2199, %v2370
        %v2424 = vmul.f32 %v2200, %v2372
        %v2425 = vmul.f32 %v2201, %v2374
        %v2426 = vmul.f32 %v2202, %v2376
        %v2427 = vmul.f32 %v2203, %v2378
        %v2428 = vmul.f32 %v2204, %v2380
        %v2429 = vmul.f32 %v2205, %v2382
        %v2430 = vmul.f32 %v2206, %v2384
        %v2431 = vmul.f32 %v2207, %v2386
        %v2432 = vmul.f32 %v2208, %v2388
        %v2433 = vmul.f32 %v2209, %v2390
        %v2434 = vmul.f32 %v2210, %v2392
        %v2435 = vmul.f32 %v2211, %v2394
        %v2436 = vmul.f32 %v2212, %v2396
        %v2437 = vmul.f32 %v2213, %v2398
        %v2438 = vmul.f32 %v2214, %v2400
        %v2439 = vmul.f32 %v2215, %v2402
        %v2440 = vmul.f32 %v2216, %v2404
        %v2441 = vmul.f32 %v2217, %v2406
        %v2442 = vmul.f32 %v2218, %v2408
        %v2443 = vmul.f32 %v2219, %v2410
        %v2444 = vmul.f32 %v2220, %v2412
        %v2445 = vpack.c.bf16 %v2414, %v2413
        %v2446 = vpack.c.bf16 %v2416, %v2415
        %v2447 = vpack.c.bf16 %v2418, %v2417
        %v2448 = vpack.c.bf16 %v2420, %v2419
        %v2449 = vpack.c.bf16 %v2422, %v2421
        %v2450 = vpack.c.bf16 %v2424, %v2423
        %v2451 = vpack.c.bf16 %v2426, %v2425
        %v2452 = vpack.c.bf16 %v2428, %v2427
        %v2453 = vpack.c.bf16 %v2430, %v2429
        %v2454 = vpack.c.bf16 %v2432, %v2431
        %v2455 = vpack.c.bf16 %v2434, %v2433
        %v2456 = vpack.c.bf16 %v2436, %v2435
        %v2457 = vpack.c.bf16 %v2438, %v2437
        %v2458 = vpack.c.bf16 %v2440, %v2439
        %v2459 = vpack.c.bf16 %v2442, %v2441
        %v2460 = vpack.c.bf16 %v2444, %v2443
        %v2461 = vlaneseq
        %v2462 = vshrl.u32 %v2461, 7
        %v2463 = vsub.s32 2, %v2462
        %v2464 = vrot.slane %v484, %v2463
        %v2481 = vunpack.c.l.b16 %v404
        %v2482 = vunpack.c.l.b16 %v405
        %v2483 = vunpack.c.l.b16 %v406
        %v2484 = vunpack.c.l.b16 %v407
        %v2485 = vunpack.c.l.b16 %v408
        %v2486 = vunpack.c.l.b16 %v409
        %v2487 = vunpack.c.l.b16 %v410
        %v2488 = vunpack.c.l.b16 %v411
        %v2489 = vunpack.c.l.b16 %v412
        %v2490 = vunpack.c.l.b16 %v413
        %v2491 = vunpack.c.l.b16 %v414
        %v2492 = vunpack.c.l.b16 %v415
        %v2493 = vunpack.c.l.b16 %v416
        %v2494 = vunpack.c.l.b16 %v417
        %v2495 = vunpack.c.l.b16 %v418
        %v2496 = vunpack.c.l.b16 %v419
        %v2497 = vpack.c.b16 %v2482, %v2481
        %v2498 = vpack.c.b16 %v2484, %v2483
        %v2499 = vpack.c.b16 %v2486, %v2485
        %v2500 = vpack.c.b16 %v2488, %v2487
        %v2501 = vpack.c.b16 %v2490, %v2489
        %v2502 = vpack.c.b16 %v2492, %v2491
        %v2503 = vpack.c.b16 %v2494, %v2493
        %v2504 = vpack.c.b16 %v2496, %v2495
        %2513 = vmatprep.subr.bf16.mxu0 0
        %2514 = vmatpush1.bf16.msra.mxu0 %v2497
        %2515 = vmatprep.subr.bf16.mxu0 0
        %2516 = vmatpush1.bf16.msra.mxu0 %v2498
        %2517 = vmatprep.subr.bf16.mxu0 0
        %2518 = vmatpush1.bf16.msra.mxu0 %v2499
        %2519 = vmatprep.subr.bf16.mxu0 0
        %2520 = vmatpush1.bf16.msra.mxu0 %v2500
        %2521 = vmatprep.subr.bf16.mxu0 0
        %2522 = vmatpush1.bf16.msra.mxu0 %v2501
        %2523 = vmatprep.subr.bf16.mxu0 0
        %2524 = vmatpush1.bf16.msra.mxu0 %v2502
        %2525 = vmatprep.subr.bf16.mxu0 0
        %2526 = vmatpush1.bf16.msra.mxu0 %v2503
        %2527 = vmatprep.subr.bf16.mxu0 0
        %2528 = vmatpush1.bf16.msra.mxu0 %v2504
        %2529 = vmatprep.subr.bf16.mxu0 0
        %2530 = vmatpush1.bf16.msra.mxu0 0
        %2531 = vmatprep.subr.bf16.mxu0 0
        %2532 = vmatpush1.bf16.msra.mxu0 0
        %2533 = vmatprep.subr.bf16.mxu0 0
        %2534 = vmatpush1.bf16.msra.mxu0 0
        %2535 = vmatprep.subr.bf16.mxu0 0
        %2536 = vmatpush1.bf16.msra.mxu0 0
        %2537 = vmatprep.subr.bf16.mxu0 0
        %2538 = vmatpush1.bf16.msra.mxu0 0
        %2539 = vmatprep.subr.bf16.mxu0 0
        %2540 = vmatpush1.bf16.msra.mxu0 0
        %2541 = vmatprep.subr.bf16.mxu0 0
        %2542 = vmatpush1.bf16.msra.mxu0 0
        %2543 = vmatprep.subr.bf16.mxu0 0
        %2544 = vmatpush1.bf16.msra.mxu0 0
        %2545 = vmatprep.mubr.bf16.mxu0 0
        %2546 = vmatmul.mubr.bf16.gmra.mrb[0].mxu0 %v2445
        %v2547 = vpop.f32.mrb[0].mxu0
        %v2548 = vadd.f32 %v2464, %v2547
        %v2549 = vpop.f32.mrb[0].mxu0
        %v2550 = vpop.f32.mrb[0].mxu0
        %v2551 = vadd.f32 %v2464, %v2550
        %v2552 = vpop.f32.mrb[0].mxu0
        %2553 = vmatprep.mubr.bf16.mxu0 0
        %2554 = vmatmul.mubr.bf16.gmra.mrb[0].mxu0 %v2446
        %v2555 = vpop.f32.mrb[0].mxu0
        %v2556 = vadd.f32 %v2464, %v2555
        %v2557 = vpop.f32.mrb[0].mxu0
        %v2558 = vpop.f32.mrb[0].mxu0
        %v2559 = vadd.f32 %v2464, %v2558
        %v2560 = vpop.f32.mrb[0].mxu0
        %2561 = vmatprep.mubr.bf16.mxu0 0
        %2562 = vmatmul.mubr.bf16.gmra.mrb[0].mxu0 %v2447
        %v2563 = vpop.f32.mrb[0].mxu0
        %v2564 = vadd.f32 %v2464, %v2563
        %v2565 = vpop.f32.mrb[0].mxu0
        %v2566 = vpop.f32.mrb[0].mxu0
        %v2567 = vadd.f32 %v2464, %v2566
        %v2568 = vpop.f32.mrb[0].mxu0
        %2569 = vmatprep.mubr.bf16.mxu0 0
        %2570 = vmatmul.mubr.bf16.gmra.mrb[0].mxu0 %v2448
        %v2571 = vpop.f32.mrb[0].mxu0
        %v2572 = vadd.f32 %v2464, %v2571
        %v2573 = vpop.f32.mrb[0].mxu0
        %v2574 = vpop.f32.mrb[0].mxu0
        %v2575 = vadd.f32 %v2464, %v2574
        %v2576 = vpop.f32.mrb[0].mxu0
        %2577 = vmatprep.mubr.bf16.mxu0 0
        %2578 = vmatmul.mubr.bf16.gmra.mrb[0].mxu0 %v2449
        %v2579 = vpop.f32.mrb[0].mxu0
        %v2580 = vadd.f32 %v2464, %v2579
        %v2581 = vpop.f32.mrb[0].mxu0
        %v2582 = vpop.f32.mrb[0].mxu0
        %v2583 = vadd.f32 %v2464, %v2582
        %v2584 = vpop.f32.mrb[0].mxu0
        %2585 = vmatprep.mubr.bf16.mxu0 0
        %2586 = vmatmul.mubr.bf16.gmra.mrb[0].mxu0 %v2450
        %v2587 = vpop.f32.mrb[0].mxu0
        %v2588 = vadd.f32 %v2464, %v2587
        %v2589 = vpop.f32.mrb[0].mxu0
        %v2590 = vpop.f32.mrb[0].mxu0
        %v2591 = vadd.f32 %v2464, %v2590
        %v2592 = vpop.f32.mrb[0].mxu0
        %2593 = vmatprep.mubr.bf16.mxu0 0
        %2594 = vmatmul.mubr.bf16.gmra.mrb[0].mxu0 %v2451
        %v2595 = vpop.f32.mrb[0].mxu0
        %v2596 = vadd.f32 %v2464, %v2595
        %v2597 = vpop.f32.mrb[0].mxu0
        %v2598 = vpop.f32.mrb[0].mxu0
        %v2599 = vadd.f32 %v2464, %v2598
        %v2600 = vpop.f32.mrb[0].mxu0
        %2601 = vmatprep.mubr.bf16.mxu0 0
        %2602 = vmatmul.mubr.bf16.gmra.mrb[0].mxu0 %v2452
        %v2603 = vpop.f32.mrb[0].mxu0
        %v2604 = vadd.f32 %v2464, %v2603
        %v2605 = vpop.f32.mrb[0].mxu0
        %v2606 = vpop.f32.mrb[0].mxu0
        %v2607 = vadd.f32 %v2464, %v2606
        %v2608 = vpop.f32.mrb[0].mxu0
        %2609 = vmatprep.mubr.bf16.mxu0 0
        %2610 = vmatmul.mubr.bf16.gmra.mrb[0].mxu0 %v2453
        %v2611 = vpop.f32.mrb[0].mxu0
        %v2612 = vadd.f32 %v2464, %v2611
        %v2613 = vpop.f32.mrb[0].mxu0
        %v2614 = vpop.f32.mrb[0].mxu0
        %v2615 = vadd.f32 %v2464, %v2614
        %v2616 = vpop.f32.mrb[0].mxu0
        %2617 = vmatprep.mubr.bf16.mxu0 0
        %2618 = vmatmul.mubr.bf16.gmra.mrb[0].mxu0 %v2454
        %v2619 = vpop.f32.mrb[0].mxu0
        %v2620 = vadd.f32 %v2464, %v2619
        %v2621 = vpop.f32.mrb[0].mxu0
        %v2622 = vpop.f32.mrb[0].mxu0
        %v2623 = vadd.f32 %v2464, %v2622
        %v2624 = vpop.f32.mrb[0].mxu0
        %2625 = vmatprep.mubr.bf16.mxu0 0
        %2626 = vmatmul.mubr.bf16.gmra.mrb[0].mxu0 %v2455
        %v2627 = vpop.f32.mrb[0].mxu0
        %v2628 = vadd.f32 %v2464, %v2627
        %v2629 = vpop.f32.mrb[0].mxu0
        %v2630 = vpop.f32.mrb[0].mxu0
        %v2631 = vadd.f32 %v2464, %v2630
        %v2632 = vpop.f32.mrb[0].mxu0
        %2633 = vmatprep.mubr.bf16.mxu0 0
        %2634 = vmatmul.mubr.bf16.gmra.mrb[0].mxu0 %v2456
        %v2635 = vpop.f32.mrb[0].mxu0
        %v2636 = vadd.f32 %v2464, %v2635
        %v2637 = vpop.f32.mrb[0].mxu0
        %v2638 = vpop.f32.mrb[0].mxu0
        %v2639 = vadd.f32 %v2464, %v2638
        %v2640 = vpop.f32.mrb[0].mxu0
        %2641 = vmatprep.mubr.bf16.mxu0 0
        %2642 = vmatmul.mubr.bf16.gmra.mrb[0].mxu0 %v2457
        %v2643 = vpop.f32.mrb[0].mxu0
        %v2644 = vadd.f32 %v2464, %v2643
        %v2645 = vpop.f32.mrb[0].mxu0
        %v2646 = vpop.f32.mrb[0].mxu0
        %v2647 = vadd.f32 %v2464, %v2646
        %v2648 = vpop.f32.mrb[0].mxu0
        %2649 = vmatprep.mubr.bf16.mxu0 0
        %2650 = vmatmul.mubr.bf16.gmra.mrb[0].mxu0 %v2458
        %v2651 = vpop.f32.mrb[0].mxu0
        %v2652 = vadd.f32 %v2464, %v2651
        %v2653 = vpop.f32.mrb[0].mxu0
        %v2654 = vpop.f32.mrb[0].mxu0
        %v2655 = vadd.f32 %v2464, %v2654
        %v2656 = vpop.f32.mrb[0].mxu0
        %2657 = vmatprep.mubr.bf16.mxu0 0
        %2658 = vmatmul.mubr.bf16.gmra.mrb[0].mxu0 %v2459
        %v2659 = vpop.f32.mrb[0].mxu0
        %v2660 = vadd.f32 %v2464, %v2659
        %v2661 = vpop.f32.mrb[0].mxu0
        %v2662 = vpop.f32.mrb[0].mxu0
        %v2663 = vadd.f32 %v2464, %v2662
        %v2664 = vpop.f32.mrb[0].mxu0
        %2665 = vmatprep.mubr.bf16.mxu0 0
        %2666 = vmatmul.mubr.bf16.gmra.mrb[0].mxu0 %v2460
        %v2667 = vpop.f32.mrb[0].mxu0
        %v2668 = vadd.f32 %v2464, %v2667
        %v2669 = vpop.f32.mrb[0].mxu0
        %v2670 = vpop.f32.mrb[0].mxu0
        %v2671 = vadd.f32 %v2464, %v2670
        %v2672 = vpop.f32.mrb[0].mxu0
        %2673 = vdwg.mxu0
        %v2674 = vxor.u32 %v2548, 2147483648
        %v2675 = vxor.u32 %v2551, 2147483648
        %v2676 = vxor.u32 %v2556, 2147483648
        %v2677 = vxor.u32 %v2559, 2147483648
        %v2678 = vxor.u32 %v2564, 2147483648
        %v2679 = vxor.u32 %v2567, 2147483648
        %v2680 = vxor.u32 %v2572, 2147483648
        %v2681 = vxor.u32 %v2575, 2147483648
        %v2682 = vxor.u32 %v2580, 2147483648
        %v2683 = vxor.u32 %v2583, 2147483648
        %v2684 = vxor.u32 %v2588, 2147483648
        %v2685 = vxor.u32 %v2591, 2147483648
        %v2686 = vxor.u32 %v2596, 2147483648
        %v2687 = vxor.u32 %v2599, 2147483648
        %v2688 = vxor.u32 %v2604, 2147483648
        %v2689 = vxor.u32 %v2607, 2147483648
        %v2690 = vxor.u32 %v2612, 2147483648
        %v2691 = vxor.u32 %v2615, 2147483648
        %v2692 = vxor.u32 %v2620, 2147483648
        %v2693 = vxor.u32 %v2623, 2147483648
        %v2694 = vxor.u32 %v2628, 2147483648
        %v2695 = vxor.u32 %v2631, 2147483648
        %v2696 = vxor.u32 %v2636, 2147483648
        %v2697 = vxor.u32 %v2639, 2147483648
        %v2698 = vxor.u32 %v2644, 2147483648
        %v2699 = vxor.u32 %v2647, 2147483648
        %v2700 = vxor.u32 %v2652, 2147483648
        %v2701 = vxor.u32 %v2655, 2147483648
        %v2702 = vxor.u32 %v2660, 2147483648
        %v2703 = vxor.u32 %v2663, 2147483648
        %v2704 = vxor.u32 %v2668, 2147483648
        %v2705 = vxor.u32 %v2671, 2147483648
        %v2706 = vmul.f32 %v2674, 1.442695
        %v2707 = vpow.pop %v2706
        %v2708 = vmul.f32 %v2675, 1.442695
        %v2709 = vpow.pop %v2708
        %v2710 = vmul.f32 %v2676, 1.442695
        %v2711 = vpow.pop %v2710
        %v2712 = vmul.f32 %v2677, 1.442695
        %v2713 = vpow.pop %v2712
        %v2714 = vmul.f32 %v2678, 1.442695
        %v2715 = vpow.pop %v2714
        %v2716 = vmul.f32 %v2679, 1.442695
        %v2717 = vpow.pop %v2716
        %v2718 = vmul.f32 %v2680, 1.442695
        %v2719 = vpow.pop %v2718
        %v2720 = vmul.f32 %v2681, 1.442695
        %v2721 = vpow.pop %v2720
        %v2722 = vmul.f32 %v2682, 1.442695
        %v2723 = vpow.pop %v2722
        %v2724 = vmul.f32 %v2683, 1.442695
        %v2725 = vpow.pop %v2724
        %v2726 = vmul.f32 %v2684, 1.442695
        %v2727 = vpow.pop %v2726
        %v2728 = vmul.f32 %v2685, 1.442695
        %v2729 = vpow.pop %v2728
        %v2730 = vmul.f32 %v2686, 1.442695
        %v2731 = vpow.pop %v2730
        %v2732 = vmul.f32 %v2687, 1.442695
        %v2733 = vpow.pop %v2732
        %v2734 = vmul.f32 %v2688, 1.442695
        %v2735 = vpow.pop %v2734
        %v2736 = vmul.f32 %v2689, 1.442695
        %v2737 = vpow.pop %v2736
        %v2738 = vmul.f32 %v2690, 1.442695
        %v2739 = vpow.pop %v2738
        %v2740 = vmul.f32 %v2691, 1.442695
        %v2741 = vpow.pop %v2740
        %v2742 = vmul.f32 %v2692, 1.442695
        %v2743 = vpow.pop %v2742
        %v2744 = vmul.f32 %v2693, 1.442695
        %v2745 = vpow.pop %v2744
        %v2746 = vmul.f32 %v2694, 1.442695
        %v2747 = vpow.pop %v2746
        %v2748 = vmul.f32 %v2695, 1.442695
        %v2749 = vpow.pop %v2748
        %v2750 = vmul.f32 %v2696, 1.442695
        %v2751 = vpow.pop %v2750
        %v2752 = vmul.f32 %v2697, 1.442695
        %v2753 = vpow.pop %v2752
        %v2754 = vmul.f32 %v2698, 1.442695
        %v2755 = vpow.pop %v2754
        %v2756 = vmul.f32 %v2699, 1.442695
        %v2757 = vpow.pop %v2756
        %v2758 = vmul.f32 %v2700, 1.442695
        %v2759 = vpow.pop %v2758
        %v2760 = vmul.f32 %v2701, 1.442695
        %v2761 = vpow.pop %v2760
        %v2762 = vmul.f32 %v2702, 1.442695
        %v2763 = vpow.pop %v2762
        %v2764 = vmul.f32 %v2703, 1.442695
        %v2765 = vpow.pop %v2764
        %v2766 = vmul.f32 %v2704, 1.442695
        %v2767 = vpow.pop %v2766
        %v2768 = vmul.f32 %v2705, 1.442695
        %v2769 = vpow.pop %v2768
        %v2770 = vadd.f32 %v2707, 1.0
        %v2771 = vadd.f32 %v2709, 1.0
        %v2772 = vadd.f32 %v2711, 1.0
        %v2773 = vadd.f32 %v2713, 1.0
        %v2774 = vadd.f32 %v2715, 1.0
        %v2775 = vadd.f32 %v2717, 1.0
        %v2776 = vadd.f32 %v2719, 1.0
        %v2777 = vadd.f32 %v2721, 1.0
        %v2778 = vadd.f32 %v2723, 1.0
        %v2779 = vadd.f32 %v2725, 1.0
        %v2780 = vadd.f32 %v2727, 1.0
        %v2781 = vadd.f32 %v2729, 1.0
        %v2782 = vadd.f32 %v2731, 1.0
        %v2783 = vadd.f32 %v2733, 1.0
        %v2784 = vadd.f32 %v2735, 1.0
        %v2785 = vadd.f32 %v2737, 1.0
        %v2786 = vadd.f32 %v2739, 1.0
        %v2787 = vadd.f32 %v2741, 1.0
        %v2788 = vadd.f32 %v2743, 1.0
        %v2789 = vadd.f32 %v2745, 1.0
        %v2790 = vadd.f32 %v2747, 1.0
        %v2791 = vadd.f32 %v2749, 1.0
        %v2792 = vadd.f32 %v2751, 1.0
        %v2793 = vadd.f32 %v2753, 1.0
        %v2794 = vadd.f32 %v2755, 1.0
        %v2795 = vadd.f32 %v2757, 1.0
        %v2796 = vadd.f32 %v2759, 1.0
        %v2797 = vadd.f32 %v2761, 1.0
        %v2798 = vadd.f32 %v2763, 1.0
        %v2799 = vadd.f32 %v2765, 1.0
        %v2800 = vadd.f32 %v2767, 1.0
        %v2801 = vadd.f32 %v2769, 1.0
        %v2802 = vrcp.pop %v2770
        %v2803 = vmul.f32 1.0, %v2802
        %v2804 = vrcp.pop %v2771
        %v2805 = vmul.f32 1.0, %v2804
        %v2806 = vrcp.pop %v2772
        %v2807 = vmul.f32 1.0, %v2806
        %v2808 = vrcp.pop %v2773
        %v2809 = vmul.f32 1.0, %v2808
        %v2810 = vrcp.pop %v2774
        %v2811 = vmul.f32 1.0, %v2810
        %v2812 = vrcp.pop %v2775
        %v2813 = vmul.f32 1.0, %v2812
        %v2814 = vrcp.pop %v2776
        %v2815 = vmul.f32 1.0, %v2814
        %v2816 = vrcp.pop %v2777
        %v2817 = vmul.f32 1.0, %v2816
        %v2818 = vrcp.pop %v2778
        %v2819 = vmul.f32 1.0, %v2818
        %v2820 = vrcp.pop %v2779
        %v2821 = vmul.f32 1.0, %v2820
        %v2822 = vrcp.pop %v2780
        %v2823 = vmul.f32 1.0, %v2822
        %v2824 = vrcp.pop %v2781
        %v2825 = vmul.f32 1.0, %v2824
        %v2826 = vrcp.pop %v2782
        %v2827 = vmul.f32 1.0, %v2826
        %v2828 = vrcp.pop %v2783
        %v2829 = vmul.f32 1.0, %v2828
        %v2830 = vrcp.pop %v2784
        %v2831 = vmul.f32 1.0, %v2830
        %v2832 = vrcp.pop %v2785
        %v2833 = vmul.f32 1.0, %v2832
        %v2834 = vrcp.pop %v2786
        %v2835 = vmul.f32 1.0, %v2834
        %v2836 = vrcp.pop %v2787
        %v2837 = vmul.f32 1.0, %v2836
        %v2838 = vrcp.pop %v2788
        %v2839 = vmul.f32 1.0, %v2838
        %v2840 = vrcp.pop %v2789
        %v2841 = vmul.f32 1.0, %v2840
        %v2842 = vrcp.pop %v2790
        %v2843 = vmul.f32 1.0, %v2842
        %v2844 = vrcp.pop %v2791
        %v2845 = vmul.f32 1.0, %v2844
        %v2846 = vrcp.pop %v2792
        %v2847 = vmul.f32 1.0, %v2846
        %v2848 = vrcp.pop %v2793
        %v2849 = vmul.f32 1.0, %v2848
        %v2850 = vrcp.pop %v2794
        %v2851 = vmul.f32 1.0, %v2850
        %v2852 = vrcp.pop %v2795
        %v2853 = vmul.f32 1.0, %v2852
        %v2854 = vrcp.pop %v2796
        %v2855 = vmul.f32 1.0, %v2854
        %v2856 = vrcp.pop %v2797
        %v2857 = vmul.f32 1.0, %v2856
        %v2858 = vrcp.pop %v2798
        %v2859 = vmul.f32 1.0, %v2858
        %v2860 = vrcp.pop %v2799
        %v2861 = vmul.f32 1.0, %v2860
        %v2862 = vrcp.pop %v2800
        %v2863 = vmul.f32 1.0, %v2862
        %v2864 = vrcp.pop %v2801
        %v2865 = vmul.f32 1.0, %v2864
        %v2866 = vmul.f32 %v2548, %v2803
        %v2867 = vmul.f32 %v2551, %v2805
        %v2868 = vmul.f32 %v2556, %v2807
        %v2869 = vmul.f32 %v2559, %v2809
        %v2870 = vmul.f32 %v2564, %v2811
        %v2871 = vmul.f32 %v2567, %v2813
        %v2872 = vmul.f32 %v2572, %v2815
        %v2873 = vmul.f32 %v2575, %v2817
        %v2874 = vmul.f32 %v2580, %v2819
        %v2875 = vmul.f32 %v2583, %v2821
        %v2876 = vmul.f32 %v2588, %v2823
        %v2877 = vmul.f32 %v2591, %v2825
        %v2878 = vmul.f32 %v2596, %v2827
        %v2879 = vmul.f32 %v2599, %v2829
        %v2880 = vmul.f32 %v2604, %v2831
        %v2881 = vmul.f32 %v2607, %v2833
        %v2882 = vmul.f32 %v2612, %v2835
        %v2883 = vmul.f32 %v2615, %v2837
        %v2884 = vmul.f32 %v2620, %v2839
        %v2885 = vmul.f32 %v2623, %v2841
        %v2886 = vmul.f32 %v2628, %v2843
        %v2887 = vmul.f32 %v2631, %v2845
        %v2888 = vmul.f32 %v2636, %v2847
        %v2889 = vmul.f32 %v2639, %v2849
        %v2890 = vmul.f32 %v2644, %v2851
        %v2891 = vmul.f32 %v2647, %v2853
        %v2892 = vmul.f32 %v2652, %v2855
        %v2893 = vmul.f32 %v2655, %v2857
        %v2894 = vmul.f32 %v2660, %v2859
        %v2895 = vmul.f32 %v2663, %v2861
        %v2896 = vmul.f32 %v2668, %v2863
        %v2897 = vmul.f32 %v2671, %v2865
        %v2898 = vpack.c.bf16 %v2867, %v2866
        %v2899 = vpack.c.bf16 %v2869, %v2868
        %v2900 = vpack.c.bf16 %v2871, %v2870
        %v2901 = vpack.c.bf16 %v2873, %v2872
        %v2902 = vpack.c.bf16 %v2875, %v2874
        %v2903 = vpack.c.bf16 %v2877, %v2876
        %v2904 = vpack.c.bf16 %v2879, %v2878
        %v2905 = vpack.c.bf16 %v2881, %v2880
        %v2906 = vpack.c.bf16 %v2883, %v2882
        %v2907 = vpack.c.bf16 %v2885, %v2884
        %v2908 = vpack.c.bf16 %v2887, %v2886
        %v2909 = vpack.c.bf16 %v2889, %v2888
        %v2910 = vpack.c.bf16 %v2891, %v2890
        %v2911 = vpack.c.bf16 %v2893, %v2892
        %v2912 = vpack.c.bf16 %v2895, %v2894
        %v2913 = vpack.c.bf16 %v2897, %v2896
        %v2914 = vlaneseq
        %v2915 = vshrl.u32 %v2914, 7
        %v2916 = vsub.s32 3, %v2915
        %v2917 = vrot.slane %v484, %v2916
        %v2934 = vunpack.c.l.b16 %v420
        %v2935 = vunpack.c.l.b16 %v421
        %v2936 = vunpack.c.l.b16 %v422
        %v2937 = vunpack.c.l.b16 %v423
        %v2938 = vunpack.c.l.b16 %v424
        %v2939 = vunpack.c.l.b16 %v425
        %v2940 = vunpack.c.l.b16 %v426
        %v2941 = vunpack.c.l.b16 %v427
        %v2942 = vunpack.c.l.b16 %v428
        %v2943 = vunpack.c.l.b16 %v429
        %v2944 = vunpack.c.l.b16 %v430
        %v2945 = vunpack.c.l.b16 %v431
        %v2946 = vunpack.c.l.b16 %v432
        %v2947 = vunpack.c.l.b16 %v433
        %v2948 = vunpack.c.l.b16 %v434
        %v2949 = vunpack.c.l.b16 %v435
        %v2950 = vpack.c.b16 %v2935, %v2934
        %v2951 = vpack.c.b16 %v2937, %v2936
        %v2952 = vpack.c.b16 %v2939, %v2938
        %v2953 = vpack.c.b16 %v2941, %v2940
        %v2954 = vpack.c.b16 %v2943, %v2942
        %v2955 = vpack.c.b16 %v2945, %v2944
        %v2956 = vpack.c.b16 %v2947, %v2946
        %v2957 = vpack.c.b16 %v2949, %v2948
        %2966 = vmatprep.subr.bf16.mxu0 0
        %2967 = vmatpush1.bf16.msra.mxu0 %v2950
        %2968 = vmatprep.subr.bf16.mxu0 0
        %2969 = vmatpush1.bf16.msra.mxu0 %v2951
        %2970 = vmatprep.subr.bf16.mxu0 0
        %2971 = vmatpush1.bf16.msra.mxu0 %v2952
        %2972 = vmatprep.subr.bf16.mxu0 0
        %2973 = vmatpush1.bf16.msra.mxu0 %v2953
        %2974 = vmatprep.subr.bf16.mxu0 0
        %2975 = vmatpush1.bf16.msra.mxu0 %v2954
        %2976 = vmatprep.subr.bf16.mxu0 0
        %2977 = vmatpush1.bf16.msra.mxu0 %v2955
        %2978 = vmatprep.subr.bf16.mxu0 0
        %2979 = vmatpush1.bf16.msra.mxu0 %v2956
        %2980 = vmatprep.subr.bf16.mxu0 0
        %2981 = vmatpush1.bf16.msra.mxu0 %v2957
        %2982 = vmatprep.subr.bf16.mxu0 0
        %2983 = vmatpush1.bf16.msra.mxu0 0
        %2984 = vmatprep.subr.bf16.mxu0 0
        %2985 = vmatpush1.bf16.msra.mxu0 0
        %2986 = vmatprep.subr.bf16.mxu0 0
        %2987 = vmatpush1.bf16.msra.mxu0 0
        %2988 = vmatprep.subr.bf16.mxu0 0
        %2989 = vmatpush1.bf16.msra.mxu0 0
        %2990 = vmatprep.subr.bf16.mxu0 0
        %2991 = vmatpush1.bf16.msra.mxu0 0
        %2992 = vmatprep.subr.bf16.mxu0 0
        %2993 = vmatpush1.bf16.msra.mxu0 0
        %2994 = vmatprep.subr.bf16.mxu0 0
        %2995 = vmatpush1.bf16.msra.mxu0 0
        %2996 = vmatprep.subr.bf16.mxu0 0
        %2997 = vmatpush1.bf16.msra.mxu0 0
        %2998 = vmatprep.mubr.bf16.mxu0 0
        %2999 = vmatmul.mubr.bf16.gmra.mrb[0].mxu0 %v2898
        %v3000 = vpop.f32.mrb[0].mxu0
        %v3001 = vadd.f32 %v2917, %v3000
        %v3002 = vpop.f32.mrb[0].mxu0
        %v3003 = vpop.f32.mrb[0].mxu0
        %v3004 = vadd.f32 %v2917, %v3003
        %v3005 = vpop.f32.mrb[0].mxu0
        %3006 = vmatprep.mubr.bf16.mxu0 0
        %3007 = vmatmul.mubr.bf16.gmra.mrb[0].mxu0 %v2899
        %v3008 = vpop.f32.mrb[0].mxu0
        %v3009 = vadd.f32 %v2917, %v3008
        %v3010 = vpop.f32.mrb[0].mxu0
        %v3011 = vpop.f32.mrb[0].mxu0
        %v3012 = vadd.f32 %v2917, %v3011
        %v3013 = vpop.f32.mrb[0].mxu0
        %3014 = vmatprep.mubr.bf16.mxu0 0
        %3015 = vmatmul.mubr.bf16.gmra.mrb[0].mxu0 %v2900
        %v3016 = vpop.f32.mrb[0].mxu0
        %v3017 = vadd.f32 %v2917, %v3016
        %v3018 = vpop.f32.mrb[0].mxu0
        %v3019 = vpop.f32.mrb[0].mxu0
        %v3020 = vadd.f32 %v2917, %v3019
        %v3021 = vpop.f32.mrb[0].mxu0
        %3022 = vmatprep.mubr.bf16.mxu0 0
        %3023 = vmatmul.mubr.bf16.gmra.mrb[0].mxu0 %v2901
        %v3024 = vpop.f32.mrb[0].mxu0
        %v3025 = vadd.f32 %v2917, %v3024
        %v3026 = vpop.f32.mrb[0].mxu0
        %v3027 = vpop.f32.mrb[0].mxu0
        %v3028 = vadd.f32 %v2917, %v3027
        %v3029 = vpop.f32.mrb[0].mxu0
        %3030 = vmatprep.mubr.bf16.mxu0 0
        %3031 = vmatmul.mubr.bf16.gmra.mrb[0].mxu0 %v2902
        %v3032 = vpop.f32.mrb[0].mxu0
        %v3033 = vadd.f32 %v2917, %v3032
        %v3034 = vpop.f32.mrb[0].mxu0
        %v3035 = vpop.f32.mrb[0].mxu0
        %v3036 = vadd.f32 %v2917, %v3035
        %v3037 = vpop.f32.mrb[0].mxu0
        %3038 = vmatprep.mubr.bf16.mxu0 0
        %3039 = vmatmul.mubr.bf16.gmra.mrb[0].mxu0 %v2903
        %v3040 = vpop.f32.mrb[0].mxu0
        %v3041 = vadd.f32 %v2917, %v3040
        %v3042 = vpop.f32.mrb[0].mxu0
        %v3043 = vpop.f32.mrb[0].mxu0
        %v3044 = vadd.f32 %v2917, %v3043
        %v3045 = vpop.f32.mrb[0].mxu0
        %3046 = vmatprep.mubr.bf16.mxu0 0
        %3047 = vmatmul.mubr.bf16.gmra.mrb[0].mxu0 %v2904
        %v3048 = vpop.f32.mrb[0].mxu0
        %v3049 = vadd.f32 %v2917, %v3048
        %v3050 = vpop.f32.mrb[0].mxu0
        %v3051 = vpop.f32.mrb[0].mxu0
        %v3052 = vadd.f32 %v2917, %v3051
        %v3053 = vpop.f32.mrb[0].mxu0
        %3054 = vmatprep.mubr.bf16.mxu0 0
        %3055 = vmatmul.mubr.bf16.gmra.mrb[0].mxu0 %v2905
        %v3056 = vpop.f32.mrb[0].mxu0
        %v3057 = vadd.f32 %v2917, %v3056
        %v3058 = vpop.f32.mrb[0].mxu0
        %v3059 = vpop.f32.mrb[0].mxu0
        %v3060 = vadd.f32 %v2917, %v3059
        %v3061 = vpop.f32.mrb[0].mxu0
        %3062 = vmatprep.mubr.bf16.mxu0 0
        %3063 = vmatmul.mubr.bf16.gmra.mrb[0].mxu0 %v2906
        %v3064 = vpop.f32.mrb[0].mxu0
        %v3065 = vadd.f32 %v2917, %v3064
        %v3066 = vpop.f32.mrb[0].mxu0
        %v3067 = vpop.f32.mrb[0].mxu0
        %v3068 = vadd.f32 %v2917, %v3067
        %v3069 = vpop.f32.mrb[0].mxu0
        %3070 = vmatprep.mubr.bf16.mxu0 0
        %3071 = vmatmul.mubr.bf16.gmra.mrb[0].mxu0 %v2907
        %v3072 = vpop.f32.mrb[0].mxu0
        %v3073 = vadd.f32 %v2917, %v3072
        %v3074 = vpop.f32.mrb[0].mxu0
        %v3075 = vpop.f32.mrb[0].mxu0
        %v3076 = vadd.f32 %v2917, %v3075
        %v3077 = vpop.f32.mrb[0].mxu0
        %3078 = vmatprep.mubr.bf16.mxu0 0
        %3079 = vmatmul.mubr.bf16.gmra.mrb[0].mxu0 %v2908
        %v3080 = vpop.f32.mrb[0].mxu0
        %v3081 = vadd.f32 %v2917, %v3080
        %v3082 = vpop.f32.mrb[0].mxu0
        %v3083 = vpop.f32.mrb[0].mxu0
        %v3084 = vadd.f32 %v2917, %v3083
        %v3085 = vpop.f32.mrb[0].mxu0
        %3086 = vmatprep.mubr.bf16.mxu0 0
        %3087 = vmatmul.mubr.bf16.gmra.mrb[0].mxu0 %v2909
        %v3088 = vpop.f32.mrb[0].mxu0
        %v3089 = vadd.f32 %v2917, %v3088
        %v3090 = vpop.f32.mrb[0].mxu0
        %v3091 = vpop.f32.mrb[0].mxu0
        %v3092 = vadd.f32 %v2917, %v3091
        %v3093 = vpop.f32.mrb[0].mxu0
        %3094 = vmatprep.mubr.bf16.mxu0 0
        %3095 = vmatmul.mubr.bf16.gmra.mrb[0].mxu0 %v2910
        %v3096 = vpop.f32.mrb[0].mxu0
        %v3097 = vadd.f32 %v2917, %v3096
        %v3098 = vpop.f32.mrb[0].mxu0
        %v3099 = vpop.f32.mrb[0].mxu0
        %v3100 = vadd.f32 %v2917, %v3099
        %v3101 = vpop.f32.mrb[0].mxu0
        %3102 = vmatprep.mubr.bf16.mxu0 0
        %3103 = vmatmul.mubr.bf16.gmra.mrb[0].mxu0 %v2911
        %v3104 = vpop.f32.mrb[0].mxu0
        %v3105 = vadd.f32 %v2917, %v3104
        %v3106 = vpop.f32.mrb[0].mxu0
        %v3107 = vpop.f32.mrb[0].mxu0
        %v3108 = vadd.f32 %v2917, %v3107
        %v3109 = vpop.f32.mrb[0].mxu0
        %3110 = vmatprep.mubr.bf16.mxu0 0
        %3111 = vmatmul.mubr.bf16.gmra.mrb[0].mxu0 %v2912
        %v3112 = vpop.f32.mrb[0].mxu0
        %v3113 = vadd.f32 %v2917, %v3112
        %v3114 = vpop.f32.mrb[0].mxu0
        %v3115 = vpop.f32.mrb[0].mxu0
        %v3116 = vadd.f32 %v2917, %v3115
        %v3117 = vpop.f32.mrb[0].mxu0
        %3118 = vmatprep.mubr.bf16.mxu0 0
        %3119 = vmatmul.mubr.bf16.gmra.mrb[0].mxu0 %v2913
        %v3120 = vpop.f32.mrb[0].mxu0
        %v3121 = vadd.f32 %v2917, %v3120
        %v3122 = vpop.f32.mrb[0].mxu0
        %v3123 = vpop.f32.mrb[0].mxu0
        %v3124 = vadd.f32 %v2917, %v3123
        %v3125 = vpop.f32.mrb[0].mxu0
        %3126 = vdwg.mxu0
        %v3127 = vxor.u32 %v3001, 2147483648
        %v3128 = vxor.u32 %v3004, 2147483648
        %v3129 = vxor.u32 %v3009, 2147483648
        %v3130 = vxor.u32 %v3012, 2147483648
        %v3131 = vxor.u32 %v3017, 2147483648
        %v3132 = vxor.u32 %v3020, 2147483648
        %v3133 = vxor.u32 %v3025, 2147483648
        %v3134 = vxor.u32 %v3028, 2147483648
        %v3135 = vxor.u32 %v3033, 2147483648
        %v3136 = vxor.u32 %v3036, 2147483648
        %v3137 = vxor.u32 %v3041, 2147483648
        %v3138 = vxor.u32 %v3044, 2147483648
        %v3139 = vxor.u32 %v3049, 2147483648
        %v3140 = vxor.u32 %v3052, 2147483648
        %v3141 = vxor.u32 %v3057, 2147483648
        %v3142 = vxor.u32 %v3060, 2147483648
        %v3143 = vxor.u32 %v3065, 2147483648
        %v3144 = vxor.u32 %v3068, 2147483648
        %v3145 = vxor.u32 %v3073, 2147483648
        %v3146 = vxor.u32 %v3076, 2147483648
        %v3147 = vxor.u32 %v3081, 2147483648
        %v3148 = vxor.u32 %v3084, 2147483648
        %v3149 = vxor.u32 %v3089, 2147483648
        %v3150 = vxor.u32 %v3092, 2147483648
        %v3151 = vxor.u32 %v3097, 2147483648
        %v3152 = vxor.u32 %v3100, 2147483648
        %v3153 = vxor.u32 %v3105, 2147483648
        %v3154 = vxor.u32 %v3108, 2147483648
        %v3155 = vxor.u32 %v3113, 2147483648
        %v3156 = vxor.u32 %v3116, 2147483648
        %v3157 = vxor.u32 %v3121, 2147483648
        %v3158 = vxor.u32 %v3124, 2147483648
        %v3159 = vmul.f32 %v3127, 1.442695
        %v3160 = vpow.pop %v3159
        %v3161 = vmul.f32 %v3128, 1.442695
        %v3162 = vpow.pop %v3161
        %v3163 = vmul.f32 %v3129, 1.442695
        %v3164 = vpow.pop %v3163
        %v3165 = vmul.f32 %v3130, 1.442695
        %v3166 = vpow.pop %v3165
        %v3167 = vmul.f32 %v3131, 1.442695
        %v3168 = vpow.pop %v3167
        %v3169 = vmul.f32 %v3132, 1.442695
        %v3170 = vpow.pop %v3169
        %v3171 = vmul.f32 %v3133, 1.442695
        %v3172 = vpow.pop %v3171
        %v3173 = vmul.f32 %v3134, 1.442695
        %v3174 = vpow.pop %v3173
        %v3175 = vmul.f32 %v3135, 1.442695
        %v3176 = vpow.pop %v3175
        %v3177 = vmul.f32 %v3136, 1.442695
        %v3178 = vpow.pop %v3177
        %v3179 = vmul.f32 %v3137, 1.442695
        %v3180 = vpow.pop %v3179
        %v3181 = vmul.f32 %v3138, 1.442695
        %v3182 = vpow.pop %v3181
        %v3183 = vmul.f32 %v3139, 1.442695
        %v3184 = vpow.pop %v3183
        %v3185 = vmul.f32 %v3140, 1.442695
        %v3186 = vpow.pop %v3185
        %v3187 = vmul.f32 %v3141, 1.442695
        %v3188 = vpow.pop %v3187
        %v3189 = vmul.f32 %v3142, 1.442695
        %v3190 = vpow.pop %v3189
        %v3191 = vmul.f32 %v3143, 1.442695
        %v3192 = vpow.pop %v3191
        %v3193 = vmul.f32 %v3144, 1.442695
        %v3194 = vpow.pop %v3193
        %v3195 = vmul.f32 %v3145, 1.442695
        %v3196 = vpow.pop %v3195
        %v3197 = vmul.f32 %v3146, 1.442695
        %v3198 = vpow.pop %v3197
        %v3199 = vmul.f32 %v3147, 1.442695
        %v3200 = vpow.pop %v3199
        %v3201 = vmul.f32 %v3148, 1.442695
        %v3202 = vpow.pop %v3201
        %v3203 = vmul.f32 %v3149, 1.442695
        %v3204 = vpow.pop %v3203
        %v3205 = vmul.f32 %v3150, 1.442695
        %v3206 = vpow.pop %v3205
        %v3207 = vmul.f32 %v3151, 1.442695
        %v3208 = vpow.pop %v3207
        %v3209 = vmul.f32 %v3152, 1.442695
        %v3210 = vpow.pop %v3209
        %v3211 = vmul.f32 %v3153, 1.442695
        %v3212 = vpow.pop %v3211
        %v3213 = vmul.f32 %v3154, 1.442695
        %v3214 = vpow.pop %v3213
        %v3215 = vmul.f32 %v3155, 1.442695
        %v3216 = vpow.pop %v3215
        %v3217 = vmul.f32 %v3156, 1.442695
        %v3218 = vpow.pop %v3217
        %v3219 = vmul.f32 %v3157, 1.442695
        %v3220 = vpow.pop %v3219
        %v3221 = vmul.f32 %v3158, 1.442695
        %v3222 = vpow.pop %v3221
        %v3223 = vadd.f32 %v3160, 1.0
        %v3224 = vadd.f32 %v3162, 1.0
        %v3225 = vadd.f32 %v3164, 1.0
        %v3226 = vadd.f32 %v3166, 1.0
        %v3227 = vadd.f32 %v3168, 1.0
        %v3228 = vadd.f32 %v3170, 1.0
        %v3229 = vadd.f32 %v3172, 1.0
        %v3230 = vadd.f32 %v3174, 1.0
        %v3231 = vadd.f32 %v3176, 1.0
        %v3232 = vadd.f32 %v3178, 1.0
        %v3233 = vadd.f32 %v3180, 1.0
        %v3234 = vadd.f32 %v3182, 1.0
        %v3235 = vadd.f32 %v3184, 1.0
        %v3236 = vadd.f32 %v3186, 1.0
        %v3237 = vadd.f32 %v3188, 1.0
        %v3238 = vadd.f32 %v3190, 1.0
        %v3239 = vadd.f32 %v3192, 1.0
        %v3240 = vadd.f32 %v3194, 1.0
        %v3241 = vadd.f32 %v3196, 1.0
        %v3242 = vadd.f32 %v3198, 1.0
        %v3243 = vadd.f32 %v3200, 1.0
        %v3244 = vadd.f32 %v3202, 1.0
        %v3245 = vadd.f32 %v3204, 1.0
        %v3246 = vadd.f32 %v3206, 1.0
        %v3247 = vadd.f32 %v3208, 1.0
        %v3248 = vadd.f32 %v3210, 1.0
        %v3249 = vadd.f32 %v3212, 1.0
        %v3250 = vadd.f32 %v3214, 1.0
        %v3251 = vadd.f32 %v3216, 1.0
        %v3252 = vadd.f32 %v3218, 1.0
        %v3253 = vadd.f32 %v3220, 1.0
        %v3254 = vadd.f32 %v3222, 1.0
        %v3255 = vrcp.pop %v3223
        %v3256 = vmul.f32 1.0, %v3255
        %v3257 = vrcp.pop %v3224
        %v3258 = vmul.f32 1.0, %v3257
        %v3259 = vrcp.pop %v3225
        %v3260 = vmul.f32 1.0, %v3259
        %v3261 = vrcp.pop %v3226
        %v3262 = vmul.f32 1.0, %v3261
        %v3263 = vrcp.pop %v3227
        %v3264 = vmul.f32 1.0, %v3263
        %v3265 = vrcp.pop %v3228
        %v3266 = vmul.f32 1.0, %v3265
        %v3267 = vrcp.pop %v3229
        %v3268 = vmul.f32 1.0, %v3267
        %v3269 = vrcp.pop %v3230
        %v3270 = vmul.f32 1.0, %v3269
        %v3271 = vrcp.pop %v3231
        %v3272 = vmul.f32 1.0, %v3271
        %v3273 = vrcp.pop %v3232
        %v3274 = vmul.f32 1.0, %v3273
        %v3275 = vrcp.pop %v3233
        %v3276 = vmul.f32 1.0, %v3275
        %v3277 = vrcp.pop %v3234
        %v3278 = vmul.f32 1.0, %v3277
        %v3279 = vrcp.pop %v3235
        %v3280 = vmul.f32 1.0, %v3279
        %v3281 = vrcp.pop %v3236
        %v3282 = vmul.f32 1.0, %v3281
        %v3283 = vrcp.pop %v3237
        %v3284 = vmul.f32 1.0, %v3283
        %v3285 = vrcp.pop %v3238
        %v3286 = vmul.f32 1.0, %v3285
        %v3287 = vrcp.pop %v3239
        %v3288 = vmul.f32 1.0, %v3287
        %v3289 = vrcp.pop %v3240
        %v3290 = vmul.f32 1.0, %v3289
        %v3291 = vrcp.pop %v3241
        %v3292 = vmul.f32 1.0, %v3291
        %v3293 = vrcp.pop %v3242
        %v3294 = vmul.f32 1.0, %v3293
        %v3295 = vrcp.pop %v3243
        %v3296 = vmul.f32 1.0, %v3295
        %v3297 = vrcp.pop %v3244
        %v3298 = vmul.f32 1.0, %v3297
        %v3299 = vrcp.pop %v3245
        %v3300 = vmul.f32 1.0, %v3299
        %v3301 = vrcp.pop %v3246
        %v3302 = vmul.f32 1.0, %v3301
        %v3303 = vrcp.pop %v3247
        %v3304 = vmul.f32 1.0, %v3303
        %v3305 = vrcp.pop %v3248
        %v3306 = vmul.f32 1.0, %v3305
        %v3307 = vrcp.pop %v3249
        %v3308 = vmul.f32 1.0, %v3307
        %v3309 = vrcp.pop %v3250
        %v3310 = vmul.f32 1.0, %v3309
        %v3311 = vrcp.pop %v3251
        %v3312 = vmul.f32 1.0, %v3311
        %v3313 = vrcp.pop %v3252
        %v3314 = vmul.f32 1.0, %v3313
        %v3315 = vrcp.pop %v3253
        %v3316 = vmul.f32 1.0, %v3315
        %v3317 = vrcp.pop %v3254
        %v3318 = vmul.f32 1.0, %v3317
        %v3319 = vmul.f32 %v3001, %v3256
        %v3320 = vmul.f32 %v3004, %v3258
        %v3321 = vmul.f32 %v3009, %v3260
        %v3322 = vmul.f32 %v3012, %v3262
        %v3323 = vmul.f32 %v3017, %v3264
        %v3324 = vmul.f32 %v3020, %v3266
        %v3325 = vmul.f32 %v3025, %v3268
        %v3326 = vmul.f32 %v3028, %v3270
        %v3327 = vmul.f32 %v3033, %v3272
        %v3328 = vmul.f32 %v3036, %v3274
        %v3329 = vmul.f32 %v3041, %v3276
        %v3330 = vmul.f32 %v3044, %v3278
        %v3331 = vmul.f32 %v3049, %v3280
        %v3332 = vmul.f32 %v3052, %v3282
        %v3333 = vmul.f32 %v3057, %v3284
        %v3334 = vmul.f32 %v3060, %v3286
        %v3335 = vmul.f32 %v3065, %v3288
        %v3336 = vmul.f32 %v3068, %v3290
        %v3337 = vmul.f32 %v3073, %v3292
        %v3338 = vmul.f32 %v3076, %v3294
        %v3339 = vmul.f32 %v3081, %v3296
        %v3340 = vmul.f32 %v3084, %v3298
        %v3341 = vmul.f32 %v3089, %v3300
        %v3342 = vmul.f32 %v3092, %v3302
        %v3343 = vmul.f32 %v3097, %v3304
        %v3344 = vmul.f32 %v3100, %v3306
        %v3345 = vmul.f32 %v3105, %v3308
        %v3346 = vmul.f32 %v3108, %v3310
        %v3347 = vmul.f32 %v3113, %v3312
        %v3348 = vmul.f32 %v3116, %v3314
        %v3349 = vmul.f32 %v3121, %v3316
        %v3350 = vmul.f32 %v3124, %v3318
        %v3351 = vpack.c.bf16 %v3320, %v3319
        %v3352 = vpack.c.bf16 %v3322, %v3321
        %v3353 = vpack.c.bf16 %v3324, %v3323
        %v3354 = vpack.c.bf16 %v3326, %v3325
        %v3355 = vpack.c.bf16 %v3328, %v3327
        %v3356 = vpack.c.bf16 %v3330, %v3329
        %v3357 = vpack.c.bf16 %v3332, %v3331
        %v3358 = vpack.c.bf16 %v3334, %v3333
        %v3359 = vpack.c.bf16 %v3336, %v3335
        %v3360 = vpack.c.bf16 %v3338, %v3337
        %v3361 = vpack.c.bf16 %v3340, %v3339
        %v3362 = vpack.c.bf16 %v3342, %v3341
        %v3363 = vpack.c.bf16 %v3344, %v3343
        %v3364 = vpack.c.bf16 %v3346, %v3345
        %v3365 = vpack.c.bf16 %v3348, %v3347
        %v3366 = vpack.c.bf16 %v3350, %v3349
        %v3383 = vunpack.c.l.b16 %v436
        %v3384 = vunpack.c.l.b16 %v437
        %v3385 = vunpack.c.l.b16 %v438
        %v3386 = vunpack.c.l.b16 %v439
        %v3387 = vunpack.c.l.b16 %v440
        %v3388 = vunpack.c.l.b16 %v441
        %v3389 = vunpack.c.l.b16 %v442
        %v3390 = vunpack.c.l.b16 %v443
        %v3391 = vunpack.c.l.b16 %v444
        %v3392 = vunpack.c.l.b16 %v445
        %v3393 = vunpack.c.l.b16 %v446
        %v3394 = vunpack.c.l.b16 %v447
        %v3395 = vunpack.c.l.b16 %v448
        %v3396 = vunpack.c.l.b16 %v449
        %v3397 = vunpack.c.l.b16 %v450
        %v3398 = vunpack.c.l.b16 %v451
        %v3399 = vpack.c.b16 %v3384, %v3383
        %v3400 = vpack.c.b16 %v3386, %v3385
        %v3401 = vpack.c.b16 %v3388, %v3387
        %v3402 = vpack.c.b16 %v3390, %v3389
        %v3403 = vpack.c.b16 %v3392, %v3391
        %v3404 = vpack.c.b16 %v3394, %v3393
        %v3405 = vpack.c.b16 %v3396, %v3395
        %v3406 = vpack.c.b16 %v3398, %v3397
        %3415 = vmatprep.subr.bf16.mxu0 0
        %3416 = vmatpush1.bf16.msra.mxu0 %v3399
        %3417 = vmatprep.subr.bf16.mxu0 0
        %3418 = vmatpush1.bf16.msra.mxu0 %v3400
        %3419 = vmatprep.subr.bf16.mxu0 0
        %3420 = vmatpush1.bf16.msra.mxu0 %v3401
        %3421 = vmatprep.subr.bf16.mxu0 0
        %3422 = vmatpush1.bf16.msra.mxu0 %v3402
        %3423 = vmatprep.subr.bf16.mxu0 0
        %3424 = vmatpush1.bf16.msra.mxu0 %v3403
        %3425 = vmatprep.subr.bf16.mxu0 0
        %3426 = vmatpush1.bf16.msra.mxu0 %v3404
        %3427 = vmatprep.subr.bf16.mxu0 0
        %3428 = vmatpush1.bf16.msra.mxu0 %v3405
        %3429 = vmatprep.subr.bf16.mxu0 0
        %3430 = vmatpush1.bf16.msra.mxu0 %v3406
        %3431 = vmatprep.subr.bf16.mxu0 0
        %3432 = vmatpush1.bf16.msra.mxu0 0
        %3433 = vmatprep.subr.bf16.mxu0 0
        %3434 = vmatpush1.bf16.msra.mxu0 0
        %3435 = vmatprep.subr.bf16.mxu0 0
        %3436 = vmatpush1.bf16.msra.mxu0 0
        %3437 = vmatprep.subr.bf16.mxu0 0
        %3438 = vmatpush1.bf16.msra.mxu0 0
        %3439 = vmatprep.subr.bf16.mxu0 0
        %3440 = vmatpush1.bf16.msra.mxu0 0
        %3441 = vmatprep.subr.bf16.mxu0 0
        %3442 = vmatpush1.bf16.msra.mxu0 0
        %3443 = vmatprep.subr.bf16.mxu0 0
        %3444 = vmatpush1.bf16.msra.mxu0 0
        %3445 = vmatprep.subr.bf16.mxu0 0
        %3446 = vmatpush1.bf16.msra.mxu0 0
        %3447 = vmatprep.mubr.bf16.mxu0 0
        %3448 = vmatmul.mubr.bf16.gmra.mrb[0].mxu0 %v3351
        %v3449 = vpop.f32.mrb[0].mxu0
        %v3450 = vadd.f32 0.0, %v3449
        %v3451 = vpop.f32.mrb[0].mxu0
        %v3452 = vpop.f32.mrb[0].mxu0
        %v3453 = vadd.f32 0.0, %v3452
        %v3454 = vpop.f32.mrb[0].mxu0
        %3455 = vmatprep.mubr.bf16.mxu0 0
        %3456 = vmatmul.mubr.bf16.gmra.mrb[0].mxu0 %v3352
        %v3457 = vpop.f32.mrb[0].mxu0
        %v3458 = vadd.f32 0.0, %v3457
        %v3459 = vpop.f32.mrb[0].mxu0
        %v3460 = vpop.f32.mrb[0].mxu0
        %v3461 = vadd.f32 0.0, %v3460
        %v3462 = vpop.f32.mrb[0].mxu0
        %3463 = vmatprep.mubr.bf16.mxu0 0
        %3464 = vmatmul.mubr.bf16.gmra.mrb[0].mxu0 %v3353
        %v3465 = vpop.f32.mrb[0].mxu0
        %v3466 = vadd.f32 0.0, %v3465
        %v3467 = vpop.f32.mrb[0].mxu0
        %v3468 = vpop.f32.mrb[0].mxu0
        %v3469 = vadd.f32 0.0, %v3468
        %v3470 = vpop.f32.mrb[0].mxu0
        %3471 = vmatprep.mubr.bf16.mxu0 0
        %3472 = vmatmul.mubr.bf16.gmra.mrb[0].mxu0 %v3354
        %v3473 = vpop.f32.mrb[0].mxu0
        %v3474 = vadd.f32 0.0, %v3473
        %v3475 = vpop.f32.mrb[0].mxu0
        %v3476 = vpop.f32.mrb[0].mxu0
        %v3477 = vadd.f32 0.0, %v3476
        %v3478 = vpop.f32.mrb[0].mxu0
        %3479 = vmatprep.mubr.bf16.mxu0 0
        %3480 = vmatmul.mubr.bf16.gmra.mrb[0].mxu0 %v3355
        %v3481 = vpop.f32.mrb[0].mxu0
        %v3482 = vadd.f32 0.0, %v3481
        %v3483 = vpop.f32.mrb[0].mxu0
        %v3484 = vpop.f32.mrb[0].mxu0
        %v3485 = vadd.f32 0.0, %v3484
        %v3486 = vpop.f32.mrb[0].mxu0
        %3487 = vmatprep.mubr.bf16.mxu0 0
        %3488 = vmatmul.mubr.bf16.gmra.mrb[0].mxu0 %v3356
        %v3489 = vpop.f32.mrb[0].mxu0
        %v3490 = vadd.f32 0.0, %v3489
        %v3491 = vpop.f32.mrb[0].mxu0
        %v3492 = vpop.f32.mrb[0].mxu0
        %v3493 = vadd.f32 0.0, %v3492
        %v3494 = vpop.f32.mrb[0].mxu0
        %3495 = vmatprep.mubr.bf16.mxu0 0
        %3496 = vmatmul.mubr.bf16.gmra.mrb[0].mxu0 %v3357
        %v3497 = vpop.f32.mrb[0].mxu0
        %v3498 = vadd.f32 0.0, %v3497
        %v3499 = vpop.f32.mrb[0].mxu0
        %v3500 = vpop.f32.mrb[0].mxu0
        %v3501 = vadd.f32 0.0, %v3500
        %v3502 = vpop.f32.mrb[0].mxu0
        %3503 = vmatprep.mubr.bf16.mxu0 0
        %3504 = vmatmul.mubr.bf16.gmra.mrb[0].mxu0 %v3358
        %v3505 = vpop.f32.mrb[0].mxu0
        %v3506 = vadd.f32 0.0, %v3505
        %v3507 = vpop.f32.mrb[0].mxu0
        %v3508 = vpop.f32.mrb[0].mxu0
        %v3509 = vadd.f32 0.0, %v3508
        %v3510 = vpop.f32.mrb[0].mxu0
        %3511 = vmatprep.mubr.bf16.mxu0 0
        %3512 = vmatmul.mubr.bf16.gmra.mrb[0].mxu0 %v3359
        %v3513 = vpop.f32.mrb[0].mxu0
        %v3514 = vadd.f32 0.0, %v3513
        %v3515 = vpop.f32.mrb[0].mxu0
        %v3516 = vpop.f32.mrb[0].mxu0
        %v3517 = vadd.f32 0.0, %v3516
        %v3518 = vpop.f32.mrb[0].mxu0
        %3519 = vmatprep.mubr.bf16.mxu0 0
        %3520 = vmatmul.mubr.bf16.gmra.mrb[0].mxu0 %v3360
        %v3521 = vpop.f32.mrb[0].mxu0
        %v3522 = vadd.f32 0.0, %v3521
        %v3523 = vpop.f32.mrb[0].mxu0
        %v3524 = vpop.f32.mrb[0].mxu0
        %v3525 = vadd.f32 0.0, %v3524
        %v3526 = vpop.f32.mrb[0].mxu0
        %3527 = vmatprep.mubr.bf16.mxu0 0
        %3528 = vmatmul.mubr.bf16.gmra.mrb[0].mxu0 %v3361
        %v3529 = vpop.f32.mrb[0].mxu0
        %v3530 = vadd.f32 0.0, %v3529
        %v3531 = vpop.f32.mrb[0].mxu0
        %v3532 = vpop.f32.mrb[0].mxu0
        %v3533 = vadd.f32 0.0, %v3532
        %v3534 = vpop.f32.mrb[0].mxu0
        %3535 = vmatprep.mubr.bf16.mxu0 0
        %3536 = vmatmul.mubr.bf16.gmra.mrb[0].mxu0 %v3362
        %v3537 = vpop.f32.mrb[0].mxu0
        %v3538 = vadd.f32 0.0, %v3537
        %v3539 = vpop.f32.mrb[0].mxu0
        %v3540 = vpop.f32.mrb[0].mxu0
        %v3541 = vadd.f32 0.0, %v3540
        %v3542 = vpop.f32.mrb[0].mxu0
        %3543 = vmatprep.mubr.bf16.mxu0 0
        %3544 = vmatmul.mubr.bf16.gmra.mrb[0].mxu0 %v3363
        %v3545 = vpop.f32.mrb[0].mxu0
        %v3546 = vadd.f32 0.0, %v3545
        %v3547 = vpop.f32.mrb[0].mxu0
        %v3548 = vpop.f32.mrb[0].mxu0
        %v3549 = vadd.f32 0.0, %v3548
        %v3550 = vpop.f32.mrb[0].mxu0
        %3551 = vmatprep.mubr.bf16.mxu0 0
        %3552 = vmatmul.mubr.bf16.gmra.mrb[0].mxu0 %v3364
        %v3553 = vpop.f32.mrb[0].mxu0
        %v3554 = vadd.f32 0.0, %v3553
        %v3555 = vpop.f32.mrb[0].mxu0
        %v3556 = vpop.f32.mrb[0].mxu0
        %v3557 = vadd.f32 0.0, %v3556
        %v3558 = vpop.f32.mrb[0].mxu0
        %3559 = vmatprep.mubr.bf16.mxu0 0
        %3560 = vmatmul.mubr.bf16.gmra.mrb[0].mxu0 %v3365
        %v3561 = vpop.f32.mrb[0].mxu0
        %v3562 = vadd.f32 0.0, %v3561
        %v3563 = vpop.f32.mrb[0].mxu0
        %v3564 = vpop.f32.mrb[0].mxu0
        %v3565 = vadd.f32 0.0, %v3564
        %v3566 = vpop.f32.mrb[0].mxu0
        %3567 = vmatprep.mubr.bf16.mxu0 0
        %3568 = vmatmul.mubr.bf16.gmra.mrb[0].mxu0 %v3366
        %v3569 = vpop.f32.mrb[0].mxu0
        %v3570 = vadd.f32 0.0, %v3569
        %v3571 = vpop.f32.mrb[0].mxu0
        %v3572 = vpop.f32.mrb[0].mxu0
        %v3573 = vadd.f32 0.0, %v3572
        %v3574 = vpop.f32.mrb[0].mxu0
        %3575 = vdwg.mxu0
        %v3576 = vlaneseq
        %v3577 = vshrl.u32 %v3576, 7
        %v3578 = vsub.s32 6, %v3577
        %v3579 = vrot.slane %v484, %v3578
        %v3580 = vadd.f32 %v3450, %v3579
        %v3581 = vadd.f32 %v3453, %v3579
        %v3582 = vadd.f32 %v3458, %v3579
        %v3583 = vadd.f32 %v3461, %v3579
        %v3584 = vadd.f32 %v3466, %v3579
        %v3585 = vadd.f32 %v3469, %v3579
        %v3586 = vadd.f32 %v3474, %v3579
        %v3587 = vadd.f32 %v3477, %v3579
        %v3588 = vadd.f32 %v3482, %v3579
        %v3589 = vadd.f32 %v3485, %v3579
        %v3590 = vadd.f32 %v3490, %v3579
        %v3591 = vadd.f32 %v3493, %v3579
        %v3592 = vadd.f32 %v3498, %v3579
        %v3593 = vadd.f32 %v3501, %v3579
        %v3594 = vadd.f32 %v3506, %v3579
        %v3595 = vadd.f32 %v3509, %v3579
        %v3596 = vadd.f32 %v3514, %v3579
        %v3597 = vadd.f32 %v3517, %v3579
        %v3598 = vadd.f32 %v3522, %v3579
        %v3599 = vadd.f32 %v3525, %v3579
        %v3600 = vadd.f32 %v3530, %v3579
        %v3601 = vadd.f32 %v3533, %v3579
        %v3602 = vadd.f32 %v3538, %v3579
        %v3603 = vadd.f32 %v3541, %v3579
        %v3604 = vadd.f32 %v3546, %v3579
        %v3605 = vadd.f32 %v3549, %v3579
        %v3606 = vadd.f32 %v3554, %v3579
        %v3607 = vadd.f32 %v3557, %v3579
        %v3608 = vadd.f32 %v3562, %v3579
        %v3609 = vadd.f32 %v3565, %v3579
        %v3610 = vadd.f32 %v3570, %v3579
        %v3611 = vadd.f32 %v3573, %v3579
        %3613 = vset.pattern.permute.xlu0 0
        %3614 = vperm.xlu0 %3613, %v3580
        %v3615 = vpop.permute.xlu0 %3614
        %3618 = vset.pattern.permute.xlu0 0
        %3619 = vperm.xlu0 %3618, %v3581
        %v3620 = vpop.permute.xlu0 %3619
        %3623 = vset.pattern.permute.xlu0 0
        %3624 = vperm.xlu0 %3623, %v3582
        %v3625 = vpop.permute.xlu0 %3624
        %3628 = vset.pattern.permute.xlu0 0
        %3629 = vperm.xlu0 %3628, %v3583
        %v3630 = vpop.permute.xlu0 %3629
        %3633 = vset.pattern.permute.xlu0 0
        %3634 = vperm.xlu0 %3633, %v3584
        %v3635 = vpop.permute.xlu0 %3634
        %3638 = vset.pattern.permute.xlu0 0
        %3639 = vperm.xlu0 %3638, %v3585
        %v3640 = vpop.permute.xlu0 %3639
        %3643 = vset.pattern.permute.xlu0 0
        %3644 = vperm.xlu0 %3643, %v3586
        %v3645 = vpop.permute.xlu0 %3644
        %3648 = vset.pattern.permute.xlu0 0
        %3649 = vperm.xlu0 %3648, %v3587
        %v3650 = vpop.permute.xlu0 %3649
        %3653 = vset.pattern.permute.xlu0 0
        %3654 = vperm.xlu0 %3653, %v3588
        %v3655 = vpop.permute.xlu0 %3654
        %3658 = vset.pattern.permute.xlu0 0
        %3659 = vperm.xlu0 %3658, %v3589
        %v3660 = vpop.permute.xlu0 %3659
        %3663 = vset.pattern.permute.xlu0 0
        %3664 = vperm.xlu0 %3663, %v3590
        %v3665 = vpop.permute.xlu0 %3664
        %3668 = vset.pattern.permute.xlu0 0
        %3669 = vperm.xlu0 %3668, %v3591
        %v3670 = vpop.permute.xlu0 %3669
        %3673 = vset.pattern.permute.xlu0 0
        %3674 = vperm.xlu0 %3673, %v3592
        %v3675 = vpop.permute.xlu0 %3674
        %3678 = vset.pattern.permute.xlu0 0
        %3679 = vperm.xlu0 %3678, %v3593
        %v3680 = vpop.permute.xlu0 %3679
        %3683 = vset.pattern.permute.xlu0 0
        %3684 = vperm.xlu0 %3683, %v3594
        %v3685 = vpop.permute.xlu0 %3684
        %3688 = vset.pattern.permute.xlu0 0
        %3689 = vperm.xlu0 %3688, %v3595
        %v3690 = vpop.permute.xlu0 %3689
        %3693 = vset.pattern.permute.xlu0 0
        %3694 = vperm.xlu0 %3693, %v3596
        %v3695 = vpop.permute.xlu0 %3694
        %3698 = vset.pattern.permute.xlu0 0
        %3699 = vperm.xlu0 %3698, %v3597
        %v3700 = vpop.permute.xlu0 %3699
        %3703 = vset.pattern.permute.xlu0 0
        %3704 = vperm.xlu0 %3703, %v3598
        %v3705 = vpop.permute.xlu0 %3704
        %3708 = vset.pattern.permute.xlu0 0
        %3709 = vperm.xlu0 %3708, %v3599
        %v3710 = vpop.permute.xlu0 %3709
        %3713 = vset.pattern.permute.xlu0 0
        %3714 = vperm.xlu0 %3713, %v3600
        %v3715 = vpop.permute.xlu0 %3714
        %3718 = vset.pattern.permute.xlu0 0
        %3719 = vperm.xlu0 %3718, %v3601
        %v3720 = vpop.permute.xlu0 %3719
        %3723 = vset.pattern.permute.xlu0 0
        %3724 = vperm.xlu0 %3723, %v3602
        %v3725 = vpop.permute.xlu0 %3724
        %3728 = vset.pattern.permute.xlu0 0
        %3729 = vperm.xlu0 %3728, %v3603
        %v3730 = vpop.permute.xlu0 %3729
        %3733 = vset.pattern.permute.xlu0 0
        %3734 = vperm.xlu0 %3733, %v3604
        %v3735 = vpop.permute.xlu0 %3734
        %3738 = vset.pattern.permute.xlu0 0
        %3739 = vperm.xlu0 %3738, %v3605
        %v3740 = vpop.permute.xlu0 %3739
        %3743 = vset.pattern.permute.xlu0 0
        %3744 = vperm.xlu0 %3743, %v3606
        %v3745 = vpop.permute.xlu0 %3744
        %3748 = vset.pattern.permute.xlu0 0
        %3749 = vperm.xlu0 %3748, %v3607
        %v3750 = vpop.permute.xlu0 %3749
        %3753 = vset.pattern.permute.xlu0 0
        %3754 = vperm.xlu0 %3753, %v3608
        %v3755 = vpop.permute.xlu0 %3754
        %3758 = vset.pattern.permute.xlu0 0
        %3759 = vperm.xlu0 %3758, %v3609
        %v3760 = vpop.permute.xlu0 %3759
        %3763 = vset.pattern.permute.xlu0 0
        %3764 = vperm.xlu0 %3763, %v3610
        %v3765 = vpop.permute.xlu0 %3764
        %3768 = vset.pattern.permute.xlu0 0
        %3769 = vperm.xlu0 %3768, %v3611
        %v3770 = vpop.permute.xlu0 %3769
        %v3772 = vmul.f32 %v1465, %v3615
        %v3773 = vmul.f32 %v1466, %v3620
        %v3774 = vmul.f32 %v1467, %v3625
        %v3775 = vmul.f32 %v1468, %v3630
        %v3776 = vmul.f32 %v1469, %v3635
        %v3777 = vmul.f32 %v1470, %v3640
        %v3778 = vmul.f32 %v1471, %v3645
        %v3779 = vmul.f32 %v1472, %v3650
        %v3780 = vmul.f32 %v1473, %v3655
        %v3781 = vmul.f32 %v1474, %v3660
        %v3782 = vmul.f32 %v1475, %v3665
        %v3783 = vmul.f32 %v1476, %v3670
        %v3784 = vmul.f32 %v1477, %v3675
        %v3785 = vmul.f32 %v1478, %v3680
        %v3786 = vmul.f32 %v1479, %v3685
        %v3787 = vmul.f32 %v1480, %v3690
        %v3788 = vmul.f32 %v1481, %v3695
        %v3789 = vmul.f32 %v1482, %v3700
        %v3790 = vmul.f32 %v1483, %v3705
        %v3791 = vmul.f32 %v1484, %v3710
        %v3792 = vmul.f32 %v1485, %v3715
        %v3793 = vmul.f32 %v1486, %v3720
        %v3794 = vmul.f32 %v1487, %v3725
        %v3795 = vmul.f32 %v1488, %v3730
        %v3796 = vmul.f32 %v1489, %v3735
        %v3797 = vmul.f32 %v1490, %v3740
        %v3798 = vmul.f32 %v1491, %v3745
        %v3799 = vmul.f32 %v1492, %v3750
        %v3800 = vmul.f32 %v1493, %v3755
        %v3801 = vmul.f32 %v1494, %v3760
        %v3802 = vmul.f32 %v1495, %v3765
        %v3803 = vmul.f32 %v1496, %v3770
        %v3804 = vsel %vm1529, %v3772, 0.0
        %v3805 = vrot.slane %v3804, 4
        %v3806 = vadd.f32 %v3804, %v3805
        %v3807 = vrot.slane %v3806, 2
        %v3808 = vadd.f32 %v3806, %v3807
        %v3809 = vrot.slane %v3808, 1
        %v3810 = vadd.f32 %v3808, %v3809
        %v3811 = vsel %vm1529, %v3773, 0.0
        %v3812 = vrot.slane %v3811, 4
        %v3813 = vadd.f32 %v3811, %v3812
        %v3814 = vrot.slane %v3813, 2
        %v3815 = vadd.f32 %v3813, %v3814
        %v3816 = vrot.slane %v3815, 1
        %v3817 = vadd.f32 %v3815, %v3816
        %v3818 = vsel %vm1529, %v3774, 0.0
        %v3819 = vrot.slane %v3818, 4
        %v3820 = vadd.f32 %v3818, %v3819
        %v3821 = vrot.slane %v3820, 2
        %v3822 = vadd.f32 %v3820, %v3821
        %v3823 = vrot.slane %v3822, 1
        %v3824 = vadd.f32 %v3822, %v3823
        %v3825 = vsel %vm1529, %v3775, 0.0
        %v3826 = vrot.slane %v3825, 4
        %v3827 = vadd.f32 %v3825, %v3826
        %v3828 = vrot.slane %v3827, 2
        %v3829 = vadd.f32 %v3827, %v3828
        %v3830 = vrot.slane %v3829, 1
        %v3831 = vadd.f32 %v3829, %v3830
        %v3832 = vsel %vm1529, %v3776, 0.0
        %v3833 = vrot.slane %v3832, 4
        %v3834 = vadd.f32 %v3832, %v3833
        %v3835 = vrot.slane %v3834, 2
        %v3836 = vadd.f32 %v3834, %v3835
        %v3837 = vrot.slane %v3836, 1
        %v3838 = vadd.f32 %v3836, %v3837
        %v3839 = vsel %vm1529, %v3777, 0.0
        %v3840 = vrot.slane %v3839, 4
        %v3841 = vadd.f32 %v3839, %v3840
        %v3842 = vrot.slane %v3841, 2
        %v3843 = vadd.f32 %v3841, %v3842
        %v3844 = vrot.slane %v3843, 1
        %v3845 = vadd.f32 %v3843, %v3844
        %v3846 = vsel %vm1529, %v3778, 0.0
        %v3847 = vrot.slane %v3846, 4
        %v3848 = vadd.f32 %v3846, %v3847
        %v3849 = vrot.slane %v3848, 2
        %v3850 = vadd.f32 %v3848, %v3849
        %v3851 = vrot.slane %v3850, 1
        %v3852 = vadd.f32 %v3850, %v3851
        %v3853 = vsel %vm1529, %v3779, 0.0
        %v3854 = vrot.slane %v3853, 4
        %v3855 = vadd.f32 %v3853, %v3854
        %v3856 = vrot.slane %v3855, 2
        %v3857 = vadd.f32 %v3855, %v3856
        %v3858 = vrot.slane %v3857, 1
        %v3859 = vadd.f32 %v3857, %v3858
        %v3860 = vsel %vm1529, %v3780, 0.0
        %v3861 = vrot.slane %v3860, 4
        %v3862 = vadd.f32 %v3860, %v3861
        %v3863 = vrot.slane %v3862, 2
        %v3864 = vadd.f32 %v3862, %v3863
        %v3865 = vrot.slane %v3864, 1
        %v3866 = vadd.f32 %v3864, %v3865
        %v3867 = vsel %vm1529, %v3781, 0.0
        %v3868 = vrot.slane %v3867, 4
        %v3869 = vadd.f32 %v3867, %v3868
        %v3870 = vrot.slane %v3869, 2
        %v3871 = vadd.f32 %v3869, %v3870
        %v3872 = vrot.slane %v3871, 1
        %v3873 = vadd.f32 %v3871, %v3872
        %v3874 = vsel %vm1529, %v3782, 0.0
        %v3875 = vrot.slane %v3874, 4
        %v3876 = vadd.f32 %v3874, %v3875
        %v3877 = vrot.slane %v3876, 2
        %v3878 = vadd.f32 %v3876, %v3877
        %v3879 = vrot.slane %v3878, 1
        %v3880 = vadd.f32 %v3878, %v3879
        %v3881 = vsel %vm1529, %v3783, 0.0
        %v3882 = vrot.slane %v3881, 4
        %v3883 = vadd.f32 %v3881, %v3882
        %v3884 = vrot.slane %v3883, 2
        %v3885 = vadd.f32 %v3883, %v3884
        %v3886 = vrot.slane %v3885, 1
        %v3887 = vadd.f32 %v3885, %v3886
        %v3888 = vsel %vm1529, %v3784, 0.0
        %v3889 = vrot.slane %v3888, 4
        %v3890 = vadd.f32 %v3888, %v3889
        %v3891 = vrot.slane %v3890, 2
        %v3892 = vadd.f32 %v3890, %v3891
        %v3893 = vrot.slane %v3892, 1
        %v3894 = vadd.f32 %v3892, %v3893
        %v3895 = vsel %vm1529, %v3785, 0.0
        %v3896 = vrot.slane %v3895, 4
        %v3897 = vadd.f32 %v3895, %v3896
        %v3898 = vrot.slane %v3897, 2
        %v3899 = vadd.f32 %v3897, %v3898
        %v3900 = vrot.slane %v3899, 1
        %v3901 = vadd.f32 %v3899, %v3900
        %v3902 = vsel %vm1529, %v3786, 0.0
        %v3903 = vrot.slane %v3902, 4
        %v3904 = vadd.f32 %v3902, %v3903
        %v3905 = vrot.slane %v3904, 2
        %v3906 = vadd.f32 %v3904, %v3905
        %v3907 = vrot.slane %v3906, 1
        %v3908 = vadd.f32 %v3906, %v3907
        %v3909 = vsel %vm1529, %v3787, 0.0
        %v3910 = vrot.slane %v3909, 4
        %v3911 = vadd.f32 %v3909, %v3910
        %v3912 = vrot.slane %v3911, 2
        %v3913 = vadd.f32 %v3911, %v3912
        %v3914 = vrot.slane %v3913, 1
        %v3915 = vadd.f32 %v3913, %v3914
        %v3916 = vsel %vm1529, %v3788, 0.0
        %v3917 = vrot.slane %v3916, 4
        %v3918 = vadd.f32 %v3916, %v3917
        %v3919 = vrot.slane %v3918, 2
        %v3920 = vadd.f32 %v3918, %v3919
        %v3921 = vrot.slane %v3920, 1
        %v3922 = vadd.f32 %v3920, %v3921
        %v3923 = vsel %vm1529, %v3789, 0.0
        %v3924 = vrot.slane %v3923, 4
        %v3925 = vadd.f32 %v3923, %v3924
        %v3926 = vrot.slane %v3925, 2
        %v3927 = vadd.f32 %v3925, %v3926
        %v3928 = vrot.slane %v3927, 1
        %v3929 = vadd.f32 %v3927, %v3928
        %v3930 = vsel %vm1529, %v3790, 0.0
        %v3931 = vrot.slane %v3930, 4
        %v3932 = vadd.f32 %v3930, %v3931
        %v3933 = vrot.slane %v3932, 2
        %v3934 = vadd.f32 %v3932, %v3933
        %v3935 = vrot.slane %v3934, 1
        %v3936 = vadd.f32 %v3934, %v3935
        %v3937 = vsel %vm1529, %v3791, 0.0
        %v3938 = vrot.slane %v3937, 4
        %v3939 = vadd.f32 %v3937, %v3938
        %v3940 = vrot.slane %v3939, 2
        %v3941 = vadd.f32 %v3939, %v3940
        %v3942 = vrot.slane %v3941, 1
        %v3943 = vadd.f32 %v3941, %v3942
        %v3944 = vsel %vm1529, %v3792, 0.0
        %v3945 = vrot.slane %v3944, 4
        %v3946 = vadd.f32 %v3944, %v3945
        %v3947 = vrot.slane %v3946, 2
        %v3948 = vadd.f32 %v3946, %v3947
        %v3949 = vrot.slane %v3948, 1
        %v3950 = vadd.f32 %v3948, %v3949
        %v3951 = vsel %vm1529, %v3793, 0.0
        %v3952 = vrot.slane %v3951, 4
        %v3953 = vadd.f32 %v3951, %v3952
        %v3954 = vrot.slane %v3953, 2
        %v3955 = vadd.f32 %v3953, %v3954
        %v3956 = vrot.slane %v3955, 1
        %v3957 = vadd.f32 %v3955, %v3956
        %v3958 = vsel %vm1529, %v3794, 0.0
        %v3959 = vrot.slane %v3958, 4
        %v3960 = vadd.f32 %v3958, %v3959
        %v3961 = vrot.slane %v3960, 2
        %v3962 = vadd.f32 %v3960, %v3961
        %v3963 = vrot.slane %v3962, 1
        %v3964 = vadd.f32 %v3962, %v3963
        %v3965 = vsel %vm1529, %v3795, 0.0
        %v3966 = vrot.slane %v3965, 4
        %v3967 = vadd.f32 %v3965, %v3966
        %v3968 = vrot.slane %v3967, 2
        %v3969 = vadd.f32 %v3967, %v3968
        %v3970 = vrot.slane %v3969, 1
        %v3971 = vadd.f32 %v3969, %v3970
        %v3972 = vsel %vm1529, %v3796, 0.0
        %v3973 = vrot.slane %v3972, 4
        %v3974 = vadd.f32 %v3972, %v3973
        %v3975 = vrot.slane %v3974, 2
        %v3976 = vadd.f32 %v3974, %v3975
        %v3977 = vrot.slane %v3976, 1
        %v3978 = vadd.f32 %v3976, %v3977
        %v3979 = vsel %vm1529, %v3797, 0.0
        %v3980 = vrot.slane %v3979, 4
        %v3981 = vadd.f32 %v3979, %v3980
        %v3982 = vrot.slane %v3981, 2
        %v3983 = vadd.f32 %v3981, %v3982
        %v3984 = vrot.slane %v3983, 1
        %v3985 = vadd.f32 %v3983, %v3984
        %v3986 = vsel %vm1529, %v3798, 0.0
        %v3987 = vrot.slane %v3986, 4
        %v3988 = vadd.f32 %v3986, %v3987
        %v3989 = vrot.slane %v3988, 2
        %v3990 = vadd.f32 %v3988, %v3989
        %v3991 = vrot.slane %v3990, 1
        %v3992 = vadd.f32 %v3990, %v3991
        %v3993 = vsel %vm1529, %v3799, 0.0
        %v3994 = vrot.slane %v3993, 4
        %v3995 = vadd.f32 %v3993, %v3994
        %v3996 = vrot.slane %v3995, 2
        %v3997 = vadd.f32 %v3995, %v3996
        %v3998 = vrot.slane %v3997, 1
        %v3999 = vadd.f32 %v3997, %v3998
        %v4000 = vsel %vm1529, %v3800, 0.0
        %v4001 = vrot.slane %v4000, 4
        %v4002 = vadd.f32 %v4000, %v4001
        %v4003 = vrot.slane %v4002, 2
        %v4004 = vadd.f32 %v4002, %v4003
        %v4005 = vrot.slane %v4004, 1
        %v4006 = vadd.f32 %v4004, %v4005
        %v4007 = vsel %vm1529, %v3801, 0.0
        %v4008 = vrot.slane %v4007, 4
        %v4009 = vadd.f32 %v4007, %v4008
        %v4010 = vrot.slane %v4009, 2
        %v4011 = vadd.f32 %v4009, %v4010
        %v4012 = vrot.slane %v4011, 1
        %v4013 = vadd.f32 %v4011, %v4012
        %v4014 = vsel %vm1529, %v3802, 0.0
        %v4015 = vrot.slane %v4014, 4
        %v4016 = vadd.f32 %v4014, %v4015
        %v4017 = vrot.slane %v4016, 2
        %v4018 = vadd.f32 %v4016, %v4017
        %v4019 = vrot.slane %v4018, 1
        %v4020 = vadd.f32 %v4018, %v4019
        %v4021 = vsel %vm1529, %v3803, 0.0
        %v4022 = vrot.slane %v4021, 4
        %v4023 = vadd.f32 %v4021, %v4022
        %v4024 = vrot.slane %v4023, 2
        %v4025 = vadd.f32 %v4023, %v4024
        %v4026 = vrot.slane %v4025, 1
        %v4027 = vadd.f32 %v4025, %v4026
        %v4028 = vmul.f32 %v3810, 0.125
        %v4029 = vmul.f32 %v3817, 0.125
        %v4030 = vmul.f32 %v3824, 0.125
        %v4031 = vmul.f32 %v3831, 0.125
        %v4032 = vmul.f32 %v3838, 0.125
        %v4033 = vmul.f32 %v3845, 0.125
        %v4034 = vmul.f32 %v3852, 0.125
        %v4035 = vmul.f32 %v3859, 0.125
        %v4036 = vmul.f32 %v3866, 0.125
        %v4037 = vmul.f32 %v3873, 0.125
        %v4038 = vmul.f32 %v3880, 0.125
        %v4039 = vmul.f32 %v3887, 0.125
        %v4040 = vmul.f32 %v3894, 0.125
        %v4041 = vmul.f32 %v3901, 0.125
        %v4042 = vmul.f32 %v3908, 0.125
        %v4043 = vmul.f32 %v3915, 0.125
        %v4044 = vmul.f32 %v3922, 0.125
        %v4045 = vmul.f32 %v3929, 0.125
        %v4046 = vmul.f32 %v3936, 0.125
        %v4047 = vmul.f32 %v3943, 0.125
        %v4048 = vmul.f32 %v3950, 0.125
        %v4049 = vmul.f32 %v3957, 0.125
        %v4050 = vmul.f32 %v3964, 0.125
        %v4051 = vmul.f32 %v3971, 0.125
        %v4052 = vmul.f32 %v3978, 0.125
        %v4053 = vmul.f32 %v3985, 0.125
        %v4054 = vmul.f32 %v3992, 0.125
        %v4055 = vmul.f32 %v3999, 0.125
        %v4056 = vmul.f32 %v4006, 0.125
        %v4057 = vmul.f32 %v4013, 0.125
        %v4058 = vmul.f32 %v4020, 0.125
        %v4059 = vmul.f32 %v4027, 0.125
        %vm4092 = vcmask 1041409
        %v4093 = vsel %vm4092, %v4029, %v4028
        %vm4094 = vcmask 1042434
        %v4095 = vsel %vm4094, %v4030, %v4093
        %vm4096 = vcmask 1043459
        %v4097 = vsel %vm4096, %v4031, %v4095
        %vm4098 = vcmask 1044484
        %v4099 = vsel %vm4098, %v4032, %v4097
        %vm4100 = vcmask 1045509
        %v4101 = vsel %vm4100, %v4033, %v4099
        %vm4102 = vcmask 1046534
        %v4103 = vsel %vm4102, %v4034, %v4101
        %vm4104 = vcmask 1047559
        %v4105 = vsel %vm4104, %v4035, %v4103
        %v4106 = vsel %vm4092, %v4037, %v4036
        %v4107 = vsel %vm4094, %v4038, %v4106
        %v4108 = vsel %vm4096, %v4039, %v4107
        %v4109 = vsel %vm4098, %v4040, %v4108
        %v4110 = vsel %vm4100, %v4041, %v4109
        %v4111 = vsel %vm4102, %v4042, %v4110
        %v4112 = vsel %vm4104, %v4043, %v4111
        %v4113 = vsel %vm4092, %v4045, %v4044
        %v4114 = vsel %vm4094, %v4046, %v4113
        %v4115 = vsel %vm4096, %v4047, %v4114
        %v4116 = vsel %vm4098, %v4048, %v4115
        %v4117 = vsel %vm4100, %v4049, %v4116
        %v4118 = vsel %vm4102, %v4050, %v4117
        %v4119 = vsel %vm4104, %v4051, %v4118
        %v4120 = vsel %vm4092, %v4053, %v4052
        %v4121 = vsel %vm4094, %v4054, %v4120
        %v4122 = vsel %vm4096, %v4055, %v4121
        %v4123 = vsel %vm4098, %v4056, %v4122
        %v4124 = vsel %vm4100, %v4057, %v4123
        %v4125 = vsel %vm4102, %v4058, %v4124
        %v4126 = vsel %vm4104, %v4059, %v4125
        %v4131 = vadd.f32 %v489, %v4105
        %v4132 = vadd.f32 %v490, %v4112
        %v4133 = vadd.f32 %v491, %v4119
        %v4134 = vadd.f32 %v492, %v4126
        %4135 = vst.msk [vmem:[%s385] sm:$0xff] %vm1529, %v4131
        %4136 = vst.msk [vmem:[%s385 + $0x8] sm:$0xff] %vm1529, %v4132
        %4137 = vst.msk [vmem:[%s385 + $0x10] sm:$0xff] %vm1529, %v4133
        %4138 = vst.msk [vmem:[%s385 + $0x18] sm:$0xff] %vm1529, %v4134
        %v4139 = vrot.slane %v2866, 4
        %v4140 = vadd.f32 %v2866, %v4139
        %v4141 = vrot.slane %v4140, 2
        %v4142 = vadd.f32 %v4140, %v4141
        %v4143 = vrot.slane %v4142, 1
        %v4144 = vadd.f32 %v4142, %v4143
        %v4145 = vrot.slane %v2867, 4
        %v4146 = vadd.f32 %v2867, %v4145
        %v4147 = vrot.slane %v4146, 2
        %v4148 = vadd.f32 %v4146, %v4147
        %v4149 = vrot.slane %v4148, 1
        %v4150 = vadd.f32 %v4148, %v4149
        %v4151 = vrot.slane %v2868, 4
        %v4152 = vadd.f32 %v2868, %v4151
        %v4153 = vrot.slane %v4152, 2
        %v4154 = vadd.f32 %v4152, %v4153
        %v4155 = vrot.slane %v4154, 1
        %v4156 = vadd.f32 %v4154, %v4155
        %v4157 = vrot.slane %v2869, 4
        %v4158 = vadd.f32 %v2869, %v4157
        %v4159 = vrot.slane %v4158, 2
        %v4160 = vadd.f32 %v4158, %v4159
        %v4161 = vrot.slane %v4160, 1
        %v4162 = vadd.f32 %v4160, %v4161
        %v4163 = vrot.slane %v2870, 4
        %v4164 = vadd.f32 %v2870, %v4163
        %v4165 = vrot.slane %v4164, 2
        %v4166 = vadd.f32 %v4164, %v4165
        %v4167 = vrot.slane %v4166, 1
        %v4168 = vadd.f32 %v4166, %v4167
        %v4169 = vrot.slane %v2871, 4
        %v4170 = vadd.f32 %v2871, %v4169
        %v4171 = vrot.slane %v4170, 2
        %v4172 = vadd.f32 %v4170, %v4171
        %v4173 = vrot.slane %v4172, 1
        %v4174 = vadd.f32 %v4172, %v4173
        %v4175 = vrot.slane %v2872, 4
        %v4176 = vadd.f32 %v2872, %v4175
        %v4177 = vrot.slane %v4176, 2
        %v4178 = vadd.f32 %v4176, %v4177
        %v4179 = vrot.slane %v4178, 1
        %v4180 = vadd.f32 %v4178, %v4179
        %v4181 = vrot.slane %v2873, 4
        %v4182 = vadd.f32 %v2873, %v4181
        %v4183 = vrot.slane %v4182, 2
        %v4184 = vadd.f32 %v4182, %v4183
        %v4185 = vrot.slane %v4184, 1
        %v4186 = vadd.f32 %v4184, %v4185
        %v4187 = vrot.slane %v2874, 4
        %v4188 = vadd.f32 %v2874, %v4187
        %v4189 = vrot.slane %v4188, 2
        %v4190 = vadd.f32 %v4188, %v4189
        %v4191 = vrot.slane %v4190, 1
        %v4192 = vadd.f32 %v4190, %v4191
        %v4193 = vrot.slane %v2875, 4
        %v4194 = vadd.f32 %v2875, %v4193
        %v4195 = vrot.slane %v4194, 2
        %v4196 = vadd.f32 %v4194, %v4195
        %v4197 = vrot.slane %v4196, 1
        %v4198 = vadd.f32 %v4196, %v4197
        %v4199 = vrot.slane %v2876, 4
        %v4200 = vadd.f32 %v2876, %v4199
        %v4201 = vrot.slane %v4200, 2
        %v4202 = vadd.f32 %v4200, %v4201
        %v4203 = vrot.slane %v4202, 1
        %v4204 = vadd.f32 %v4202, %v4203
        %v4205 = vrot.slane %v2877, 4
        %v4206 = vadd.f32 %v2877, %v4205
        %v4207 = vrot.slane %v4206, 2
        %v4208 = vadd.f32 %v4206, %v4207
        %v4209 = vrot.slane %v4208, 1
        %v4210 = vadd.f32 %v4208, %v4209
        %v4211 = vrot.slane %v2878, 4
        %v4212 = vadd.f32 %v2878, %v4211
        %v4213 = vrot.slane %v4212, 2
        %v4214 = vadd.f32 %v4212, %v4213
        %v4215 = vrot.slane %v4214, 1
        %v4216 = vadd.f32 %v4214, %v4215
        %v4217 = vrot.slane %v2879, 4
        %v4218 = vadd.f32 %v2879, %v4217
        %v4219 = vrot.slane %v4218, 2
        %v4220 = vadd.f32 %v4218, %v4219
        %v4221 = vrot.slane %v4220, 1
        %v4222 = vadd.f32 %v4220, %v4221
        %v4223 = vrot.slane %v2880, 4
        %v4224 = vadd.f32 %v2880, %v4223
        %v4225 = vrot.slane %v4224, 2
        %v4226 = vadd.f32 %v4224, %v4225
        %v4227 = vrot.slane %v4226, 1
        %v4228 = vadd.f32 %v4226, %v4227
        %v4229 = vrot.slane %v2881, 4
        %v4230 = vadd.f32 %v2881, %v4229
        %v4231 = vrot.slane %v4230, 2
        %v4232 = vadd.f32 %v4230, %v4231
        %v4233 = vrot.slane %v4232, 1
        %v4234 = vadd.f32 %v4232, %v4233
        %v4235 = vrot.slane %v2882, 4
        %v4236 = vadd.f32 %v2882, %v4235
        %v4237 = vrot.slane %v4236, 2
        %v4238 = vadd.f32 %v4236, %v4237
        %v4239 = vrot.slane %v4238, 1
        %v4240 = vadd.f32 %v4238, %v4239
        %v4241 = vrot.slane %v2883, 4
        %v4242 = vadd.f32 %v2883, %v4241
        %v4243 = vrot.slane %v4242, 2
        %v4244 = vadd.f32 %v4242, %v4243
        %v4245 = vrot.slane %v4244, 1
        %v4246 = vadd.f32 %v4244, %v4245
        %v4247 = vrot.slane %v2884, 4
        %v4248 = vadd.f32 %v2884, %v4247
        %v4249 = vrot.slane %v4248, 2
        %v4250 = vadd.f32 %v4248, %v4249
        %v4251 = vrot.slane %v4250, 1
        %v4252 = vadd.f32 %v4250, %v4251
        %v4253 = vrot.slane %v2885, 4
        %v4254 = vadd.f32 %v2885, %v4253
        %v4255 = vrot.slane %v4254, 2
        %v4256 = vadd.f32 %v4254, %v4255
        %v4257 = vrot.slane %v4256, 1
        %v4258 = vadd.f32 %v4256, %v4257
        %v4259 = vrot.slane %v2886, 4
        %v4260 = vadd.f32 %v2886, %v4259
        %v4261 = vrot.slane %v4260, 2
        %v4262 = vadd.f32 %v4260, %v4261
        %v4263 = vrot.slane %v4262, 1
        %v4264 = vadd.f32 %v4262, %v4263
        %v4265 = vrot.slane %v2887, 4
        %v4266 = vadd.f32 %v2887, %v4265
        %v4267 = vrot.slane %v4266, 2
        %v4268 = vadd.f32 %v4266, %v4267
        %v4269 = vrot.slane %v4268, 1
        %v4270 = vadd.f32 %v4268, %v4269
        %v4271 = vrot.slane %v2888, 4
        %v4272 = vadd.f32 %v2888, %v4271
        %v4273 = vrot.slane %v4272, 2
        %v4274 = vadd.f32 %v4272, %v4273
        %v4275 = vrot.slane %v4274, 1
        %v4276 = vadd.f32 %v4274, %v4275
        %v4277 = vrot.slane %v2889, 4
        %v4278 = vadd.f32 %v2889, %v4277
        %v4279 = vrot.slane %v4278, 2
        %v4280 = vadd.f32 %v4278, %v4279
        %v4281 = vrot.slane %v4280, 1
        %v4282 = vadd.f32 %v4280, %v4281
        %v4283 = vrot.slane %v2890, 4
        %v4284 = vadd.f32 %v2890, %v4283
        %v4285 = vrot.slane %v4284, 2
        %v4286 = vadd.f32 %v4284, %v4285
        %v4287 = vrot.slane %v4286, 1
        %v4288 = vadd.f32 %v4286, %v4287
        %v4289 = vrot.slane %v2891, 4
        %v4290 = vadd.f32 %v2891, %v4289
        %v4291 = vrot.slane %v4290, 2
        %v4292 = vadd.f32 %v4290, %v4291
        %v4293 = vrot.slane %v4292, 1
        %v4294 = vadd.f32 %v4292, %v4293
        %v4295 = vrot.slane %v2892, 4
        %v4296 = vadd.f32 %v2892, %v4295
        %v4297 = vrot.slane %v4296, 2
        %v4298 = vadd.f32 %v4296, %v4297
        %v4299 = vrot.slane %v4298, 1
        %v4300 = vadd.f32 %v4298, %v4299
        %v4301 = vrot.slane %v2893, 4
        %v4302 = vadd.f32 %v2893, %v4301
        %v4303 = vrot.slane %v4302, 2
        %v4304 = vadd.f32 %v4302, %v4303
        %v4305 = vrot.slane %v4304, 1
        %v4306 = vadd.f32 %v4304, %v4305
        %v4307 = vrot.slane %v2894, 4
        %v4308 = vadd.f32 %v2894, %v4307
        %v4309 = vrot.slane %v4308, 2
        %v4310 = vadd.f32 %v4308, %v4309
        %v4311 = vrot.slane %v4310, 1
        %v4312 = vadd.f32 %v4310, %v4311
        %v4313 = vrot.slane %v2895, 4
        %v4314 = vadd.f32 %v2895, %v4313
        %v4315 = vrot.slane %v4314, 2
        %v4316 = vadd.f32 %v4314, %v4315
        %v4317 = vrot.slane %v4316, 1
        %v4318 = vadd.f32 %v4316, %v4317
        %v4319 = vrot.slane %v2896, 4
        %v4320 = vadd.f32 %v2896, %v4319
        %v4321 = vrot.slane %v4320, 2
        %v4322 = vadd.f32 %v4320, %v4321
        %v4323 = vrot.slane %v4322, 1
        %v4324 = vadd.f32 %v4322, %v4323
        %v4325 = vrot.slane %v2897, 4
        %v4326 = vadd.f32 %v2897, %v4325
        %v4327 = vrot.slane %v4326, 2
        %v4328 = vadd.f32 %v4326, %v4327
        %v4329 = vrot.slane %v4328, 1
        %v4330 = vadd.f32 %v4328, %v4329
        %v4331 = vpack.c.bf16 %v4144, %v4144
        %v4332 = vpack.c.bf16 %v4150, %v4150
        %v4333 = vpack.c.bf16 %v4156, %v4156
        %v4334 = vpack.c.bf16 %v4162, %v4162
        %v4335 = vpack.c.bf16 %v4168, %v4168
        %v4336 = vpack.c.bf16 %v4174, %v4174
        %v4337 = vpack.c.bf16 %v4180, %v4180
        %v4338 = vpack.c.bf16 %v4186, %v4186
        %v4339 = vpack.c.bf16 %v4192, %v4192
        %v4340 = vpack.c.bf16 %v4198, %v4198
        %v4341 = vpack.c.bf16 %v4204, %v4204
        %v4342 = vpack.c.bf16 %v4210, %v4210
        %v4343 = vpack.c.bf16 %v4216, %v4216
        %v4344 = vpack.c.bf16 %v4222, %v4222
        %v4345 = vpack.c.bf16 %v4228, %v4228
        %v4346 = vpack.c.bf16 %v4234, %v4234
        %v4347 = vpack.c.bf16 %v4240, %v4240
        %v4348 = vpack.c.bf16 %v4246, %v4246
        %v4349 = vpack.c.bf16 %v4252, %v4252
        %v4350 = vpack.c.bf16 %v4258, %v4258
        %v4351 = vpack.c.bf16 %v4264, %v4264
        %v4352 = vpack.c.bf16 %v4270, %v4270
        %v4353 = vpack.c.bf16 %v4276, %v4276
        %v4354 = vpack.c.bf16 %v4282, %v4282
        %v4355 = vpack.c.bf16 %v4288, %v4288
        %v4356 = vpack.c.bf16 %v4294, %v4294
        %v4357 = vpack.c.bf16 %v4300, %v4300
        %v4358 = vpack.c.bf16 %v4306, %v4306
        %v4359 = vpack.c.bf16 %v4312, %v4312
        %v4360 = vpack.c.bf16 %v4318, %v4318
        %v4361 = vpack.c.bf16 %v4324, %v4324
        %v4362 = vpack.c.bf16 %v4330, %v4330
        %v4363 = vlaneseq
        %v4364 = vshrl.u32 %v4363, 7
        %v4365 = vsub.s32 4, %v4364
        %v4366 = vrot.slane %v484, %v4365
        %v4399 = vunpack.c.l.b16 %v4331
        %v4400 = vunpack.c.l.b16 %v4332
        %v4401 = vunpack.c.l.b16 %v4333
        %v4402 = vunpack.c.l.b16 %v4334
        %v4403 = vunpack.c.l.b16 %v4335
        %v4404 = vunpack.c.l.b16 %v4336
        %v4405 = vunpack.c.l.b16 %v4337
        %v4406 = vunpack.c.l.b16 %v4338
        %v4407 = vunpack.c.l.b16 %v4339
        %v4408 = vunpack.c.l.b16 %v4340
        %v4409 = vunpack.c.l.b16 %v4341
        %v4410 = vunpack.c.l.b16 %v4342
        %v4411 = vunpack.c.l.b16 %v4343
        %v4412 = vunpack.c.l.b16 %v4344
        %v4413 = vunpack.c.l.b16 %v4345
        %v4414 = vunpack.c.l.b16 %v4346
        %v4415 = vunpack.c.l.b16 %v4347
        %v4416 = vunpack.c.l.b16 %v4348
        %v4417 = vunpack.c.l.b16 %v4349
        %v4418 = vunpack.c.l.b16 %v4350
        %v4419 = vunpack.c.l.b16 %v4351
        %v4420 = vunpack.c.l.b16 %v4352
        %v4421 = vunpack.c.l.b16 %v4353
        %v4422 = vunpack.c.l.b16 %v4354
        %v4423 = vunpack.c.l.b16 %v4355
        %v4424 = vunpack.c.l.b16 %v4356
        %v4425 = vunpack.c.l.b16 %v4357
        %v4426 = vunpack.c.l.b16 %v4358
        %v4427 = vunpack.c.l.b16 %v4359
        %v4428 = vunpack.c.l.b16 %v4360
        %v4429 = vunpack.c.l.b16 %v4361
        %v4430 = vunpack.c.l.b16 %v4362
        %v4431 = vsel %vm4092, %v4400, %v4399
        %v4432 = vsel %vm4094, %v4401, %v4431
        %v4433 = vsel %vm4096, %v4402, %v4432
        %v4434 = vsel %vm4098, %v4403, %v4433
        %v4435 = vsel %vm4100, %v4404, %v4434
        %v4436 = vsel %vm4102, %v4405, %v4435
        %v4437 = vsel %vm4104, %v4406, %v4436
        %v4438 = vsel %vm4092, %v4408, %v4407
        %v4439 = vsel %vm4094, %v4409, %v4438
        %v4440 = vsel %vm4096, %v4410, %v4439
        %v4441 = vsel %vm4098, %v4411, %v4440
        %v4442 = vsel %vm4100, %v4412, %v4441
        %v4443 = vsel %vm4102, %v4413, %v4442
        %v4444 = vsel %vm4104, %v4414, %v4443
        %v4445 = vsel %vm4092, %v4416, %v4415
        %v4446 = vsel %vm4094, %v4417, %v4445
        %v4447 = vsel %vm4096, %v4418, %v4446
        %v4448 = vsel %vm4098, %v4419, %v4447
        %v4449 = vsel %vm4100, %v4420, %v4448
        %v4450 = vsel %vm4102, %v4421, %v4449
        %v4451 = vsel %vm4104, %v4422, %v4450
        %v4452 = vsel %vm4092, %v4424, %v4423
        %v4453 = vsel %vm4094, %v4425, %v4452
        %v4454 = vsel %vm4096, %v4426, %v4453
        %v4455 = vsel %vm4098, %v4427, %v4454
        %v4456 = vsel %vm4100, %v4428, %v4455
        %v4457 = vsel %vm4102, %v4429, %v4456
        %v4458 = vsel %vm4104, %v4430, %v4457
        %v4459 = vpack.c.b16 %v4444, %v4437
        %v4460 = vpack.c.b16 %v4458, %v4451
        %v4479 = vunpack.c.l.b16 %v452
        %v4480 = vunpack.c.l.b16 %v453
        %v4481 = vunpack.c.l.b16 %v454
        %v4482 = vunpack.c.l.b16 %v455
        %v4483 = vunpack.c.l.b16 %v456
        %v4484 = vunpack.c.l.b16 %v457
        %v4485 = vunpack.c.l.b16 %v458
        %v4486 = vunpack.c.l.b16 %v459
        %v4487 = vunpack.c.l.b16 %v460
        %v4488 = vunpack.c.l.b16 %v461
        %v4489 = vunpack.c.l.b16 %v462
        %v4490 = vunpack.c.l.b16 %v463
        %v4491 = vunpack.c.l.b16 %v464
        %v4492 = vunpack.c.l.b16 %v465
        %v4493 = vunpack.c.l.b16 %v466
        %v4494 = vunpack.c.l.b16 %v467
        %v4495 = vpack.c.b16 %v4480, %v4479
        %v4496 = vpack.c.b16 %v4482, %v4481
        %v4497 = vpack.c.b16 %v4484, %v4483
        %v4498 = vpack.c.b16 %v4486, %v4485
        %v4499 = vpack.c.b16 %v4488, %v4487
        %v4500 = vpack.c.b16 %v4490, %v4489
        %v4501 = vpack.c.b16 %v4492, %v4491
        %v4502 = vpack.c.b16 %v4494, %v4493
        %4511 = vmatprep.subr.bf16.mxu0 0
        %4512 = vmatpush1.bf16.msra.mxu0 %v4495
        %4513 = vmatprep.subr.bf16.mxu0 0
        %4514 = vmatpush1.bf16.msra.mxu0 %v4496
        %4515 = vmatprep.subr.bf16.mxu0 0
        %4516 = vmatpush1.bf16.msra.mxu0 %v4497
        %4517 = vmatprep.subr.bf16.mxu0 0
        %4518 = vmatpush1.bf16.msra.mxu0 %v4498
        %4519 = vmatprep.subr.bf16.mxu0 0
        %4520 = vmatpush1.bf16.msra.mxu0 %v4499
        %4521 = vmatprep.subr.bf16.mxu0 0
        %4522 = vmatpush1.bf16.msra.mxu0 %v4500
        %4523 = vmatprep.subr.bf16.mxu0 0
        %4524 = vmatpush1.bf16.msra.mxu0 %v4501
        %4525 = vmatprep.subr.bf16.mxu0 0
        %4526 = vmatpush1.bf16.msra.mxu0 %v4502
        %4527 = vmatprep.subr.bf16.mxu0 0
        %4528 = vmatpush1.bf16.msra.mxu0 0
        %4529 = vmatprep.subr.bf16.mxu0 0
        %4530 = vmatpush1.bf16.msra.mxu0 0
        %4531 = vmatprep.subr.bf16.mxu0 0
        %4532 = vmatpush1.bf16.msra.mxu0 0
        %4533 = vmatprep.subr.bf16.mxu0 0
        %4534 = vmatpush1.bf16.msra.mxu0 0
        %4535 = vmatprep.subr.bf16.mxu0 0
        %4536 = vmatpush1.bf16.msra.mxu0 0
        %4537 = vmatprep.subr.bf16.mxu0 0
        %4538 = vmatpush1.bf16.msra.mxu0 0
        %4539 = vmatprep.subr.bf16.mxu0 0
        %4540 = vmatpush1.bf16.msra.mxu0 0
        %4541 = vmatprep.subr.bf16.mxu0 0
        %4542 = vmatpush1.bf16.msra.mxu0 0
        %4543 = vmatprep.mubr.bf16.mxu0 0
        %4544 = vmatmul.mubr.bf16.gmra.mrb[0].mxu0 %v4459
        %v4545 = vpop.f32.mrb[0].mxu0
        %v4546 = vadd.f32 %v4366, %v4545
        %v4547 = vpop.f32.mrb[0].mxu0
        %v4548 = vpop.f32.mrb[0].mxu0
        %v4549 = vadd.f32 %v4366, %v4548
        %v4550 = vpop.f32.mrb[0].mxu0
        %4551 = vmatprep.mubr.bf16.mxu0 0
        %4552 = vmatmul.mubr.bf16.gmra.mrb[0].mxu0 %v4460
        %v4553 = vpop.f32.mrb[0].mxu0
        %v4554 = vadd.f32 %v4366, %v4553
        %v4555 = vpop.f32.mrb[0].mxu0
        %v4556 = vpop.f32.mrb[0].mxu0
        %v4557 = vadd.f32 %v4366, %v4556
        %v4558 = vpop.f32.mrb[0].mxu0
        %4559 = vdwg.mxu0
        %v4560 = vmax.f32 %v4546, 0.0
        %v4561 = vmax.f32 %v4549, 0.0
        %v4562 = vmax.f32 %v4554, 0.0
        %v4563 = vmax.f32 %v4557, 0.0
        %v4564 = vpack.c.bf16 %v4561, %v4560
        %v4565 = vpack.c.bf16 %v4563, %v4562
        %v4566 = vlaneseq
        %v4567 = vshrl.u32 %v4566, 7
        %v4568 = vsub.s32 5, %v4567
        %v4569 = vrot.slane %v484, %v4568
        %v4586 = vunpack.c.l.b16 %v468
        %v4587 = vunpack.c.l.b16 %v469
        %v4588 = vunpack.c.l.b16 %v470
        %v4589 = vunpack.c.l.b16 %v471
        %v4590 = vunpack.c.l.b16 %v472
        %v4591 = vunpack.c.l.b16 %v473
        %v4592 = vunpack.c.l.b16 %v474
        %v4593 = vunpack.c.l.b16 %v475
        %v4594 = vunpack.c.l.b16 %v476
        %v4595 = vunpack.c.l.b16 %v477
        %v4596 = vunpack.c.l.b16 %v478
        %v4597 = vunpack.c.l.b16 %v479
        %v4598 = vunpack.c.l.b16 %v480
        %v4599 = vunpack.c.l.b16 %v481
        %v4600 = vunpack.c.l.b16 %v482
        %v4601 = vunpack.c.l.b16 %v483
        %v4602 = vpack.c.b16 %v4587, %v4586
        %v4603 = vpack.c.b16 %v4589, %v4588
        %v4604 = vpack.c.b16 %v4591, %v4590
        %v4605 = vpack.c.b16 %v4593, %v4592
        %v4606 = vpack.c.b16 %v4595, %v4594
        %v4607 = vpack.c.b16 %v4597, %v4596
        %v4608 = vpack.c.b16 %v4599, %v4598
        %v4609 = vpack.c.b16 %v4601, %v4600
        %4618 = vmatprep.subr.bf16.mxu0 0
        %4619 = vmatpush1.bf16.msra.mxu0 %v4602
        %4620 = vmatprep.subr.bf16.mxu0 0
        %4621 = vmatpush1.bf16.msra.mxu0 %v4603
        %4622 = vmatprep.subr.bf16.mxu0 0
        %4623 = vmatpush1.bf16.msra.mxu0 %v4604
        %4624 = vmatprep.subr.bf16.mxu0 0
        %4625 = vmatpush1.bf16.msra.mxu0 %v4605
        %4626 = vmatprep.subr.bf16.mxu0 0
        %4627 = vmatpush1.bf16.msra.mxu0 %v4606
        %4628 = vmatprep.subr.bf16.mxu0 0
        %4629 = vmatpush1.bf16.msra.mxu0 %v4607
        %4630 = vmatprep.subr.bf16.mxu0 0
        %4631 = vmatpush1.bf16.msra.mxu0 %v4608
        %4632 = vmatprep.subr.bf16.mxu0 0
        %4633 = vmatpush1.bf16.msra.mxu0 %v4609
        %4634 = vmatprep.subr.bf16.mxu0 0
        %4635 = vmatpush1.bf16.msra.mxu0 0
        %4636 = vmatprep.subr.bf16.mxu0 0
        %4637 = vmatpush1.bf16.msra.mxu0 0
        %4638 = vmatprep.subr.bf16.mxu0 0
        %4639 = vmatpush1.bf16.msra.mxu0 0
        %4640 = vmatprep.subr.bf16.mxu0 0
        %4641 = vmatpush1.bf16.msra.mxu0 0
        %4642 = vmatprep.subr.bf16.mxu0 0
        %4643 = vmatpush1.bf16.msra.mxu0 0
        %4644 = vmatprep.subr.bf16.mxu0 0
        %4645 = vmatpush1.bf16.msra.mxu0 0
        %4646 = vmatprep.subr.bf16.mxu0 0
        %4647 = vmatpush1.bf16.msra.mxu0 0
        %4648 = vmatprep.subr.bf16.mxu0 0
        %4649 = vmatpush1.bf16.msra.mxu0 0
        %4650 = vmatprep.mubr.bf16.mxu0 0
        %4651 = vmatmul.mubr.bf16.gmra.mrb[0].mxu0 %v4564
        %v4652 = vpop.f32.mrb[0].mxu0
        %v4653 = vadd.f32 %v4569, %v4652
        %v4654 = vpop.f32.mrb[0].mxu0
        %v4655 = vpop.f32.mrb[0].mxu0
        %v4656 = vadd.f32 %v4569, %v4655
        %v4657 = vpop.f32.mrb[0].mxu0
        %4658 = vmatprep.mubr.bf16.mxu0 0
        %4659 = vmatmul.mubr.bf16.gmra.mrb[0].mxu0 %v4565
        %v4660 = vpop.f32.mrb[0].mxu0
        %v4661 = vadd.f32 %v4569, %v4660
        %v4662 = vpop.f32.mrb[0].mxu0
        %v4663 = vpop.f32.mrb[0].mxu0
        %v4664 = vadd.f32 %v4569, %v4663
        %v4665 = vpop.f32.mrb[0].mxu0
        %4666 = vdwg.mxu0
        %v4667 = vxor.u32 %v4653, 2147483648
        %v4668 = vxor.u32 %v4656, 2147483648
        %v4669 = vxor.u32 %v4661, 2147483648
        %v4670 = vxor.u32 %v4664, 2147483648
        %v4671 = vmul.f32 %v4667, 1.442695
        %v4672 = vpow.pop %v4671
        %v4673 = vmul.f32 %v4668, 1.442695
        %v4674 = vpow.pop %v4673
        %v4675 = vmul.f32 %v4669, 1.442695
        %v4676 = vpow.pop %v4675
        %v4677 = vmul.f32 %v4670, 1.442695
        %v4678 = vpow.pop %v4677
        %v4679 = vadd.f32 %v4672, 1.0
        %v4680 = vadd.f32 %v4674, 1.0
        %v4681 = vadd.f32 %v4676, 1.0
        %v4682 = vadd.f32 %v4678, 1.0
        %v4683 = vrcp.pop %v4679
        %v4684 = vmul.f32 1.0, %v4683
        %v4685 = vrcp.pop %v4680
        %v4686 = vmul.f32 1.0, %v4685
        %v4687 = vrcp.pop %v4681
        %v4688 = vmul.f32 1.0, %v4687
        %v4689 = vrcp.pop %v4682
        %v4690 = vmul.f32 1.0, %v4689
        %v4723 = vsel %vm4092, %v4150, %v4144
        %v4724 = vsel %vm4094, %v4156, %v4723
        %v4725 = vsel %vm4096, %v4162, %v4724
        %v4726 = vsel %vm4098, %v4168, %v4725
        %v4727 = vsel %vm4100, %v4174, %v4726
        %v4728 = vsel %vm4102, %v4180, %v4727
        %v4729 = vsel %vm4104, %v4186, %v4728
        %v4730 = vsel %vm4092, %v4198, %v4192
        %v4731 = vsel %vm4094, %v4204, %v4730
        %v4732 = vsel %vm4096, %v4210, %v4731
        %v4733 = vsel %vm4098, %v4216, %v4732
        %v4734 = vsel %vm4100, %v4222, %v4733
        %v4735 = vsel %vm4102, %v4228, %v4734
        %v4736 = vsel %vm4104, %v4234, %v4735
        %v4737 = vsel %vm4092, %v4246, %v4240
        %v4738 = vsel %vm4094, %v4252, %v4737
        %v4739 = vsel %vm4096, %v4258, %v4738
        %v4740 = vsel %vm4098, %v4264, %v4739
        %v4741 = vsel %vm4100, %v4270, %v4740
        %v4742 = vsel %vm4102, %v4276, %v4741
        %v4743 = vsel %vm4104, %v4282, %v4742
        %v4744 = vsel %vm4092, %v4294, %v4288
        %v4745 = vsel %vm4094, %v4300, %v4744
        %v4746 = vsel %vm4096, %v4306, %v4745
        %v4747 = vsel %vm4098, %v4312, %v4746
        %v4748 = vsel %vm4100, %v4318, %v4747
        %v4749 = vsel %vm4102, %v4324, %v4748
        %v4750 = vsel %vm4104, %v4330, %v4749
        %v4755 = vmul.f32 %v4684, %v4729
        %v4756 = vmul.f32 %v4686, %v4736
        %v4757 = vmul.f32 %v4688, %v4743
        %v4758 = vmul.f32 %v4690, %v4750
        %v4759 = vadd.f32 %v485, %v4755
        %v4760 = vadd.f32 %v486, %v4756
        %v4761 = vadd.f32 %v487, %v4757
        %v4762 = vadd.f32 %v488, %v4758
        %4763 = vst [vmem:[%s348] sm:$0xff] %v4759
        %4764 = vst [vmem:[%s348 + $0x8] sm:$0xff] %v4760
        %4765 = vst [vmem:[%s348 + $0x10] sm:$0xff] %v4761
        %4766 = vst [vmem:[%s348 + $0x18] sm:$0xff] %v4762
        %s4767 = sand.u32 %s198, 1
        %s4768 = scalar_lea.sflag [#allocation3], %s4767
        %s4769 = sand.u32 %s198, 1
        %s4770 = smul.addr %s4769, 32
        %s4771 = scalar_lea.vmem [#allocation2], %s4770
        %s4772 = smul.u32 4, %s23
        %p4773 = scmp.lt.s32.totalorder %s4772, 31
        %s4774 = scalar_select %p4773, %s4772, 31
        %s4775 = smul.addr %s4774, 8
        %s4776 = scalar_lea.vmem %s8, %s4775
        // Predicated region
        $region49: #{tpu_custom_call.1} parent=47 // pred_check
          %p4777 = pneg %p208
        $region50: #{tpu_custom_call.1} parent=47 // pred_check_branch
          %4779 = sbr.rel (%p4777) target = $region52
        $region51: #{tpu_custom_call.1} parent=47 // pred_region
          %s4780 = smul.u32 4, %s23
          %s4782 = ssub.s32 512, 512
          %4783 = vsyncadd %s4768, %s4782
          %s4784 = smul.addr %s4780, 128
          %s4785 = scalar_lea.hbm %s7, %s4784
          %s4786 = sshll.u32 %s4771, 4
          %s4787 = int_to_ptr.vmem [resolvable:$true] %s4786
          %4792 = dma.vmem_to_hbm [thread:$0]  %s4787, 512, %s4785, %s4768, 128, 128, 8
        $region52: #{tpu_custom_call.1} parent=47 // pred_fallthru
          _
        // Predicated region
        $region53: #{tpu_custom_call.1} parent=47 // pred_check
          %p4793 = pneg %p234
        $region54: #{tpu_custom_call.1} parent=47 // pred_check_branch
          %4795 = sbr.rel (%p4793) target = $region56
        $region55: #{tpu_custom_call.1} parent=47 // pred_region
          %s4796 = smul.u32 4, %s23
        $region56: #{tpu_custom_call.1} parent=47 // pred_fallthru
          _
      $region48: #{tpu_custom_call.1} parent=5 // pred_fallthru
        _
      %p4797 = scmp.le.s32.totalorder 2, %s18
      // Predicated region
      $region57: #{tpu_custom_call.1} parent=5 // pred_check
        %p4798 = pneg %p4797
      $region58: #{tpu_custom_call.1} parent=5 // pred_check_branch
        %4800 = sbr.rel (%p4798) target = $region60
      $region59: #{tpu_custom_call.1} parent=5 // pred_region
        %s4801 = ssub.s32 %s18, 2
        // Predicated region
        $region61: #{tpu_custom_call.1} parent=59 // pred_check
          %p4802 = pneg %p214
        $region62: #{tpu_custom_call.1} parent=59 // pred_check_branch
          %4804 = sbr.rel (%p4802) target = $region64
        $region63: #{tpu_custom_call.1} parent=59 // pred_region
          %s4805 = sand.u32 %s199, 1
          %s4806 = scalar_lea.sflag [#allocation3], %s4805
          %s4807 = sand.u32 %s199, 1
          %s4808 = smul.addr %s4807, 32
          %s4809 = scalar_lea.vmem [#allocation2], %s4808
          %4810 = dma.done %s4806, 512
        $region64: #{tpu_custom_call.1} parent=59 // pred_fallthru
          _
        // Predicated region
        $region65: #{tpu_custom_call.1} parent=59 // pred_check
          %p4811 = pneg %p240
        $region66: #{tpu_custom_call.1} parent=59 // pred_check_branch
          %4813 = sbr.rel (%p4811) target = $region68
        $region67: #{tpu_custom_call.1} parent=59 // pred_region
          %s4814 = smul.u32 4, %s24
          %p4815 = scmp.lt.s32.totalorder %s4814, 31
          %s4816 = scalar_select %p4815, %s4814, 31
          %s4817 = smul.addr %s4816, 8
          %s4818 = scalar_lea.vmem %s8, %s4817
        $region68: #{tpu_custom_call.1} parent=59 // pred_fallthru
          _
      $region60: #{tpu_custom_call.1} parent=5 // pred_fallthru
        _
    $region6: #{tpu_custom_call.1} parent=1 // loop_footer
      %s22 = sadd.s32 1, %s18
    $region7: #{tpu_custom_call.1} parent=1 // loop_footer_branch
      %17 = sbr.rel target = $region3
    $region8: #{tpu_custom_call.1} parent=1 // loop_exit
      _
    %4819 = vsyncpa [#allocation3], 1
    %s4820 = scalar_lea.sflag [#allocation3], 1
    %4821 = vsyncpa %s4820, 1

</llo_original>
